<compile_context>
chip_gen: v7x
topology: tpu7x:2x2x1
jax: 0.10.0
libtpu: 0.0.40
codegen_flags: <defaults>
</compile_context>

<pallas_src>
import functools

import jax
import jax.numpy as jnp
from jax.experimental import pallas as pl
from jax.experimental.pallas import tpu as pltpu

# ---- module hyper-parameters (args.*) --------------------------------------
NUM_LAYER = 2          # args.num_layer  (must be >= 2)
EMB_DIM   = 32         # args.emb_dim
HIDDEN    = 2 * EMB_DIM
NUM_TASKS = 3
JK        = "last"     # args.JK
POOLING   = "mean"     # args.graph_pooling -> global_mean_pool

NUM_ATOM_TYPE = 120
NUM_CHIRALITY = 3
NUM_BOND_TYPE = 6      # bond type 4 == self-loop
NUM_BOND_DIR  = 3
BN_EPS        = 1e-5

# ---- kernel tiling constants ------------------------------------------------
ROW_TILE = 256         # node row tile  (multiple of 256 for v6e/v7x MXU fill)
COL_TILE = 512         # neighbor-column (reduction) tile of the adjacency
TASK_PAD = 128         # lane-dense padding of the prediction-head output
VMEM_LIMIT = 16 * 1024 * 1024   # honest limit; real footprint is a few MiB


def _round_up(x, m):
    return ((x + m - 1) // m) * m


# ---------------------------------------------------------------------------
# Fused kernel: all GIN layers + mean pooling + prediction head
#   grid = (layer, node-row-block, neighbor-col-block), iterated sequentially.
#   h lives in a ping-pong VMEM scratch (2 slots of Np rows each):
#     layer l reads slot (l+1)%2 and writes slot l%2; slot 1 is seeded with h0.
# ---------------------------------------------------------------------------
def _gnn_fused_kernel(a_ref, h0_ref, eagg_ref, w1_ref, b1_ref, w2_ref, b2_ref,
                      p_ref, wp_ref, bp_ref, out_ref,
                      h_buf, acc_ref, g_ref, *, n_pad):
    l = pl.program_id(0)
    i = pl.program_id(1)
    k = pl.program_id(2)
    n_l = pl.num_programs(0)
    n_i = pl.num_programs(1)
    n_k = pl.num_programs(2)

    # Seed the ping-pong node-feature buffer (slot 1 <- h0) and zero the pooled
    # accumulator, once at the very first grid step.
    @pl.when((l == 0) & (i == 0) & (k == 0))
    def _seed():
        h_buf[pl.ds(n_pad, n_pad), :] = h0_ref[...]
        g_ref[...] = jnp.zeros_like(g_ref)

    @pl.when(k == 0)
    def _init_acc():
        acc_ref[...] = jnp.zeros_like(acc_ref)

    # Message passing: sum over neighbor columns.  A block is bf16 (exact small
    # integer edge counts), h is bf16, accumulation stays f32.
    src_off = ((l + 1) % 2) * n_pad
    col_start = pl.multiple_of(src_off + k * COL_TILE, COL_TILE)
    h_cols = h_buf[pl.ds(col_start, COL_TILE), :]
    acc_ref[...] += jnp.dot(a_ref[...], h_cols,
                            preferred_element_type=jnp.float32)

    @pl.when(k == n_k - 1)
    def _finalize_row_block():
        is_last_layer = l == n_l - 1

        # GIN: aggr = A.h + scatter-summed edge embeddings, then
        # MLP: Linear(D,2D) -> ReLU -> Linear(2D,D)   (BatchNorm folded in W2/b2)
        aggr = acc_ref[...] + eagg_ref[0]
        z = jnp.dot(aggr, w1_ref[0], preferred_element_type=jnp.float32) + b1_ref[0]
        z = jnp.maximum(z, 0.0)
        h_new = jnp.dot(z, w2_ref[0], preferred_element_type=jnp.float32) + b2_ref[0]
        # ReLU on all but the last layer (JK='last')
        h_act = jnp.where(is_last_layer, h_new, jnp.maximum(h_new, 0.0))

        dst_off = (l % 2) * n_pad
        row_start = pl.multiple_of(dst_off + i * ROW_TILE, ROW_TILE)
        h_buf[pl.ds(row_start, ROW_TILE), :] = h_act.astype(h_buf.dtype)

        # Mean pooling fused into the last layer's finalize.  Padded node
        # columns of P are zero, so (nonzero) padded-node features are ignored.
        @pl.when(is_last_layer)
        def _pool():
            g_ref[...] += jnp.dot(p_ref[...], h_act,
                                  preferred_element_type=jnp.float32)

        # Prediction head on the very last grid step (lane-dense 128-wide out).
        @pl.when(is_last_layer & (i == n_i - 1))
        def _predict():
            out_ref[...] = (jnp.dot(g_ref[...], wp_ref[...],
                                    preferred_element_type=jnp.float32)
                            + bp_ref[...])


def gnn_graphpred_pallas(A, h0, eagg, w1, b1, w2f, b2f, P, wp_pad, bp_pad):
    n_pad, D = h0.shape
    Gp = P.shape[0]
    L = w1.shape[0]
    H = w1.shape[-1]
    Tp = wp_pad.shape[-1]
    n_rows = n_pad // ROW_TILE
    n_cols = n_pad // COL_TILE

    kernel = functools.partial(_gnn_fused_kernel, n_pad=n_pad)
    return pl.pallas_call(
        kernel,
        out_shape=jax.ShapeDtypeStruct((Gp, Tp), jnp.float32),
        grid=(L, n_rows, n_cols),
        in_specs=[
            pl.BlockSpec((ROW_TILE, COL_TILE), lambda l, i, k: (i, k)),    # A block
            pl.BlockSpec((n_pad, D),           lambda l, i, k: (0, 0)),    # h0 (resident)
            pl.BlockSpec((1, ROW_TILE, D),     lambda l, i, k: (l, i, 0)), # eagg rows
            pl.BlockSpec((1, D, H),            lambda l, i, k: (l, 0, 0)), # W1
            pl.BlockSpec((1, 1, H),            lambda l, i, k: (l, 0, 0)), # b1
            pl.BlockSpec((1, H, D),            lambda l, i, k: (l, 0, 0)), # W2 (BN-folded)
            pl.BlockSpec((1, 1, D),            lambda l, i, k: (l, 0, 0)), # b2 (BN-folded)
            pl.BlockSpec((Gp, ROW_TILE),       lambda l, i, k: (0, i)),    # pooling cols
            pl.BlockSpec((D, Tp),              lambda l, i, k: (0, 0)),    # pred weight
            pl.BlockSpec((1, Tp),              lambda l, i, k: (0, 0)),    # pred bias
        ],
        out_specs=pl.BlockSpec((Gp, Tp), lambda l, i, k: (0, 0)),
        scratch_shapes=[
            pltpu.VMEM((2 * n_pad, D), jnp.bfloat16),   # ping-pong node features
            pltpu.VMEM((ROW_TILE, D), jnp.float32),     # neighbor-sum accumulator
            pltpu.VMEM((Gp, D), jnp.float32),           # pooled graph representation
        ],
        compiler_params=pltpu.CompilerParams(
            dimension_semantics=("arbitrary", "arbitrary", "arbitrary"),
            vmem_limit_bytes=VMEM_LIMIT),
    )(A, h0, eagg, w1, b1, w2f, b2f, P, wp_pad, bp_pad)


# ---------------------------------------------------------------------------
# Glue: embeddings, dense adjacency, pooling matrix, BN folding (plain JAX)
# ---------------------------------------------------------------------------
def build_kernel_inputs(x, edge_index, edge_attr, batch, params, num_graphs):
    N = x.shape[0]
    Np = _round_up(max(N, COL_TILE), COL_TILE)     # multiple of COL_TILE (=> ROW_TILE)
    Gp = _round_up(max(num_graphs, 8), 8)          # pad graphs to sublane multiple

    # atom embedding, zero-padded, stored bf16 (consumed only as an MXU operand)
    h0 = params["atom_emb1"][x[:, 0]] + params["atom_emb2"][x[:, 1]]
    h0 = jnp.zeros((Np, EMB_DIM), jnp.float32).at[:N].set(h0).astype(jnp.bfloat16)

    # add self loops with bond type 4 / direction 0 (as in geom3d GINConv)
    src, dst = edge_index[0], edge_index[1]
    loop = jnp.arange(N, dtype=src.dtype)
    src_sl = jnp.concatenate([src, loop])
    dst_sl = jnp.concatenate([dst, loop])
    self_attr = jnp.stack(
        [jnp.full((N,), 4, dtype=edge_attr.dtype),
         jnp.zeros((N,), dtype=edge_attr.dtype)], axis=1)
    ea_sl = jnp.concatenate([edge_attr, self_attr], axis=0)

    # dense adjacency (with self loops), bf16: A[i, j] = #edges j -> i (small
    # integer counts -> exact in bf16).  Padded rows/cols are zero, so padded
    # nodes never influence real nodes even once their features become nonzero.
    A = jnp.zeros((Np, Np), jnp.float32).at[dst_sl, src_sl].add(1.0)
    A = A.astype(jnp.bfloat16)
    # TODO(synk): for large batched graphs (Np in the thousands) replace the
    # dense A.h with block-sparse aggregation (PrefetchScalarGridSpec with
    # per-row-block lists of non-empty column blocks) to skip the >95% empty
    # tiles and drop the O(Np^2) adjacency materialization.

    # per-layer edge embeddings, scattered (summed) onto destination nodes (f32, exact)
    eagg = []
    for l in range(NUM_LAYER):
        e_emb = (params["edge_emb1"][l][ea_sl[:, 0]]
                 + params["edge_emb2"][l][ea_sl[:, 1]])
        eagg.append(jnp.zeros((Np, EMB_DIM), jnp.float32).at[dst_sl].add(e_emb))
    eagg = jnp.stack(eagg, axis=0)

    # mean-pooling matrix [Gp, Np]; padded rows/cols are zero
    onehot = (batch[None, :] == jnp.arange(num_graphs)[:, None]).astype(jnp.float32)
    counts = jnp.maximum(onehot.sum(axis=1, keepdims=True), 1.0)
    P = jnp.zeros((Gp, Np), jnp.float32).at[:num_graphs, :N].set(onehot / counts)
    return h0, A, eagg, P


def fold_batchnorm(params):
    """Fold eval-mode BatchNorm1d (running stats + affine) into W2 / b2."""
    scale = params["bn_gamma"] / jnp.sqrt(params["bn_var"] + BN_EPS)      # [L, D]
    w2 = params["w2"] * scale[:, None, :]                                 # [L, H, D]
    b2 = ((params["b2"] - params["bn_mean"][:, None, :]) * scale[:, None, :]
          + params["bn_beta"][:, None, :])                                # [L, 1, D]
    return w2, b2


def pad_pred_head(wp, bp):
    """Pad prediction head to a lane-dense (128-wide) output."""
    wp_pad = jnp.zeros((EMB_DIM, TASK_PAD), jnp.float32).at[:, :NUM_TASKS].set(wp)
    bp_pad = jnp.zeros((1, TASK_PAD), jnp.float32).at[:, :NUM_TASKS].set(bp)
    return wp_pad, bp_pad


@functools.partial(jax.jit, static_argnames=("num_graphs",))
def gnn_graphpred_forward(x, edge_index, edge_attr, batch, params, *, num_graphs):
    h0, A, eagg, P = build_kernel_inputs(x, edge_index, edge_attr, batch,
                                         params, num_graphs)
    w2f, b2f = fold_batchnorm(params)
    wp_pad, bp_pad = pad_pred_head(params["wp"], params["bp"])
    out_pad = gnn_graphpred_pallas(A, h0, eagg,
                                   params["w1"], params["b1"], w2f, b2f,
                                   P, wp_pad, bp_pad)
    return out_pad[:num_graphs, :NUM_TASKS]


# ---------------------------------------------------------------------------
# Pure-JAX reference (mirrors the PyTorch module in eval mode)
# ---------------------------------------------------------------------------
def reference_forward(x, edge_index, edge_attr, batch, params, num_graphs):
    N = x.shape[0]
    h = params["atom_emb1"][x[:, 0]] + params["atom_emb2"][x[:, 1]]
    src, dst = edge_index[0], edge_index[1]
    loop = jnp.arange(N, dtype=src.dtype)
    src_sl = jnp.concatenate([src, loop])
    dst_sl = jnp.concatenate([dst, loop])
    self_attr = jnp.stack([jnp.full((N,), 4, edge_attr.dtype),
                           jnp.zeros((N,), edge_attr.dtype)], axis=1)
    ea_sl = jnp.concatenate([edge_attr, self_attr], axis=0)

    for l in range(NUM_LAYER):
        e = params["edge_emb1"][l][ea_sl[:, 0]] + params["edge_emb2"][l][ea_sl[:, 1]]
        msg = h[src_sl] + e
        aggr = jnp.zeros((N, EMB_DIM), jnp.float32).at[dst_sl].add(msg)
        z = jnp.maximum(aggr @ params["w1"][l] + params["b1"][l], 0.0)
        hh = z @ params["w2"][l] + params["b2"][l]
        scale = params["bn_gamma"][l] / jnp.sqrt(params["bn_var"][l] + BN_EPS)
        hh = (hh - params["bn_mean"][l]) * scale + params["bn_beta"][l]
        h = jnp.maximum(hh, 0.0) if l != NUM_LAYER - 1 else hh

    onehot = (batch[None, :] == jnp.arange(num_graphs)[:, None]).astype(jnp.float32)
    g = (onehot @ h) / jnp.maximum(onehot.sum(axis=1, keepdims=True), 1.0)
    return g @ params["wp"] + params["bp"]


# ---------------------------------------------------------------------------
# Parameter init
# ---------------------------------------------------------------------------
def init_params(key):
    ks = jax.random.split(key, 16)
    s = 0.1
    params = {
        "atom_emb1": s * jax.random.normal(ks[0], (NUM_ATOM_TYPE, EMB_DIM), jnp.float32),
        "atom_emb2": s * jax.random.normal(ks[1], (NUM_CHIRALITY, EMB_DIM), jnp.float32),
        "edge_emb1": s * jax.random.normal(ks[2], (NUM_LAYER, NUM_BOND_TYPE, EMB_DIM), jnp.float32),
        "edge_emb2": s * jax.random.normal(ks[3], (NUM_LAYER, NUM_BOND_DIR, EMB_DIM), jnp.float32),
        "w1": s * jax.random.normal(ks[4], (NUM_LAYER, EMB_DIM, HIDDEN), jnp.float32),
        "b1": s * jax.random.normal(ks[5], (NUM_LAYER, 1, HIDDEN), jnp.float32),
        "w2": s * jax.random.normal(ks[6], (NUM_LAYER, HIDDEN, EMB_DIM), jnp.float32),
        "b2": s * jax.random.normal(ks[7], (NUM_LAYER, 1, EMB_DIM), jnp.float32),
        "wp": s * jax.random.normal(ks[8], (EMB_DIM, NUM_TASKS), jnp.float32),
        "bp": s * jax.random.normal(ks[9], (1, NUM_TASKS), jnp.float32),
        # BatchNorm1d (eval mode) running stats + affine, folded into w2/b2
        "bn_gamma": 1.0 + 0.1 * jax.random.normal(ks[10], (NUM_LAYER, EMB_DIM), jnp.float32),
        "bn_beta":  0.1 * jax.random.normal(ks[11], (NUM_LAYER, EMB_DIM), jnp.float32),
        "bn_mean":  0.1 * jax.random.normal(ks[12], (NUM_LAYER, EMB_DIM), jnp.float32),
        "bn_var":   1.0 + 0.5 * jax.random.uniform(ks[13], (NUM_LAYER, EMB_DIM), jnp.float32),
    }
    return params


if __name__ == "__main__":
    key = jax.random.PRNGKey(0)
    k_param, k_x, k_chir, k_src, k_dst, k_bt, k_bd = jax.random.split(key, 7)

    N_NODES = 16
    N_EDGES = 24
    N_GRAPHS = 2

    params = init_params(k_param)

    # node features: [N, 2] = (atom type, chirality tag)
    x = jnp.stack(
        [jax.random.randint(k_x, (N_NODES,), 0, NUM_ATOM_TYPE),
         jax.random.randint(k_chir, (N_NODES,), 0, NUM_CHIRALITY)], axis=1
    ).astype(jnp.int32)

    # edges: [2, E]; edge_attr: [E, 2] = (bond type in [0,4), bond direction)
    edge_index = jnp.stack(
        [jax.random.randint(k_src, (N_EDGES,), 0, N_NODES),
         jax.random.randint(k_dst, (N_EDGES,), 0, N_NODES)], axis=0
    ).astype(jnp.int32)
    edge_attr = jnp.stack(
        [jax.random.randint(k_bt, (N_EDGES,), 0, 4),
         jax.random.randint(k_bd, (N_EDGES,), 0, NUM_BOND_DIR)], axis=1
    ).astype(jnp.int32)

    # batch assignment: 9 nodes -> graph 0, 7 nodes -> graph 1
    batch = jnp.concatenate(
        [jnp.zeros((9,), jnp.int32), jnp.ones((7,), jnp.int32)])

    out = gnn_graphpred_forward(x, edge_index, edge_attr, batch, params,
                                num_graphs=N_GRAPHS)
    out = jax.block_until_ready(out)

    assert out.shape == (N_GRAPHS, NUM_TASKS)
    assert out.dtype == jnp.float32
    assert bool(jnp.all(jnp.isfinite(out)))

    # check against the pure-JAX reference (bf16 MXU operands -> loose tol)
    ref = reference_forward(x, edge_index, edge_attr, batch, params, N_GRAPHS)
    assert bool(jnp.allclose(out, ref, atol=2e-2, rtol=2e-2))

    print("KERNEL_OK")
</pallas_src>

<mosaic_0001>
module attributes {stable_mosaic.version = 11 : i64} {
  func.func @_gnn_fused_kernel(%arg0: i32, %arg1: i32, %arg2: i32, %arg3: memref<256x512xbf16, #tpu.memory_space<vmem>>, %arg4: memref<512x32xbf16, #tpu.memory_space<vmem>>, %arg5: memref<1x256x32xf32, #tpu.memory_space<vmem>>, %arg6: memref<1x32x64xf32, #tpu.memory_space<vmem>>, %arg7: memref<1x1x64xf32, #tpu.memory_space<vmem>>, %arg8: memref<1x64x32xf32, #tpu.memory_space<vmem>>, %arg9: memref<1x1x32xf32, #tpu.memory_space<vmem>>, %arg10: memref<8x256xf32, #tpu.memory_space<vmem>>, %arg11: memref<32x128xf32, #tpu.memory_space<vmem>>, %arg12: memref<1x128xf32, #tpu.memory_space<vmem>>, %arg13: memref<8x128xf32, #tpu.memory_space<vmem>>, %arg14: memref<1024x32xbf16, #tpu.memory_space<vmem>>, %arg15: memref<256x32xf32, #tpu.memory_space<vmem>>, %arg16: memref<8x32xf32, #tpu.memory_space<vmem>>) attributes {dimension_semantics = [#tpu.dimension_semantics<arbitrary>, #tpu.dimension_semantics<arbitrary>, #tpu.dimension_semantics<arbitrary>], iteration_bounds = array<i64: 2, 2, 1>, scalar_prefetch = 0 : i64, scratch_operands = 3 : i64, tpu.core_type = #tpu.core_type<tc>, window_params = [{transform_indices = @transform_0, window_bounds = array<i64: 256, 512>}, {pipeline_mode = #tpu.pipeline_mode<synchronous>, transform_indices = @transform_1, window_bounds = array<i64: 512, 32>}, {transform_indices = @transform_2, window_bounds = array<i64: 1, 256, 32>}, {transform_indices = @transform_3, window_bounds = array<i64: 1, 32, 64>}, {transform_indices = @transform_4, window_bounds = array<i64: 1, 1, 64>}, {transform_indices = @transform_5, window_bounds = array<i64: 1, 64, 32>}, {transform_indices = @transform_6, window_bounds = array<i64: 1, 1, 32>}, {transform_indices = @transform_7, window_bounds = array<i64: 8, 256>}, {pipeline_mode = #tpu.pipeline_mode<synchronous>, transform_indices = @transform_8, window_bounds = array<i64: 32, 128>}, {pipeline_mode = #tpu.pipeline_mode<synchronous>, transform_indices = @transform_9, window_bounds = array<i64: 1, 128>}, {pipeline_mode = #tpu.pipeline_mode<synchronous>, transform_indices = @transform_10, window_bounds = array<i64: 8, 128>}]} {
    %c0_i32 = arith.constant 0 : i32
    %0 = arith.cmpi eq, %arg0, %c0_i32 : i32
    %c0_i32_0 = arith.constant 0 : i32
    %1 = arith.cmpi eq, %arg1, %c0_i32_0 : i32
    %2 = arith.andi %0, %1 : i1
    %c0_i32_1 = arith.constant 0 : i32
    %3 = arith.cmpi eq, %arg2, %c0_i32_1 : i32
    %4 = arith.andi %2, %3 : i1
    %5 = arith.extui %4 : i1 to i32
    %c0_i32_2 = arith.constant 0 : i32
    %6 = arith.cmpi ne, %5, %c0_i32_2 : i32
    scf.if %6 {
      %c0_19 = arith.constant 0 : index
      %c0_20 = arith.constant 0 : index
      %35 = vector.load %arg4[%c0_19, %c0_20] : memref<512x32xbf16, #tpu.memory_space<vmem>>, vector<512x32xbf16>
      %c512 = arith.constant 512 : index
      %c0_21 = arith.constant 0 : index
      %36 = vector.load %arg14[%c512, %c0_21] : memref<1024x32xbf16, #tpu.memory_space<vmem>>, vector<512x32xbf16>
      tpu.vector_store %arg14[%c512, %c0_21], %35 {strides = array<i32>} : memref<1024x32xbf16, #tpu.memory_space<vmem>>, vector<512x32xbf16>,
      %cst_22 = arith.constant 0.000000e+00 : f32
      %37 = vector.broadcast %cst_22 : f32 to vector<8x32xf32>
      %c0_23 = arith.constant 0 : index
      %c0_24 = arith.constant 0 : index
      %38 = vector.load %arg16[%c0_23, %c0_24] : memref<8x32xf32, #tpu.memory_space<vmem>>, vector<8x32xf32>
      tpu.vector_store %arg16[%c0_23, %c0_24], %37 {strides = array<i32>} : memref<8x32xf32, #tpu.memory_space<vmem>>, vector<8x32xf32>,
    } else {
    }
    %c0_i32_3 = arith.constant 0 : i32
    %7 = arith.cmpi eq, %arg2, %c0_i32_3 : i32
    %8 = arith.extui %7 : i1 to i32
    %c0_i32_4 = arith.constant 0 : i32
    %9 = arith.cmpi ne, %8, %c0_i32_4 : i32
    scf.if %9 {
      %cst_19 = arith.constant 0.000000e+00 : f32
      %35 = vector.broadcast %cst_19 : f32 to vector<256x32xf32>
      %c0_20 = arith.constant 0 : index
      %c0_21 = arith.constant 0 : index
      %36 = vector.load %arg15[%c0_20, %c0_21] : memref<256x32xf32, #tpu.memory_space<vmem>>, vector<256x32xf32>
      tpu.vector_store %arg15[%c0_20, %c0_21], %35 {strides = array<i32>} : memref<256x32xf32, #tpu.memory_space<vmem>>, vector<256x32xf32>,
    } else {
    }
    %c1_i32 = arith.constant 1 : i32
    %10 = arith.addi %arg0, %c1_i32 : i32
    %c2_i32 = arith.constant 2 : i32
    %c0_i32_5 = arith.constant 0 : i32
    %11 = arith.cmpi eq, %c2_i32, %c0_i32_5 : i32
    %c1_i32_6 = arith.constant 1 : i32
    %12 = arith.select %11, %c1_i32_6, %c2_i32 : i32
    %13 = arith.remsi %10, %12 : i32
    %c0_i32_7 = arith.constant 0 : i32
    %14 = arith.cmpi ne, %13, %c0_i32_7 : i32
    %c0_i32_8 = arith.constant 0 : i32
    %15 = arith.cmpi slt, %13, %c0_i32_8 : i32
    %c0_i32_9 = arith.constant 0 : i32
    %16 = arith.cmpi slt, %12, %c0_i32_9 : i32
    %17 = arith.xori %15, %16 : i1
    %18 = arith.andi %17, %14 : i1
    %19 = arith.addi %13, %12 : i32
    %20 = arith.select %18, %19, %13 : i32
    %c512_i32 = arith.constant 512 : i32
    %21 = arith.muli %20, %c512_i32 : i32
    %c512_i32_10 = arith.constant 512 : i32
    %22 = arith.muli %arg2, %c512_i32_10 : i32
    %23 = arith.addi %21, %22 : i32
    %24 = tpu.assume_multiple %23, 512 : i32
    %25 = arith.index_cast %24 : i32 to index
    %c0 = arith.constant 0 : index
    %26 = vector.load %arg14[%25, %c0] : memref<1024x32xbf16, #tpu.memory_space<vmem>>, vector<512x32xbf16>
    %c0_11 = arith.constant 0 : index
    %c0_12 = arith.constant 0 : index
    %27 = vector.load %arg15[%c0_11, %c0_12] : memref<256x32xf32, #tpu.memory_space<vmem>>, vector<256x32xf32>
    %c0_13 = arith.constant 0 : index
    %c0_14 = arith.constant 0 : index
    %28 = vector.load %arg3[%c0_13, %c0_14] : memref<256x512xbf16, #tpu.memory_space<vmem>>, vector<256x512xbf16>
    %cst = arith.constant dense<0.000000e+00> : vector<256x32xf32>
    %29 = tpu.matmul %28, %26, %cst {dimension_numbers = #tpu.dot_dimension_numbers<[1], [0], [0], [1], [0, 0, 1, 1], [], []>} : vector<256x512xbf16>, vector<512x32xbf16>, vector<256x32xf32> -> vector<256x32xf32>
    %30 = arith.addf %27, %29 : vector<256x32xf32>
    %c0_15 = arith.constant 0 : index
    %c0_16 = arith.constant 0 : index
    %31 = vector.load %arg15[%c0_15, %c0_16] : memref<256x32xf32, #tpu.memory_space<vmem>>, vector<256x32xf32>
    tpu.vector_store %arg15[%c0_15, %c0_16], %30 {strides = array<i32>} : memref<256x32xf32, #tpu.memory_space<vmem>>, vector<256x32xf32>,
    %c0_i32_17 = arith.constant 0 : i32
    %32 = arith.cmpi eq, %arg2, %c0_i32_17 : i32
    %33 = arith.extui %32 : i1 to i32
    %c0_i32_18 = arith.constant 0 : i32
    %34 = arith.cmpi ne, %33, %c0_i32_18 : i32
    scf.if %34 {
      %c1_i32_19 = arith.constant 1 : i32
      %35 = arith.cmpi eq, %arg0, %c1_i32_19 : i32
      %c0_20 = arith.constant 0 : index
      %c0_21 = arith.constant 0 : index
      %36 = vector.load %arg15[%c0_20, %c0_21] : memref<256x32xf32, #tpu.memory_space<vmem>>, vector<256x32xf32>
      %c0_22 = arith.constant 0 : index
      %c0_23 = arith.constant 0 : index
      %c0_24 = arith.constant 0 : index
      %37 = vector.load %arg5[%c0_22, %c0_23, %c0_24] : memref<1x256x32xf32, #tpu.memory_space<vmem>>, vector<1x256x32xf32>
      %38 = vector.shape_cast %37 : vector<1x256x32xf32> to vector<256x32xf32>
      %39 = arith.addf %36, %38 : vector<256x32xf32>
      %c0_25 = arith.constant 0 : index
      %c0_26 = arith.constant 0 : index
      %c0_27 = arith.constant 0 : index
      %40 = vector.load %arg6[%c0_25, %c0_26, %c0_27] : memref<1x32x64xf32, #tpu.memory_space<vmem>>, vector<1x32x64xf32>
      %41 = vector.shape_cast %40 : vector<1x32x64xf32> to vector<32x64xf32>
      %cst_28 = arith.constant dense<0.000000e+00> : vector<256x64xf32>
      %42 = tpu.matmul %39, %41, %cst_28 {dimension_numbers = #tpu.dot_dimension_numbers<[1], [0], [0], [1], [0, 0, 1, 1], [], []>} : vector<256x32xf32>, vector<32x64xf32>, vector<256x64xf32> -> vector<256x64xf32>
      %c0_29 = arith.constant 0 : index
      %c0_30 = arith.constant 0 : index
      %c0_31 = arith.constant 0 : index
      %43 = vector.load %arg7[%c0_29, %c0_30, %c0_31] : memref<1x1x64xf32, #tpu.memory_space<vmem>>, vector<1x1x64xf32>
      %44 = vector.shape_cast %43 : vector<1x1x64xf32> to vector<1x64xf32>
      %45 = vector.broadcast %44 : vector<1x64xf32> to vector<256x64xf32>
      %46 = arith.addf %42, %45 : vector<256x64xf32>
      %cst_32 = arith.constant 0.000000e+00 : f32
      %47 = vector.broadcast %cst_32 : f32 to vector<256x64xf32>
      %48 = arith.maximumf %46, %47 : vector<256x64xf32>
      %c0_33 = arith.constant 0 : index
      %c0_34 = arith.constant 0 : index
      %c0_35 = arith.constant 0 : index
      %49 = vector.load %arg8[%c0_33, %c0_34, %c0_35] : memref<1x64x32xf32, #tpu.memory_space<vmem>>, vector<1x64x32xf32>
      %50 = vector.shape_cast %49 : vector<1x64x32xf32> to vector<64x32xf32>
      %cst_36 = arith.constant dense<0.000000e+00> : vector<256x32xf32>
      %51 = tpu.matmul %48, %50, %cst_36 {dimension_numbers = #tpu.dot_dimension_numbers<[1], [0], [0], [1], [0, 0, 1, 1], [], []>} : vector<256x64xf32>, vector<64x32xf32>, vector<256x32xf32> -> vector<256x32xf32>
      %c0_37 = arith.constant 0 : index
      %c0_38 = arith.constant 0 : index
      %c0_39 = arith.constant 0 : index
      %52 = vector.load %arg9[%c0_37, %c0_38, %c0_39] : memref<1x1x32xf32, #tpu.memory_space<vmem>>, vector<1x1x32xf32>
      %53 = vector.shape_cast %52 : vector<1x1x32xf32> to vector<1x32xf32>
      %54 = vector.broadcast %53 : vector<1x32xf32> to vector<256x32xf32>
      %55 = arith.addf %51, %54 : vector<256x32xf32>
      %cst_40 = arith.constant 0.000000e+00 : f32
      %56 = vector.broadcast %cst_40 : f32 to vector<256x32xf32>
      %57 = arith.maximumf %55, %56 : vector<256x32xf32>
      %58 = arith.select %35, %55, %57 : vector<256x32xf32>
      %c2_i32_41 = arith.constant 2 : i32
      %c0_i32_42 = arith.constant 0 : i32
      %59 = arith.cmpi eq, %c2_i32_41, %c0_i32_42 : i32
      %c1_i32_43 = arith.constant 1 : i32
      %60 = arith.select %59, %c1_i32_43, %c2_i32_41 : i32
      %61 = arith.remsi %arg0, %60 : i32
      %c0_i32_44 = arith.constant 0 : i32
      %62 = arith.cmpi ne, %61, %c0_i32_44 : i32
      %c0_i32_45 = arith.constant 0 : i32
      %63 = arith.cmpi slt, %61, %c0_i32_45 : i32
      %c0_i32_46 = arith.constant 0 : i32
      %64 = arith.cmpi slt, %60, %c0_i32_46 : i32
      %65 = arith.xori %63, %64 : i1
      %66 = arith.andi %65, %62 : i1
      %67 = arith.addi %61, %60 : i32
      %68 = arith.select %66, %67, %61 : i32
      %c512_i32_47 = arith.constant 512 : i32
      %69 = arith.muli %68, %c512_i32_47 : i32
      %c256_i32 = arith.constant 256 : i32
      %70 = arith.muli %arg1, %c256_i32 : i32
      %71 = arith.addi %69, %70 : i32
      %72 = tpu.assume_multiple %71, 256 : i32
      %73 = arith.truncf %58 : vector<256x32xf32> to vector<256x32xbf16>
      %74 = arith.index_cast %72 : i32 to index
      %c0_48 = arith.constant 0 : index
      %75 = vector.load %arg14[%74, %c0_48] : memref<1024x32xbf16, #tpu.memory_space<vmem>>, vector<256x32xbf16>
      tpu.vector_store %arg14[%74, %c0_48], %73 {strides = array<i32>} : memref<1024x32xbf16, #tpu.memory_space<vmem>>, vector<256x32xbf16>,
      %76 = arith.extui %35 : i1 to i32
      %c0_i32_49 = arith.constant 0 : i32
      %77 = arith.cmpi ne, %76, %c0_i32_49 : i32
      scf.if %77 {
        %c0_52 = arith.constant 0 : index
        %c0_53 = arith.constant 0 : index
        %82 = vector.load %arg16[%c0_52, %c0_53] : memref<8x32xf32, #tpu.memory_space<vmem>>, vector<8x32xf32>
        %c0_54 = arith.constant 0 : index
        %c0_55 = arith.constant 0 : index
        %83 = vector.load %arg10[%c0_54, %c0_55] : memref<8x256xf32, #tpu.memory_space<vmem>>, vector<8x256xf32>
        %cst_56 = arith.constant dense<0.000000e+00> : vector<8x32xf32>
        %84 = tpu.matmul %83, %58, %cst_56 {dimension_numbers = #tpu.dot_dimension_numbers<[1], [0], [0], [1], [0, 0, 1, 1], [], []>} : vector<8x256xf32>, vector<256x32xf32>, vector<8x32xf32> -> vector<8x32xf32>
        %85 = arith.addf %82, %84 : vector<8x32xf32>
        %c0_57 = arith.constant 0 : index
        %c0_58 = arith.constant 0 : index
        %86 = vector.load %arg16[%c0_57, %c0_58] : memref<8x32xf32, #tpu.memory_space<vmem>>, vector<8x32xf32>
        tpu.vector_store %arg16[%c0_57, %c0_58], %85 {strides = array<i32>} : memref<8x32xf32, #tpu.memory_space<vmem>>, vector<8x32xf32>,
      } else {
      }
      %c1_i32_50 = arith.constant 1 : i32
      %78 = arith.cmpi eq, %arg1, %c1_i32_50 : i32
      %79 = arith.andi %35, %78 : i1
      %80 = arith.extui %79 : i1 to i32
      %c0_i32_51 = arith.constant 0 : i32
      %81 = arith.cmpi ne, %80, %c0_i32_51 : i32
      scf.if %81 {
        %c0_52 = arith.constant 0 : index
        %c0_53 = arith.constant 0 : index
        %82 = vector.load %arg16[%c0_52, %c0_53] : memref<8x32xf32, #tpu.memory_space<vmem>>, vector<8x32xf32>
        %c0_54 = arith.constant 0 : index
        %c0_55 = arith.constant 0 : index
        %83 = vector.load %arg11[%c0_54, %c0_55] : memref<32x128xf32, #tpu.memory_space<vmem>>, vector<32x128xf32>
        %cst_56 = arith.constant dense<0.000000e+00> : vector<8x128xf32>
        %84 = tpu.matmul %82, %83, %cst_56 {dimension_numbers = #tpu.dot_dimension_numbers<[1], [0], [0], [1], [0, 0, 1, 1], [], []>} : vector<8x32xf32>, vector<32x128xf32>, vector<8x128xf32> -> vector<8x128xf32>
        %c0_57 = arith.constant 0 : index
        %c0_58 = arith.constant 0 : index
        %85 = vector.load %arg12[%c0_57, %c0_58] : memref<1x128xf32, #tpu.memory_space<vmem>>, vector<1x128xf32>
        %86 = vector.broadcast %85 : vector<1x128xf32> to vector<8x128xf32>
        %87 = arith.addf %84, %86 : vector<8x128xf32>
        %c0_59 = arith.constant 0 : index
        %c0_60 = arith.constant 0 : index
        %88 = vector.load %arg13[%c0_59, %c0_60] : memref<8x128xf32, #tpu.memory_space<vmem>>, vector<8x128xf32>
        tpu.vector_store %arg13[%c0_59, %c0_60], %87 {strides = array<i32>} : memref<8x128xf32, #tpu.memory_space<vmem>>, vector<8x128xf32>,
      } else {
      }
    } else {
    }
    return
  }
  func.func @transform_0(%arg0: i32, %arg1: i32, %arg2: i32) -> (i32, i32) {
    %c0_i32 = arith.constant 0 : i32
    return %arg1, %arg2 : i32, i32
  }
  func.func @transform_1(%arg0: i32, %arg1: i32, %arg2: i32) -> (i32, i32) {
    %c0_i32 = arith.constant 0 : i32
    %c0_i32_0 = arith.constant 0 : i32
    %c0_i32_1 = arith.constant 0 : i32
    return %c0_i32, %c0_i32_0 : i32, i32
  }
  func.func @transform_2(%arg0: i32, %arg1: i32, %arg2: i32) -> (i32, i32, i32) {
    %c0_i32 = arith.constant 0 : i32
    %c0_i32_0 = arith.constant 0 : i32
    return %arg0, %arg1, %c0_i32 : i32, i32, i32
  }
  func.func @transform_3(%arg0: i32, %arg1: i32, %arg2: i32) -> (i32, i32, i32) {
    %c0_i32 = arith.constant 0 : i32
    %c0_i32_0 = arith.constant 0 : i32
    %c0_i32_1 = arith.constant 0 : i32
    return %arg0, %c0_i32, %c0_i32_0 : i32, i32, i32
  }
  func.func @transform_4(%arg0: i32, %arg1: i32, %arg2: i32) -> (i32, i32, i32) {
    %c0_i32 = arith.constant 0 : i32
    %c0_i32_0 = arith.constant 0 : i32
    %c0_i32_1 = arith.constant 0 : i32
    return %arg0, %c0_i32, %c0_i32_0 : i32, i32, i32
  }
  func.func @transform_5(%arg0: i32, %arg1: i32, %arg2: i32) -> (i32, i32, i32) {
    %c0_i32 = arith.constant 0 : i32
    %c0_i32_0 = arith.constant 0 : i32
    %c0_i32_1 = arith.constant 0 : i32
    return %arg0, %c0_i32, %c0_i32_0 : i32, i32, i32
  }
  func.func @transform_6(%arg0: i32, %arg1: i32, %arg2: i32) -> (i32, i32, i32) {
    %c0_i32 = arith.constant 0 : i32
    %c0_i32_0 = arith.constant 0 : i32
    %c0_i32_1 = arith.constant 0 : i32
    return %arg0, %c0_i32, %c0_i32_0 : i32, i32, i32
  }
  func.func @transform_7(%arg0: i32, %arg1: i32, %arg2: i32) -> (i32, i32) {
    %c0_i32 = arith.constant 0 : i32
    %c0_i32_0 = arith.constant 0 : i32
    return %c0_i32, %arg1 : i32, i32
  }
  func.func @transform_8(%arg0: i32, %arg1: i32, %arg2: i32) -> (i32, i32) {
    %c0_i32 = arith.constant 0 : i32
    %c0_i32_0 = arith.constant 0 : i32
    %c0_i32_1 = arith.constant 0 : i32
    return %c0_i32, %c0_i32_0 : i32, i32
  }
  func.func @transform_9(%arg0: i32, %arg1: i32, %arg2: i32) -> (i32, i32) {
    %c0_i32 = arith.constant 0 : i32
    %c0_i32_0 = arith.constant 0 : i32
    %c0_i32_1 = arith.constant 0 : i32
    return %c0_i32, %c0_i32_0 : i32, i32
  }
  func.func @transform_10(%arg0: i32, %arg1: i32, %arg2: i32) -> (i32, i32) {
    %c0_i32 = arith.constant 0 : i32
    %c0_i32_0 = arith.constant 0 : i32
    %c0_i32_1 = arith.constant 0 : i32
    return %c0_i32, %c0_i32_0 : i32, i32
  }
}

</mosaic_0001>

<llo_original>
// kernel: gnn_graphpred_forward.1
$region0: #{gnn_graphpred_forward.1}
  #allocation0 [shape = 'u32[]', space=smem, size = 0x4, offset = 0x4, fixed_abs, tag = 'smem constant byte address 0x4 - core index']
  #allocation1 [shape = 'u32[144,128]{1,0:T(1,128)}', space=vmem, size = 0x12000, scoped, tag = 'internal scratch']
  #allocation2 [shape = 'bf16[1024,32]{1,0:T(16,128)(2,1)}', space=vmem, size = 0x40000, scoped, tag = 'scratch operand']
  #allocation3 [shape = 'f32[256,32]{1,0:T(8,128)}', space=vmem, size = 0x20000, scoped, tag = 'scratch operand']
  #allocation4 [shape = 'f32[8,32]{1,0:T(8,128)}', space=vmem, size = 0x1000, scoped, tag = 'scratch operand']
  %s0 = inlined_call_operand.vmem [shape: bf16[512,512], index: 0, kind: input, shape index: {}]
  %s1 = inlined_call_operand.vmem [shape: bf16[512,32], index: 1, kind: input, shape index: {}]
  %s2 = inlined_call_operand.vmem [shape: f32[2,512,32], index: 2, kind: input, shape index: {}]
  %s3 = inlined_call_operand.vmem [shape: f32[2,32,64], index: 3, kind: input, shape index: {}]
  %s4 = inlined_call_operand.vmem [shape: f32[2,1,64], index: 4, kind: input, shape index: {}]
  %s5 = inlined_call_operand.vmem [shape: f32[2,64,32], index: 5, kind: input, shape index: {}]
  %s6 = inlined_call_operand.vmem [shape: f32[2,1,32], index: 6, kind: input, shape index: {}]
  %s7 = inlined_call_operand.vmem [shape: f32[8,512], index: 7, kind: input, shape index: {}]
  %s8 = inlined_call_operand.vmem [shape: f32[32,128], index: 8, kind: input, shape index: {}]
  %s9 = inlined_call_operand.vmem [shape: f32[1,128], index: 9, kind: input, shape index: {}]
  %s10 = inlined_call_operand.vmem [shape: f32[8,128], index: 10, kind: output, shape index: {}]
  %s11 = sld [smem:[#allocation0]]
  $region93: #{gnn_graphpred_forward.1} parent=0
    _
  %s13 = ssub.s32 1, %s11
  %s14 = scalar_select 0, %s13, %s11
  loop: start=0, step=1, limit=6
  $region2: #{gnn_graphpred_forward.1} parent=0 // loop_pre_header
    _
  $region3: #{gnn_graphpred_forward.1} parent=0 // loop_header
    %s16 = sphi 0, %s20
    %p17 = scmp.ge.s32.totalorder %s16, 6
    %s23 = sphi 0, %s42
    %s24 = sphi 0, %s38
    %s25 = sphi 0, %s34
    %s26 = sphi 0, %s23
    %s27 = sphi 0, %s24
    %s28 = sphi 0, %s25
    %s29 = sphi 0, %s26
    %s30 = sphi 0, %s27
    %s31 = sphi 0, %s28
    %s47 = sphi 0, %s49
    %s50 = sphi 0, %s47
    %s51 = sphi 0, %s50
    %s67 = sphi 0, %s51
    %s71 = sphi 0, %s71
    %s73 = sphi 0, %s71
    %s74 = sphi 0, %s73
    %s88 = sphi 0, %s74
    %s96 = sphi 0, %s98
    %s99 = sphi 0, %s96
    %s100 = sphi 0, %s99
    %s116 = sphi 0, %s100
    %s122 = sphi 0, %s124
    %s125 = sphi 0, %s122
    %s126 = sphi 0, %s125
    %s142 = sphi 0, %s126
    %s148 = sphi 0, %s150
    %s151 = sphi 0, %s148
    %s152 = sphi 0, %s151
    %s168 = sphi 0, %s152
    %s174 = sphi 0, %s176
    %s177 = sphi 0, %s174
    %s178 = sphi 0, %s177
    %s194 = sphi 0, %s178
    %s200 = sphi 0, %s202
    %s203 = sphi 0, %s200
    %s204 = sphi 0, %s203
    %s220 = sphi 0, %s204
    %s226 = sphi 0, %s228
    %s229 = sphi 0, %s226
    %s230 = sphi 0, %s229
    %s246 = sphi 0, %s230
    %s250 = sphi 0, %s250
    %s252 = sphi 0, %s250
    %s253 = sphi 0, %s252
    %s267 = sphi 0, %s253
    %s271 = sphi 0, %s271
    %s273 = sphi 0, %s271
    %s274 = sphi 0, %s273
    %s288 = sphi 0, %s274
    %s292 = sphi 0, %s292
    %s294 = sphi 0, %s292
    %s295 = sphi 0, %s294
    %s309 = sphi 0, %s295
  $region4: #{gnn_graphpred_forward.1} parent=0 // loop_header_branch
    %19 = sbr.rel (%p17) target = $region8
  $region5: #{gnn_graphpred_forward.1} parent=0 // loop_body
    %s21 = ssub.s32 %s16, 1
    %s22 = ssub.s32 %s16, 2
    %s32 = sadd.s32 1, %s25
    %p33 = scmp.ge.s32.totalorder %s32, 1
    %s34 = scalar_select %p33, 0, %s32
    %s35 = sadd.s32 1, %s24
    %s36 = scalar_select %p33, %s35, %s24
    %p37 = scmp.ge.s32.totalorder %s36, 2
    %s38 = scalar_select %p37, 0, %s36
    %s39 = sadd.s32 1, %s23
    %s40 = scalar_select %p37, %s39, %s23
    %p41 = scmp.ge.s32.totalorder %s40, 2
    %s42 = scalar_select %p41, 0, %s40
    %s43 = ssub.s32 %s24, %s38
    %s44 = ssub.s32 %s25, %s34
    %s45 = sor.u32 %s43, %s44
    %p46 = scmp.eq.s32.totalorder %s45, 0
    %s48 = sadd.s32 %s47, 1
    %s49 = scalar_select %p46, %s47, %s48
    %p52 = pneg %p46
    %p53 = scmp.eq.s32.totalorder %s16, 3
    %p54 = por %p52, %p53
    %p55 = scmp.ne.s32.totalorder %s47, %s50
    %p56 = scmp.eq.s32.totalorder %s16, 0
    %p57 = por %p55, %p56
    %p58 = scmp.ne.s32.totalorder %s47, %s50
    %p59 = scmp.eq.s32.totalorder %s21, 3
    %p60 = por %p58, %p59
    %p61 = scmp.ne.s32.totalorder %s50, %s51
    %p62 = scmp.eq.s32.totalorder %s21, 0
    %p63 = por %p61, %p62
    %p64 = scmp.ne.s32.totalorder %s50, %s51
    %p65 = scmp.eq.s32.totalorder %s22, 3
    %p66 = por %p64, %p65
    %p68 = scmp.ne.s32.totalorder %s51, %s67
    %p69 = scmp.eq.s32.totalorder %s22, 0
    %p70 = por %p68, %p69
    %s72 = sadd.s32 %s71, 1
    %p75 = scmp.eq.s32.totalorder %s16, 3
    %p76 = scmp.ne.s32.totalorder %s71, %s73
    %p77 = scmp.eq.s32.totalorder %s16, 0
    %p78 = por %p76, %p77
    %p79 = scmp.ne.s32.totalorder %s71, %s73
    %p80 = scmp.eq.s32.totalorder %s21, 3
    %p81 = por %p79, %p80
    %p82 = scmp.ne.s32.totalorder %s73, %s74
    %p83 = scmp.eq.s32.totalorder %s21, 0
    %p84 = por %p82, %p83
    %p85 = scmp.ne.s32.totalorder %s73, %s74
    %p86 = scmp.eq.s32.totalorder %s22, 3
    %p87 = por %p85, %p86
    %p89 = scmp.ne.s32.totalorder %s74, %s88
    %p90 = scmp.eq.s32.totalorder %s22, 0
    %p91 = por %p89, %p90
    %s92 = ssub.s32 %s23, %s42
    %s93 = ssub.s32 %s24, %s38
    %s94 = sor.u32 %s92, %s93
    %p95 = scmp.eq.s32.totalorder %s94, 0
    %s97 = sadd.s32 %s96, 1
    %s98 = scalar_select %p95, %s96, %s97
    %p101 = pneg %p95
    %p102 = scmp.eq.s32.totalorder %s16, 3
    %p103 = por %p101, %p102
    %p104 = scmp.ne.s32.totalorder %s96, %s99
    %p105 = scmp.eq.s32.totalorder %s16, 0
    %p106 = por %p104, %p105
    %p107 = scmp.ne.s32.totalorder %s96, %s99
    %p108 = scmp.eq.s32.totalorder %s21, 3
    %p109 = por %p107, %p108
    %p110 = scmp.ne.s32.totalorder %s99, %s100
    %p111 = scmp.eq.s32.totalorder %s21, 0
    %p112 = por %p110, %p111
    %p113 = scmp.ne.s32.totalorder %s99, %s100
    %p114 = scmp.eq.s32.totalorder %s22, 3
    %p115 = por %p113, %p114
    %p117 = scmp.ne.s32.totalorder %s100, %s116
    %p118 = scmp.eq.s32.totalorder %s22, 0
    %p119 = por %p117, %p118
    %s120 = ssub.s32 %s23, %s42
    %p121 = scmp.eq.s32.totalorder %s120, 0
    %s123 = sadd.s32 %s122, 1
    %s124 = scalar_select %p121, %s122, %s123
    %p127 = pneg %p121
    %p128 = scmp.eq.s32.totalorder %s16, 3
    %p129 = por %p127, %p128
    %p130 = scmp.ne.s32.totalorder %s122, %s125
    %p131 = scmp.eq.s32.totalorder %s16, 0
    %p132 = por %p130, %p131
    %p133 = scmp.ne.s32.totalorder %s122, %s125
    %p134 = scmp.eq.s32.totalorder %s21, 3
    %p135 = por %p133, %p134
    %p136 = scmp.ne.s32.totalorder %s125, %s126
    %p137 = scmp.eq.s32.totalorder %s21, 0
    %p138 = por %p136, %p137
    %p139 = scmp.ne.s32.totalorder %s125, %s126
    %p140 = scmp.eq.s32.totalorder %s22, 3
    %p141 = por %p139, %p140
    %p143 = scmp.ne.s32.totalorder %s126, %s142
    %p144 = scmp.eq.s32.totalorder %s22, 0
    %p145 = por %p143, %p144
    %s146 = ssub.s32 %s23, %s42
    %p147 = scmp.eq.s32.totalorder %s146, 0
    %s149 = sadd.s32 %s148, 1
    %s150 = scalar_select %p147, %s148, %s149
    %p153 = pneg %p147
    %p154 = scmp.eq.s32.totalorder %s16, 3
    %p155 = por %p153, %p154
    %p156 = scmp.ne.s32.totalorder %s148, %s151
    %p157 = scmp.eq.s32.totalorder %s16, 0
    %p158 = por %p156, %p157
    %p159 = scmp.ne.s32.totalorder %s148, %s151
    %p160 = scmp.eq.s32.totalorder %s21, 3
    %p161 = por %p159, %p160
    %p162 = scmp.ne.s32.totalorder %s151, %s152
    %p163 = scmp.eq.s32.totalorder %s21, 0
    %p164 = por %p162, %p163
    %p165 = scmp.ne.s32.totalorder %s151, %s152
    %p166 = scmp.eq.s32.totalorder %s22, 3
    %p167 = por %p165, %p166
    %p169 = scmp.ne.s32.totalorder %s152, %s168
    %p170 = scmp.eq.s32.totalorder %s22, 0
    %p171 = por %p169, %p170
    %s172 = ssub.s32 %s23, %s42
    %p173 = scmp.eq.s32.totalorder %s172, 0
    %s175 = sadd.s32 %s174, 1
    %s176 = scalar_select %p173, %s174, %s175
    %p179 = pneg %p173
    %p180 = scmp.eq.s32.totalorder %s16, 3
    %p181 = por %p179, %p180
    %p182 = scmp.ne.s32.totalorder %s174, %s177
    %p183 = scmp.eq.s32.totalorder %s16, 0
    %p184 = por %p182, %p183
    %p185 = scmp.ne.s32.totalorder %s174, %s177
    %p186 = scmp.eq.s32.totalorder %s21, 3
    %p187 = por %p185, %p186
    %p188 = scmp.ne.s32.totalorder %s177, %s178
    %p189 = scmp.eq.s32.totalorder %s21, 0
    %p190 = por %p188, %p189
    %p191 = scmp.ne.s32.totalorder %s177, %s178
    %p192 = scmp.eq.s32.totalorder %s22, 3
    %p193 = por %p191, %p192
    %p195 = scmp.ne.s32.totalorder %s178, %s194
    %p196 = scmp.eq.s32.totalorder %s22, 0
    %p197 = por %p195, %p196
    %s198 = ssub.s32 %s23, %s42
    %p199 = scmp.eq.s32.totalorder %s198, 0
    %s201 = sadd.s32 %s200, 1
    %s202 = scalar_select %p199, %s200, %s201
    %p205 = pneg %p199
    %p206 = scmp.eq.s32.totalorder %s16, 3
    %p207 = por %p205, %p206
    %p208 = scmp.ne.s32.totalorder %s200, %s203
    %p209 = scmp.eq.s32.totalorder %s16, 0
    %p210 = por %p208, %p209
    %p211 = scmp.ne.s32.totalorder %s200, %s203
    %p212 = scmp.eq.s32.totalorder %s21, 3
    %p213 = por %p211, %p212
    %p214 = scmp.ne.s32.totalorder %s203, %s204
    %p215 = scmp.eq.s32.totalorder %s21, 0
    %p216 = por %p214, %p215
    %p217 = scmp.ne.s32.totalorder %s203, %s204
    %p218 = scmp.eq.s32.totalorder %s22, 3
    %p219 = por %p217, %p218
    %p221 = scmp.ne.s32.totalorder %s204, %s220
    %p222 = scmp.eq.s32.totalorder %s22, 0
    %p223 = por %p221, %p222
    %s224 = ssub.s32 %s24, %s38
    %p225 = scmp.eq.s32.totalorder %s224, 0
    %s227 = sadd.s32 %s226, 1
    %s228 = scalar_select %p225, %s226, %s227
    %p231 = pneg %p225
    %p232 = scmp.eq.s32.totalorder %s16, 3
    %p233 = por %p231, %p232
    %p234 = scmp.ne.s32.totalorder %s226, %s229
    %p235 = scmp.eq.s32.totalorder %s16, 0
    %p236 = por %p234, %p235
    %p237 = scmp.ne.s32.totalorder %s226, %s229
    %p238 = scmp.eq.s32.totalorder %s21, 3
    %p239 = por %p237, %p238
    %p240 = scmp.ne.s32.totalorder %s229, %s230
    %p241 = scmp.eq.s32.totalorder %s21, 0
    %p242 = por %p240, %p241
    %p243 = scmp.ne.s32.totalorder %s229, %s230
    %p244 = scmp.eq.s32.totalorder %s22, 3
    %p245 = por %p243, %p244
    %p247 = scmp.ne.s32.totalorder %s230, %s246
    %p248 = scmp.eq.s32.totalorder %s22, 0
    %p249 = por %p247, %p248
    %s251 = sadd.s32 %s250, 1
    %p254 = scmp.eq.s32.totalorder %s16, 3
    %p255 = scmp.ne.s32.totalorder %s250, %s252
    %p256 = scmp.eq.s32.totalorder %s16, 0
    %p257 = por %p255, %p256
    %p258 = scmp.ne.s32.totalorder %s250, %s252
    %p259 = scmp.eq.s32.totalorder %s21, 3
    %p260 = por %p258, %p259
    %p261 = scmp.ne.s32.totalorder %s252, %s253
    %p262 = scmp.eq.s32.totalorder %s21, 0
    %p263 = por %p261, %p262
    %p264 = scmp.ne.s32.totalorder %s252, %s253
    %p265 = scmp.eq.s32.totalorder %s22, 3
    %p266 = por %p264, %p265
    %p268 = scmp.ne.s32.totalorder %s253, %s267
    %p269 = scmp.eq.s32.totalorder %s22, 0
    %p270 = por %p268, %p269
    %s272 = sadd.s32 %s271, 1
    %p275 = scmp.eq.s32.totalorder %s16, 3
    %p276 = scmp.ne.s32.totalorder %s271, %s273
    %p277 = scmp.eq.s32.totalorder %s16, 0
    %p278 = por %p276, %p277
    %p279 = scmp.ne.s32.totalorder %s271, %s273
    %p280 = scmp.eq.s32.totalorder %s21, 3
    %p281 = por %p279, %p280
    %p282 = scmp.ne.s32.totalorder %s273, %s274
    %p283 = scmp.eq.s32.totalorder %s21, 0
    %p284 = por %p282, %p283
    %p285 = scmp.ne.s32.totalorder %s273, %s274
    %p286 = scmp.eq.s32.totalorder %s22, 3
    %p287 = por %p285, %p286
    %p289 = scmp.ne.s32.totalorder %s274, %s288
    %p290 = scmp.eq.s32.totalorder %s22, 0
    %p291 = por %p289, %p290
    %s293 = sadd.s32 %s292, 1
    %p296 = scmp.eq.s32.totalorder %s16, 3
    %p297 = scmp.ne.s32.totalorder %s292, %s294
    %p298 = scmp.eq.s32.totalorder %s16, 0
    %p299 = por %p297, %p298
    %p300 = scmp.ne.s32.totalorder %s292, %s294
    %p301 = scmp.eq.s32.totalorder %s21, 3
    %p302 = por %p300, %p301
    %p303 = scmp.ne.s32.totalorder %s294, %s295
    %p304 = scmp.eq.s32.totalorder %s21, 0
    %p305 = por %p303, %p304
    %p306 = scmp.ne.s32.totalorder %s294, %s295
    %p307 = scmp.eq.s32.totalorder %s22, 3
    %p308 = por %p306, %p307
    %p310 = scmp.ne.s32.totalorder %s295, %s309
    %p311 = scmp.eq.s32.totalorder %s22, 0
    %p312 = por %p310, %p311
    %p313 = scmp.le.s32.totalorder 1, %s16
    %p314 = scmp.lt.s32.totalorder %s16, 5
    %p315 = pnand %p313, %p314
    %p316 = pneg %p315
    // Predicated region
    $region9: #{gnn_graphpred_forward.1} parent=5 // pred_check
      _
    $region10: #{gnn_graphpred_forward.1} parent=5 // pred_check_branch
      %318 = sbr.rel (%p315) target = $region12
    $region11: #{gnn_graphpred_forward.1} parent=5 // pred_region
      %s319 = ssub.s32 %s16, 1
      // Predicated region
      $region13: #{gnn_graphpred_forward.1} parent=11 // pred_check
        %p320 = pneg %p84
      $region14: #{gnn_graphpred_forward.1} parent=11 // pred_check_branch
        %322 = sbr.rel (%p320) target = $region16
      $region15: #{gnn_graphpred_forward.1} parent=11 // pred_region
        _
      $region16: #{gnn_graphpred_forward.1} parent=11 // pred_fallthru
        _
      // Predicated region
      $region17: #{gnn_graphpred_forward.1} parent=11 // pred_check
        %p323 = pneg %p263
      $region18: #{gnn_graphpred_forward.1} parent=11 // pred_check_branch
        %325 = sbr.rel (%p323) target = $region20
      $region19: #{gnn_graphpred_forward.1} parent=11 // pred_region
        _
      $region20: #{gnn_graphpred_forward.1} parent=11 // pred_fallthru
        _
      // Predicated region
      $region21: #{gnn_graphpred_forward.1} parent=11 // pred_check
        %p326 = pneg %p284
      $region22: #{gnn_graphpred_forward.1} parent=11 // pred_check_branch
        %328 = sbr.rel (%p326) target = $region24
      $region23: #{gnn_graphpred_forward.1} parent=11 // pred_region
        _
      $region24: #{gnn_graphpred_forward.1} parent=11 // pred_fallthru
        _
    $region12: #{gnn_graphpred_forward.1} parent=5 // pred_fallthru
      _
    %p329 = scmp.lt.s32.totalorder %s16, 4
    // Predicated region
    $region25: #{gnn_graphpred_forward.1} parent=5 // pred_check
      %p330 = pneg %p329
    $region26: #{gnn_graphpred_forward.1} parent=5 // pred_check_branch
      %332 = sbr.rel (%p330) target = $region28
    $region27: #{gnn_graphpred_forward.1} parent=5 // pred_region
      // Predicated region
      $region29: #{gnn_graphpred_forward.1} parent=27 // pred_check
        %p333 = pneg %p57
      $region30: #{gnn_graphpred_forward.1} parent=27 // pred_check_branch
        %335 = sbr.rel (%p333) target = $region32
      $region31: #{gnn_graphpred_forward.1} parent=27 // pred_region
        %s336 = smul.u32 32, %s24
        %s337 = smul.u32 4, %s25
        %p338 = scmp.lt.s32.totalorder %s336, 63
        %s339 = scalar_select %p338, %s336, 63
        %p340 = scmp.lt.s32.totalorder %s337, 3
        %s341 = scalar_select %p340, %s337, 3
        %s342 = smul.addr %s339, 4
        %s343 = sadd.s32 %s341, %s342
        %s344 = smul.addr %s343, 4
        %s345 = scalar_lea.vmem %s0, %s344
        %s346 = smul.u32 32, %s24
        %s347 = smul.u32 4, %s25
      $region32: #{gnn_graphpred_forward.1} parent=27 // pred_fallthru
        _
      // Predicated region
      $region33: #{gnn_graphpred_forward.1} parent=27 // pred_check
        %p348 = pneg %p106
      $region34: #{gnn_graphpred_forward.1} parent=27 // pred_check_branch
        %350 = sbr.rel (%p348) target = $region36
      $region35: #{gnn_graphpred_forward.1} parent=27 // pred_region
        %s351 = smul.u32 32, %s24
        %p352 = scmp.lt.s32.totalorder %s23, 1
        %s353 = scalar_select %p352, %s23, 1
        %p354 = scmp.lt.s32.totalorder %s351, 63
        %s355 = scalar_select %p354, %s351, 63
        %s356 = smul.addr %s353, 64
        %s357 = sadd.s32 %s355, %s356
        %s358 = smul.addr %s357, 8
        %s359 = scalar_lea.vmem %s2, %s358
        %s360 = smul.u32 32, %s24
      $region36: #{gnn_graphpred_forward.1} parent=27 // pred_fallthru
        _
      // Predicated region
      $region37: #{gnn_graphpred_forward.1} parent=27 // pred_check
        %p361 = pneg %p132
      $region38: #{gnn_graphpred_forward.1} parent=27 // pred_check_branch
        %363 = sbr.rel (%p361) target = $region40
      $region39: #{gnn_graphpred_forward.1} parent=27 // pred_region
        %p364 = scmp.lt.s32.totalorder %s23, 1
        %s365 = scalar_select %p364, %s23, 1
        %s366 = smul.addr %s365, 4
        %s367 = smul.addr %s366, 8
        %s368 = scalar_lea.vmem %s3, %s367
      $region40: #{gnn_graphpred_forward.1} parent=27 // pred_fallthru
        _
      // Predicated region
      $region41: #{gnn_graphpred_forward.1} parent=27 // pred_check
        %p369 = pneg %p158
      $region42: #{gnn_graphpred_forward.1} parent=27 // pred_check_branch
        %371 = sbr.rel (%p369) target = $region44
      $region43: #{gnn_graphpred_forward.1} parent=27 // pred_region
        %p372 = scmp.lt.s32.totalorder %s23, 1
        %s373 = scalar_select %p372, %s23, 1
        %s374 = scalar_lea.vmem %s4, %s373
      $region44: #{gnn_graphpred_forward.1} parent=27 // pred_fallthru
        _
      // Predicated region
      $region45: #{gnn_graphpred_forward.1} parent=27 // pred_check
        %p375 = pneg %p184
      $region46: #{gnn_graphpred_forward.1} parent=27 // pred_check_branch
        %377 = sbr.rel (%p375) target = $region48
      $region47: #{gnn_graphpred_forward.1} parent=27 // pred_region
        %p378 = scmp.lt.s32.totalorder %s23, 1
        %s379 = scalar_select %p378, %s23, 1
        %s380 = smul.addr %s379, 8
        %s381 = smul.addr %s380, 8
        %s382 = scalar_lea.vmem %s5, %s381
      $region48: #{gnn_graphpred_forward.1} parent=27 // pred_fallthru
        _
      // Predicated region
      $region49: #{gnn_graphpred_forward.1} parent=27 // pred_check
        %p383 = pneg %p210
      $region50: #{gnn_graphpred_forward.1} parent=27 // pred_check_branch
        %385 = sbr.rel (%p383) target = $region52
      $region51: #{gnn_graphpred_forward.1} parent=27 // pred_region
        %p386 = scmp.lt.s32.totalorder %s23, 1
        %s387 = scalar_select %p386, %s23, 1
        %s388 = scalar_lea.vmem %s6, %s387
      $region52: #{gnn_graphpred_forward.1} parent=27 // pred_fallthru
        _
      // Predicated region
      $region53: #{gnn_graphpred_forward.1} parent=27 // pred_check
        %p389 = pneg %p236
      $region54: #{gnn_graphpred_forward.1} parent=27 // pred_check_branch
        %391 = sbr.rel (%p389) target = $region56
      $region55: #{gnn_graphpred_forward.1} parent=27 // pred_region
        %s392 = smul.u32 2, %s24
        %p393 = scmp.lt.s32.totalorder %s392, 3
        %s394 = scalar_select %p393, %s392, 3
        %s395 = smul.addr %s394, 8
        %s396 = scalar_lea.vmem %s7, %s395
        %s397 = smul.u32 2, %s24
      $region56: #{gnn_graphpred_forward.1} parent=27 // pred_fallthru
        _
    $region28: #{gnn_graphpred_forward.1} parent=5 // pred_fallthru
      _
    %p398 = scmp.le.s32.totalorder 1, %s16
    %p399 = scmp.lt.s32.totalorder %s16, 5
    %p400 = pnand %p398, %p399
    %p401 = pneg %p400
    // Predicated region
    $region57: #{gnn_graphpred_forward.1} parent=5 // pred_check
      _
    $region58: #{gnn_graphpred_forward.1} parent=5 // pred_check_branch
      %403 = sbr.rel (%p400) target = $region60
    $region59: #{gnn_graphpred_forward.1} parent=5 // pred_region
      %s404 = ssub.s32 %s16, 1
      %s405 = smul.u32 32, %s27
      %s406 = smul.u32 4, %s28
      %p407 = scmp.lt.s32.totalorder %s405, 63
      %s408 = scalar_select %p407, %s405, 63
      %p409 = scmp.lt.s32.totalorder %s406, 3
      %s410 = scalar_select %p409, %s406, 3
      %s411 = smul.addr %s408, 4
      %s412 = sadd.s32 %s410, %s411
      %s413 = smul.addr %s412, 4
      %s414 = scalar_lea.vmem %s0, %s413
      %p415 = pneg %p63
      %p416 = pneg %p60
      %p417 = pneg %p84
      %p418 = pneg %p81
      %s419 = smul.u32 32, %s27
      %p420 = scmp.lt.s32.totalorder %s26, 1
      %s421 = scalar_select %p420, %s26, 1
      %p422 = scmp.lt.s32.totalorder %s419, 63
      %s423 = scalar_select %p422, %s419, 63
      %s424 = smul.addr %s421, 64
      %s425 = sadd.s32 %s423, %s424
      %s426 = smul.addr %s425, 8
      %s427 = scalar_lea.vmem %s2, %s426
      %p428 = pneg %p112
      %p429 = pneg %p109
      %p430 = scmp.lt.s32.totalorder %s26, 1
      %s431 = scalar_select %p430, %s26, 1
      %s432 = smul.addr %s431, 4
      %s433 = smul.addr %s432, 8
      %s434 = scalar_lea.vmem %s3, %s433
      %p435 = pneg %p138
      %p436 = pneg %p135
      %p437 = scmp.lt.s32.totalorder %s26, 1
      %s438 = scalar_select %p437, %s26, 1
      %s439 = scalar_lea.vmem %s4, %s438
      %p440 = pneg %p164
      %p441 = pneg %p161
      %p442 = scmp.lt.s32.totalorder %s26, 1
      %s443 = scalar_select %p442, %s26, 1
      %s444 = smul.addr %s443, 8
      %s445 = smul.addr %s444, 8
      %s446 = scalar_lea.vmem %s5, %s445
      %p447 = pneg %p190
      %p448 = pneg %p187
      %p449 = scmp.lt.s32.totalorder %s26, 1
      %s450 = scalar_select %p449, %s26, 1
      %s451 = scalar_lea.vmem %s6, %s450
      %p452 = pneg %p216
      %p453 = pneg %p213
      %s454 = smul.u32 2, %s27
      %p455 = scmp.lt.s32.totalorder %s454, 3
      %s456 = scalar_select %p455, %s454, 3
      %s457 = smul.addr %s456, 8
      %s458 = scalar_lea.vmem %s7, %s457
      %p459 = pneg %p242
      %p460 = pneg %p239
      %p461 = pneg %p263
      %p462 = pneg %p260
      %p463 = pneg %p284
      %p464 = pneg %p281
      %p465 = pneg %p305
      %p466 = pneg %p302
      %s467 = smul.u32 32, %s27
      %s468 = smul.u32 4, %s28
      %p469 = scmp.lt.s32.totalorder %s467, 63
      %s470 = scalar_select %p469, %s467, 63
      %p471 = scmp.lt.s32.totalorder %s468, 3
      %s472 = scalar_select %p471, %s468, 3
      %s473 = smul.addr %s470, 4
      %s474 = sadd.s32 %s472, %s473
      %s475 = smul.addr %s474, 4
      %s476 = scalar_lea.vmem %s0, %s475
      %s477 = smul.u32 32, %s27
      %s478 = smul.u32 4, %s28
      %s479 = smul.u32 32, %s27
      %p480 = scmp.lt.s32.totalorder %s26, 1
      %s481 = scalar_select %p480, %s26, 1
      %p482 = scmp.lt.s32.totalorder %s479, 63
      %s483 = scalar_select %p482, %s479, 63
      %s484 = smul.addr %s481, 64
      %s485 = sadd.s32 %s483, %s484
      %s486 = smul.addr %s485, 8
      %s487 = scalar_lea.vmem %s2, %s486
      %s488 = smul.u32 32, %s27
      %p489 = scmp.lt.s32.totalorder %s26, 1
      %s490 = scalar_select %p489, %s26, 1
      %s491 = smul.addr %s490, 4
      %s492 = smul.addr %s491, 8
      %s493 = scalar_lea.vmem %s3, %s492
      %p494 = scmp.lt.s32.totalorder %s26, 1
      %s495 = scalar_select %p494, %s26, 1
      %s496 = scalar_lea.vmem %s4, %s495
      %p497 = scmp.lt.s32.totalorder %s26, 1
      %s498 = scalar_select %p497, %s26, 1
      %s499 = smul.addr %s498, 8
      %s500 = smul.addr %s499, 8
      %s501 = scalar_lea.vmem %s5, %s500
      %p502 = scmp.lt.s32.totalorder %s26, 1
      %s503 = scalar_select %p502, %s26, 1
      %s504 = scalar_lea.vmem %s6, %s503
      %s505 = smul.u32 2, %s27
      %p506 = scmp.lt.s32.totalorder %s505, 3
      %s507 = scalar_select %p506, %s505, 3
      %s508 = smul.addr %s507, 8
      %s509 = scalar_lea.vmem %s7, %s508
      %s510 = smul.u32 2, %s27
      %p512 = scmp.eq.s32.totalorder %s26, 0
      %p513 = scmp.eq.s32.totalorder %s27, 0
      %p514 = pnand %p512, %p513
      %p515 = pneg %p514
      %p516 = scmp.eq.s32.totalorder %s28, 0
      %p517 = pnand %p515, %p516
      %p518 = pneg %p517
      // Predicated region
      $region61: #{gnn_graphpred_forward.1} parent=59 // pred_check
        _
      $region62: #{gnn_graphpred_forward.1} parent=59 // pred_check_branch
        %520 = sbr.rel (%p517) target = $region64
      $region63: #{gnn_graphpred_forward.1} parent=59 // pred_region
        %v521 = vld [vmem:[%s1] sm:$0xf]
        %v522 = vld [vmem:[%s1 + $0x4] sm:$0xf]
        %v523 = vld [vmem:[%s1 + $0x8] sm:$0xf]
        %v524 = vld [vmem:[%s1 + $0xc] sm:$0xf]
        %v525 = vld [vmem:[%s1 + $0x10] sm:$0xf]
        %v526 = vld [vmem:[%s1 + $0x14] sm:$0xf]
        %v527 = vld [vmem:[%s1 + $0x18] sm:$0xf]
        %v528 = vld [vmem:[%s1 + $0x1c] sm:$0xf]
        %v529 = vld [vmem:[%s1 + $0x20] sm:$0xf]
        %v530 = vld [vmem:[%s1 + $0x24] sm:$0xf]
        %v531 = vld [vmem:[%s1 + $0x28] sm:$0xf]
        %v532 = vld [vmem:[%s1 + $0x2c] sm:$0xf]
        %v533 = vld [vmem:[%s1 + $0x30] sm:$0xf]
        %v534 = vld [vmem:[%s1 + $0x34] sm:$0xf]
        %v535 = vld [vmem:[%s1 + $0x38] sm:$0xf]
        %v536 = vld [vmem:[%s1 + $0x3c] sm:$0xf]
        %v537 = vld [vmem:[%s1 + $0x40] sm:$0xf]
        %v538 = vld [vmem:[%s1 + $0x44] sm:$0xf]
        %v539 = vld [vmem:[%s1 + $0x48] sm:$0xf]
        %v540 = vld [vmem:[%s1 + $0x4c] sm:$0xf]
        %v541 = vld [vmem:[%s1 + $0x50] sm:$0xf]
        %v542 = vld [vmem:[%s1 + $0x54] sm:$0xf]
        %v543 = vld [vmem:[%s1 + $0x58] sm:$0xf]
        %v544 = vld [vmem:[%s1 + $0x5c] sm:$0xf]
        %v545 = vld [vmem:[%s1 + $0x60] sm:$0xf]
        %v546 = vld [vmem:[%s1 + $0x64] sm:$0xf]
        %v547 = vld [vmem:[%s1 + $0x68] sm:$0xf]
        %v548 = vld [vmem:[%s1 + $0x6c] sm:$0xf]
        %v549 = vld [vmem:[%s1 + $0x70] sm:$0xf]
        %v550 = vld [vmem:[%s1 + $0x74] sm:$0xf]
        %v551 = vld [vmem:[%s1 + $0x78] sm:$0xf]
        %v552 = vld [vmem:[%s1 + $0x7c] sm:$0xf]
        %v553 = vld [vmem:[%s1 + $0x80] sm:$0xf]
        %v554 = vld [vmem:[%s1 + $0x84] sm:$0xf]
        %v555 = vld [vmem:[%s1 + $0x88] sm:$0xf]
        %v556 = vld [vmem:[%s1 + $0x8c] sm:$0xf]
        %v557 = vld [vmem:[%s1 + $0x90] sm:$0xf]
        %v558 = vld [vmem:[%s1 + $0x94] sm:$0xf]
        %v559 = vld [vmem:[%s1 + $0x98] sm:$0xf]
        %v560 = vld [vmem:[%s1 + $0x9c] sm:$0xf]
        %v561 = vld [vmem:[%s1 + $0xa0] sm:$0xf]
        %v562 = vld [vmem:[%s1 + $0xa4] sm:$0xf]
        %v563 = vld [vmem:[%s1 + $0xa8] sm:$0xf]
        %v564 = vld [vmem:[%s1 + $0xac] sm:$0xf]
        %v565 = vld [vmem:[%s1 + $0xb0] sm:$0xf]
        %v566 = vld [vmem:[%s1 + $0xb4] sm:$0xf]
        %v567 = vld [vmem:[%s1 + $0xb8] sm:$0xf]
        %v568 = vld [vmem:[%s1 + $0xbc] sm:$0xf]
        %v569 = vld [vmem:[%s1 + $0xc0] sm:$0xf]
        %v570 = vld [vmem:[%s1 + $0xc4] sm:$0xf]
        %v571 = vld [vmem:[%s1 + $0xc8] sm:$0xf]
        %v572 = vld [vmem:[%s1 + $0xcc] sm:$0xf]
        %v573 = vld [vmem:[%s1 + $0xd0] sm:$0xf]
        %v574 = vld [vmem:[%s1 + $0xd4] sm:$0xf]
        %v575 = vld [vmem:[%s1 + $0xd8] sm:$0xf]
        %v576 = vld [vmem:[%s1 + $0xdc] sm:$0xf]
        %v577 = vld [vmem:[%s1 + $0xe0] sm:$0xf]
        %v578 = vld [vmem:[%s1 + $0xe4] sm:$0xf]
        %v579 = vld [vmem:[%s1 + $0xe8] sm:$0xf]
        %v580 = vld [vmem:[%s1 + $0xec] sm:$0xf]
        %v581 = vld [vmem:[%s1 + $0xf0] sm:$0xf]
        %v582 = vld [vmem:[%s1 + $0xf4] sm:$0xf]
        %v583 = vld [vmem:[%s1 + $0xf8] sm:$0xf]
        %v584 = vld [vmem:[%s1 + $0xfc] sm:$0xf]
        %v649 = vunpack.c.l.b16 %v521
        %v650 = vunpack.c.l.b16 %v522
        %v651 = vunpack.c.l.b16 %v523
        %v652 = vunpack.c.l.b16 %v524
        %v653 = vunpack.c.l.b16 %v525
        %v654 = vunpack.c.l.b16 %v526
        %v655 = vunpack.c.l.b16 %v527
        %v656 = vunpack.c.l.b16 %v528
        %v657 = vunpack.c.l.b16 %v529
        %v658 = vunpack.c.l.b16 %v530
        %v659 = vunpack.c.l.b16 %v531
        %v660 = vunpack.c.l.b16 %v532
        %v661 = vunpack.c.l.b16 %v533
        %v662 = vunpack.c.l.b16 %v534
        %v663 = vunpack.c.l.b16 %v535
        %v664 = vunpack.c.l.b16 %v536
        %v665 = vunpack.c.l.b16 %v537
        %v666 = vunpack.c.l.b16 %v538
        %v667 = vunpack.c.l.b16 %v539
        %v668 = vunpack.c.l.b16 %v540
        %v669 = vunpack.c.l.b16 %v541
        %v670 = vunpack.c.l.b16 %v542
        %v671 = vunpack.c.l.b16 %v543
        %v672 = vunpack.c.l.b16 %v544
        %v673 = vunpack.c.l.b16 %v545
        %v674 = vunpack.c.l.b16 %v546
        %v675 = vunpack.c.l.b16 %v547
        %v676 = vunpack.c.l.b16 %v548
        %v677 = vunpack.c.l.b16 %v549
        %v678 = vunpack.c.l.b16 %v550
        %v679 = vunpack.c.l.b16 %v551
        %v680 = vunpack.c.l.b16 %v552
        %v681 = vunpack.c.l.b16 %v553
        %v682 = vunpack.c.l.b16 %v554
        %v683 = vunpack.c.l.b16 %v555
        %v684 = vunpack.c.l.b16 %v556
        %v685 = vunpack.c.l.b16 %v557
        %v686 = vunpack.c.l.b16 %v558
        %v687 = vunpack.c.l.b16 %v559
        %v688 = vunpack.c.l.b16 %v560
        %v689 = vunpack.c.l.b16 %v561
        %v690 = vunpack.c.l.b16 %v562
        %v691 = vunpack.c.l.b16 %v563
        %v692 = vunpack.c.l.b16 %v564
        %v693 = vunpack.c.l.b16 %v565
        %v694 = vunpack.c.l.b16 %v566
        %v695 = vunpack.c.l.b16 %v567
        %v696 = vunpack.c.l.b16 %v568
        %v697 = vunpack.c.l.b16 %v569
        %v698 = vunpack.c.l.b16 %v570
        %v699 = vunpack.c.l.b16 %v571
        %v700 = vunpack.c.l.b16 %v572
        %v701 = vunpack.c.l.b16 %v573
        %v702 = vunpack.c.l.b16 %v574
        %v703 = vunpack.c.l.b16 %v575
        %v704 = vunpack.c.l.b16 %v576
        %v705 = vunpack.c.l.b16 %v577
        %v706 = vunpack.c.l.b16 %v578
        %v707 = vunpack.c.l.b16 %v579
        %v708 = vunpack.c.l.b16 %v580
        %v709 = vunpack.c.l.b16 %v581
        %v710 = vunpack.c.l.b16 %v582
        %v711 = vunpack.c.l.b16 %v583
        %v712 = vunpack.c.l.b16 %v584
        %v713 = vpack.c.b16 %v650, %v649
        %v714 = vpack.c.b16 %v652, %v651
        %v715 = vpack.c.b16 %v654, %v653
        %v716 = vpack.c.b16 %v656, %v655
        %v717 = vpack.c.b16 %v658, %v657
        %v718 = vpack.c.b16 %v660, %v659
        %v719 = vpack.c.b16 %v662, %v661
        %v720 = vpack.c.b16 %v664, %v663
        %v721 = vpack.c.b16 %v666, %v665
        %v722 = vpack.c.b16 %v668, %v667
        %v723 = vpack.c.b16 %v670, %v669
        %v724 = vpack.c.b16 %v672, %v671
        %v725 = vpack.c.b16 %v674, %v673
        %v726 = vpack.c.b16 %v676, %v675
        %v727 = vpack.c.b16 %v678, %v677
        %v728 = vpack.c.b16 %v680, %v679
        %v729 = vpack.c.b16 %v682, %v681
        %v730 = vpack.c.b16 %v684, %v683
        %v731 = vpack.c.b16 %v686, %v685
        %v732 = vpack.c.b16 %v688, %v687
        %v733 = vpack.c.b16 %v690, %v689
        %v734 = vpack.c.b16 %v692, %v691
        %v735 = vpack.c.b16 %v694, %v693
        %v736 = vpack.c.b16 %v696, %v695
        %v737 = vpack.c.b16 %v698, %v697
        %v738 = vpack.c.b16 %v700, %v699
        %v739 = vpack.c.b16 %v702, %v701
        %v740 = vpack.c.b16 %v704, %v703
        %v741 = vpack.c.b16 %v706, %v705
        %v742 = vpack.c.b16 %v708, %v707
        %v743 = vpack.c.b16 %v710, %v709
        %v744 = vpack.c.b16 %v712, %v711
        %vm777 = vcmask 261120
        %778 = vst.msk [vmem:[#allocation2 + $0x100] sm:$0xff] %vm777, %v713
        %779 = vst.msk [vmem:[#allocation2 + $0x108] sm:$0xff] %vm777, %v714
        %780 = vst.msk [vmem:[#allocation2 + $0x110] sm:$0xff] %vm777, %v715
        %781 = vst.msk [vmem:[#allocation2 + $0x118] sm:$0xff] %vm777, %v716
        %782 = vst.msk [vmem:[#allocation2 + $0x120] sm:$0xff] %vm777, %v717
        %783 = vst.msk [vmem:[#allocation2 + $0x128] sm:$0xff] %vm777, %v718
        %784 = vst.msk [vmem:[#allocation2 + $0x130] sm:$0xff] %vm777, %v719
        %785 = vst.msk [vmem:[#allocation2 + $0x138] sm:$0xff] %vm777, %v720
        %786 = vst.msk [vmem:[#allocation2 + $0x140] sm:$0xff] %vm777, %v721
        %787 = vst.msk [vmem:[#allocation2 + $0x148] sm:$0xff] %vm777, %v722
        %788 = vst.msk [vmem:[#allocation2 + $0x150] sm:$0xff] %vm777, %v723
        %789 = vst.msk [vmem:[#allocation2 + $0x158] sm:$0xff] %vm777, %v724
        %790 = vst.msk [vmem:[#allocation2 + $0x160] sm:$0xff] %vm777, %v725
        %791 = vst.msk [vmem:[#allocation2 + $0x168] sm:$0xff] %vm777, %v726
        %792 = vst.msk [vmem:[#allocation2 + $0x170] sm:$0xff] %vm777, %v727
        %793 = vst.msk [vmem:[#allocation2 + $0x178] sm:$0xff] %vm777, %v728
        %794 = vst.msk [vmem:[#allocation2 + $0x180] sm:$0xff] %vm777, %v729
        %795 = vst.msk [vmem:[#allocation2 + $0x188] sm:$0xff] %vm777, %v730
        %796 = vst.msk [vmem:[#allocation2 + $0x190] sm:$0xff] %vm777, %v731
        %797 = vst.msk [vmem:[#allocation2 + $0x198] sm:$0xff] %vm777, %v732
        %798 = vst.msk [vmem:[#allocation2 + $0x1a0] sm:$0xff] %vm777, %v733
        %799 = vst.msk [vmem:[#allocation2 + $0x1a8] sm:$0xff] %vm777, %v734
        %800 = vst.msk [vmem:[#allocation2 + $0x1b0] sm:$0xff] %vm777, %v735
        %801 = vst.msk [vmem:[#allocation2 + $0x1b8] sm:$0xff] %vm777, %v736
        %802 = vst.msk [vmem:[#allocation2 + $0x1c0] sm:$0xff] %vm777, %v737
        %803 = vst.msk [vmem:[#allocation2 + $0x1c8] sm:$0xff] %vm777, %v738
        %804 = vst.msk [vmem:[#allocation2 + $0x1d0] sm:$0xff] %vm777, %v739
        %805 = vst.msk [vmem:[#allocation2 + $0x1d8] sm:$0xff] %vm777, %v740
        %806 = vst.msk [vmem:[#allocation2 + $0x1e0] sm:$0xff] %vm777, %v741
        %807 = vst.msk [vmem:[#allocation2 + $0x1e8] sm:$0xff] %vm777, %v742
        %808 = vst.msk [vmem:[#allocation2 + $0x1f0] sm:$0xff] %vm777, %v743
        %809 = vst.msk [vmem:[#allocation2 + $0x1f8] sm:$0xff] %vm777, %v744
        %810 = vst.msk [vmem:[#allocation4] sm:$0xff] %vm777, 0.0
      $region64: #{gnn_graphpred_forward.1} parent=59 // pred_fallthru
        _
      // Predicated region
      $region65: #{gnn_graphpred_forward.1} parent=59 // pred_check
        %p811 = pneg %p516
      $region66: #{gnn_graphpred_forward.1} parent=59 // pred_check_branch
        %813 = sbr.rel (%p811) target = $region68
      $region67: #{gnn_graphpred_forward.1} parent=59 // pred_region
        %vm814 = vcmask 261120
        %815 = vst.msk [vmem:[#allocation3] sm:$0xff] %vm814, 0.0
        %816 = vst.msk [vmem:[#allocation3 + $0x8] sm:$0xff] %vm814, 0.0
        %817 = vst.msk [vmem:[#allocation3 + $0x10] sm:$0xff] %vm814, 0.0
        %818 = vst.msk [vmem:[#allocation3 + $0x18] sm:$0xff] %vm814, 0.0
        %819 = vst.msk [vmem:[#allocation3 + $0x20] sm:$0xff] %vm814, 0.0
        %820 = vst.msk [vmem:[#allocation3 + $0x28] sm:$0xff] %vm814, 0.0
        %821 = vst.msk [vmem:[#allocation3 + $0x30] sm:$0xff] %vm814, 0.0
        %822 = vst.msk [vmem:[#allocation3 + $0x38] sm:$0xff] %vm814, 0.0
        %823 = vst.msk [vmem:[#allocation3 + $0x40] sm:$0xff] %vm814, 0.0
        %824 = vst.msk [vmem:[#allocation3 + $0x48] sm:$0xff] %vm814, 0.0
        %825 = vst.msk [vmem:[#allocation3 + $0x50] sm:$0xff] %vm814, 0.0
        %826 = vst.msk [vmem:[#allocation3 + $0x58] sm:$0xff] %vm814, 0.0
        %827 = vst.msk [vmem:[#allocation3 + $0x60] sm:$0xff] %vm814, 0.0
        %828 = vst.msk [vmem:[#allocation3 + $0x68] sm:$0xff] %vm814, 0.0
        %829 = vst.msk [vmem:[#allocation3 + $0x70] sm:$0xff] %vm814, 0.0
        %830 = vst.msk [vmem:[#allocation3 + $0x78] sm:$0xff] %vm814, 0.0
        %831 = vst.msk [vmem:[#allocation3 + $0x80] sm:$0xff] %vm814, 0.0
        %832 = vst.msk [vmem:[#allocation3 + $0x88] sm:$0xff] %vm814, 0.0
        %833 = vst.msk [vmem:[#allocation3 + $0x90] sm:$0xff] %vm814, 0.0
        %834 = vst.msk [vmem:[#allocation3 + $0x98] sm:$0xff] %vm814, 0.0
        %835 = vst.msk [vmem:[#allocation3 + $0xa0] sm:$0xff] %vm814, 0.0
        %836 = vst.msk [vmem:[#allocation3 + $0xa8] sm:$0xff] %vm814, 0.0
        %837 = vst.msk [vmem:[#allocation3 + $0xb0] sm:$0xff] %vm814, 0.0
        %838 = vst.msk [vmem:[#allocation3 + $0xb8] sm:$0xff] %vm814, 0.0
        %839 = vst.msk [vmem:[#allocation3 + $0xc0] sm:$0xff] %vm814, 0.0
        %840 = vst.msk [vmem:[#allocation3 + $0xc8] sm:$0xff] %vm814, 0.0
        %841 = vst.msk [vmem:[#allocation3 + $0xd0] sm:$0xff] %vm814, 0.0
        %842 = vst.msk [vmem:[#allocation3 + $0xd8] sm:$0xff] %vm814, 0.0
        %843 = vst.msk [vmem:[#allocation3 + $0xe0] sm:$0xff] %vm814, 0.0
        %844 = vst.msk [vmem:[#allocation3 + $0xe8] sm:$0xff] %vm814, 0.0
        %845 = vst.msk [vmem:[#allocation3 + $0xf0] sm:$0xff] %vm814, 0.0
        %846 = vst.msk [vmem:[#allocation3 + $0xf8] sm:$0xff] %vm814, 0.0
      $region68: #{gnn_graphpred_forward.1} parent=59 // pred_fallthru
        _
      %s847 = sadd.s32 %s26, 1
      %p848 = scmp.lt.s32.totalorder %s847, 0
      %s849 = ssub.s32 0, %s847
      %s850 = scalar_select %p848, %s849, %s847
      %s851 = sand.u32 %s850, 1
      %s852 = ssub.s32 0, %s851
      %s853 = scalar_select %p848, %s852, %s851
      %p854 = scmp.ne.s32.totalorder %s853, 0
      %p855 = scmp.lt.s32.totalorder %s853, 0
      %p856 = pnand %p855, %p854
      %p857 = pneg %p856
      %s858 = sadd.s32 %s853, 2
      %s859 = scalar_select %p857, %s858, %s853
      %s860 = smul.u32 %s859, 512
      %s861 = smul.u32 %s28, 512
      %s862 = sadd.s32 %s860, %s861
      %s863 = sshra.s32 %s862, 4
      %s864 = sand.u32 %s862, 15
      %s865 = smul.addr %s863, 8
      %s866 = scalar_lea.vmem [#allocation2], %s865
      %v867 = vld [vmem:[%s866] sm:$0xff]
      %v868 = vld [vmem:[%s866 + $0x8] sm:$0xff]
      %v869 = vld [vmem:[%s866 + $0x10] sm:$0xff]
      %v870 = vld [vmem:[%s866 + $0x18] sm:$0xff]
      %v871 = vld [vmem:[%s866 + $0x20] sm:$0xff]
      %v872 = vld [vmem:[%s866 + $0x28] sm:$0xff]
      %v873 = vld [vmem:[%s866 + $0x30] sm:$0xff]
      %v874 = vld [vmem:[%s866 + $0x38] sm:$0xff]
      %v875 = vld [vmem:[%s866 + $0x40] sm:$0xff]
      %v876 = vld [vmem:[%s866 + $0x48] sm:$0xff]
      %v877 = vld [vmem:[%s866 + $0x50] sm:$0xff]
      %v878 = vld [vmem:[%s866 + $0x58] sm:$0xff]
      %v879 = vld [vmem:[%s866 + $0x60] sm:$0xff]
      %v880 = vld [vmem:[%s866 + $0x68] sm:$0xff]
      %v881 = vld [vmem:[%s866 + $0x70] sm:$0xff]
      %v882 = vld [vmem:[%s866 + $0x78] sm:$0xff]
      %v883 = vld [vmem:[%s866 + $0x80] sm:$0xff]
      %v884 = vld [vmem:[%s866 + $0x88] sm:$0xff]
      %v885 = vld [vmem:[%s866 + $0x90] sm:$0xff]
      %v886 = vld [vmem:[%s866 + $0x98] sm:$0xff]
      %v887 = vld [vmem:[%s866 + $0xa0] sm:$0xff]
      %v888 = vld [vmem:[%s866 + $0xa8] sm:$0xff]
      %v889 = vld [vmem:[%s866 + $0xb0] sm:$0xff]
      %v890 = vld [vmem:[%s866 + $0xb8] sm:$0xff]
      %v891 = vld [vmem:[%s866 + $0xc0] sm:$0xff]
      %v892 = vld [vmem:[%s866 + $0xc8] sm:$0xff]
      %v893 = vld [vmem:[%s866 + $0xd0] sm:$0xff]
      %v894 = vld [vmem:[%s866 + $0xd8] sm:$0xff]
      %v895 = vld [vmem:[%s866 + $0xe0] sm:$0xff]
      %v896 = vld [vmem:[%s866 + $0xe8] sm:$0xff]
      %v897 = vld [vmem:[%s866 + $0xf0] sm:$0xff]
      %v898 = vld [vmem:[%s866 + $0xf8] sm:$0xff]
      %v899 = vld [vmem:[#allocation3] sm:$0xff]
      %v900 = vld [vmem:[#allocation3 + $0x8] sm:$0xff]
      %v901 = vld [vmem:[#allocation3 + $0x10] sm:$0xff]
      %v902 = vld [vmem:[#allocation3 + $0x18] sm:$0xff]
      %v903 = vld [vmem:[#allocation3 + $0x20] sm:$0xff]
      %v904 = vld [vmem:[#allocation3 + $0x28] sm:$0xff]
      %v905 = vld [vmem:[#allocation3 + $0x30] sm:$0xff]
      %v906 = vld [vmem:[#allocation3 + $0x38] sm:$0xff]
      %v907 = vld [vmem:[#allocation3 + $0x40] sm:$0xff]
      %v908 = vld [vmem:[#allocation3 + $0x48] sm:$0xff]
      %v909 = vld [vmem:[#allocation3 + $0x50] sm:$0xff]
      %v910 = vld [vmem:[#allocation3 + $0x58] sm:$0xff]
      %v911 = vld [vmem:[#allocation3 + $0x60] sm:$0xff]
      %v912 = vld [vmem:[#allocation3 + $0x68] sm:$0xff]
      %v913 = vld [vmem:[#allocation3 + $0x70] sm:$0xff]
      %v914 = vld [vmem:[#allocation3 + $0x78] sm:$0xff]
      %v915 = vld [vmem:[#allocation3 + $0x80] sm:$0xff]
      %v916 = vld [vmem:[#allocation3 + $0x88] sm:$0xff]
      %v917 = vld [vmem:[#allocation3 + $0x90] sm:$0xff]
      %v918 = vld [vmem:[#allocation3 + $0x98] sm:$0xff]
      %v919 = vld [vmem:[#allocation3 + $0xa0] sm:$0xff]
      %v920 = vld [vmem:[#allocation3 + $0xa8] sm:$0xff]
      %v921 = vld [vmem:[#allocation3 + $0xb0] sm:$0xff]
      %v922 = vld [vmem:[#allocation3 + $0xb8] sm:$0xff]
      %v923 = vld [vmem:[#allocation3 + $0xc0] sm:$0xff]
      %v924 = vld [vmem:[#allocation3 + $0xc8] sm:$0xff]
      %v925 = vld [vmem:[#allocation3 + $0xd0] sm:$0xff]
      %v926 = vld [vmem:[#allocation3 + $0xd8] sm:$0xff]
      %v927 = vld [vmem:[#allocation3 + $0xe0] sm:$0xff]
      %v928 = vld [vmem:[#allocation3 + $0xe8] sm:$0xff]
      %v929 = vld [vmem:[#allocation3 + $0xf0] sm:$0xff]
      %v930 = vld [vmem:[#allocation3 + $0xf8] sm:$0xff]
      %v931 = vld [vmem:[%s476] sm:$0xff]
      %v932 = vld [vmem:[%s476 + $0x8] sm:$0xff]
      %v933 = vld [vmem:[%s476 + $0x10] sm:$0xff]
      %v934 = vld [vmem:[%s476 + $0x18] sm:$0xff]
      %v935 = vld [vmem:[%s476 + $0x20] sm:$0xff]
      %v936 = vld [vmem:[%s476 + $0x28] sm:$0xff]
      %v937 = vld [vmem:[%s476 + $0x30] sm:$0xff]
      %v938 = vld [vmem:[%s476 + $0x38] sm:$0xff]
      %v939 = vld [vmem:[%s476 + $0x40] sm:$0xff]
      %v940 = vld [vmem:[%s476 + $0x48] sm:$0xff]
      %v941 = vld [vmem:[%s476 + $0x50] sm:$0xff]
      %v942 = vld [vmem:[%s476 + $0x58] sm:$0xff]
      %v943 = vld [vmem:[%s476 + $0x60] sm:$0xff]
      %v944 = vld [vmem:[%s476 + $0x68] sm:$0xff]
      %v945 = vld [vmem:[%s476 + $0x70] sm:$0xff]
      %v946 = vld [vmem:[%s476 + $0x78] sm:$0xff]
      %v947 = vld [vmem:[%s476 + $0x80] sm:$0xff]
      %v948 = vld [vmem:[%s476 + $0x88] sm:$0xff]
      %v949 = vld [vmem:[%s476 + $0x90] sm:$0xff]
      %v950 = vld [vmem:[%s476 + $0x98] sm:$0xff]
      %v951 = vld [vmem:[%s476 + $0xa0] sm:$0xff]
      %v952 = vld [vmem:[%s476 + $0xa8] sm:$0xff]
      %v953 = vld [vmem:[%s476 + $0xb0] sm:$0xff]
      %v954 = vld [vmem:[%s476 + $0xb8] sm:$0xff]
      %v955 = vld [vmem:[%s476 + $0xc0] sm:$0xff]
      %v956 = vld [vmem:[%s476 + $0xc8] sm:$0xff]
      %v957 = vld [vmem:[%s476 + $0xd0] sm:$0xff]
      %v958 = vld [vmem:[%s476 + $0xd8] sm:$0xff]
      %v959 = vld [vmem:[%s476 + $0xe0] sm:$0xff]
      %v960 = vld [vmem:[%s476 + $0xe8] sm:$0xff]
      %v961 = vld [vmem:[%s476 + $0xf0] sm:$0xff]
      %v962 = vld [vmem:[%s476 + $0xf8] sm:$0xff]
      %v963 = vld [vmem:[%s476 + $0x100] sm:$0xff]
      %v964 = vld [vmem:[%s476 + $0x108] sm:$0xff]
      %v965 = vld [vmem:[%s476 + $0x110] sm:$0xff]
      %v966 = vld [vmem:[%s476 + $0x118] sm:$0xff]
      %v967 = vld [vmem:[%s476 + $0x120] sm:$0xff]
      %v968 = vld [vmem:[%s476 + $0x128] sm:$0xff]
      %v969 = vld [vmem:[%s476 + $0x130] sm:$0xff]
      %v970 = vld [vmem:[%s476 + $0x138] sm:$0xff]
      %v971 = vld [vmem:[%s476 + $0x140] sm:$0xff]
      %v972 = vld [vmem:[%s476 + $0x148] sm:$0xff]
      %v973 = vld [vmem:[%s476 + $0x150] sm:$0xff]
      %v974 = vld [vmem:[%s476 + $0x158] sm:$0xff]
      %v975 = vld [vmem:[%s476 + $0x160] sm:$0xff]
      %v976 = vld [vmem:[%s476 + $0x168] sm:$0xff]
      %v977 = vld [vmem:[%s476 + $0x170] sm:$0xff]
      %v978 = vld [vmem:[%s476 + $0x178] sm:$0xff]
      %v979 = vld [vmem:[%s476 + $0x180] sm:$0xff]
      %v980 = vld [vmem:[%s476 + $0x188] sm:$0xff]
      %v981 = vld [vmem:[%s476 + $0x190] sm:$0xff]
      %v982 = vld [vmem:[%s476 + $0x198] sm:$0xff]
      %v983 = vld [vmem:[%s476 + $0x1a0] sm:$0xff]
      %v984 = vld [vmem:[%s476 + $0x1a8] sm:$0xff]
      %v985 = vld [vmem:[%s476 + $0x1b0] sm:$0xff]
      %v986 = vld [vmem:[%s476 + $0x1b8] sm:$0xff]
      %v987 = vld [vmem:[%s476 + $0x1c0] sm:$0xff]
      %v988 = vld [vmem:[%s476 + $0x1c8] sm:$0xff]
      %v989 = vld [vmem:[%s476 + $0x1d0] sm:$0xff]
      %v990 = vld [vmem:[%s476 + $0x1d8] sm:$0xff]
      %v991 = vld [vmem:[%s476 + $0x1e0] sm:$0xff]
      %v992 = vld [vmem:[%s476 + $0x1e8] sm:$0xff]
      %v993 = vld [vmem:[%s476 + $0x1f0] sm:$0xff]
      %v994 = vld [vmem:[%s476 + $0x1f8] sm:$0xff]
      %v1059 = vunpack.c.l.b16 %v931
      %v1060 = vunpack.c.h.b16 %v931
      %v1061 = vunpack.c.l.b16 %v932
      %v1062 = vunpack.c.h.b16 %v932
      %v1063 = vunpack.c.l.b16 %v933
      %v1064 = vunpack.c.h.b16 %v933
      %v1065 = vunpack.c.l.b16 %v934
      %v1066 = vunpack.c.h.b16 %v934
      %v1067 = vunpack.c.l.b16 %v935
      %v1068 = vunpack.c.h.b16 %v935
      %v1069 = vunpack.c.l.b16 %v936
      %v1070 = vunpack.c.h.b16 %v936
      %v1071 = vunpack.c.l.b16 %v937
      %v1072 = vunpack.c.h.b16 %v937
      %v1073 = vunpack.c.l.b16 %v938
      %v1074 = vunpack.c.h.b16 %v938
      %v1075 = vunpack.c.l.b16 %v939
      %v1076 = vunpack.c.h.b16 %v939
      %v1077 = vunpack.c.l.b16 %v940
      %v1078 = vunpack.c.h.b16 %v940
      %v1079 = vunpack.c.l.b16 %v941
      %v1080 = vunpack.c.h.b16 %v941
      %v1081 = vunpack.c.l.b16 %v942
      %v1082 = vunpack.c.h.b16 %v942
      %v1083 = vunpack.c.l.b16 %v943
      %v1084 = vunpack.c.h.b16 %v943
      %v1085 = vunpack.c.l.b16 %v944
      %v1086 = vunpack.c.h.b16 %v944
      %v1087 = vunpack.c.l.b16 %v945
      %v1088 = vunpack.c.h.b16 %v945
      %v1089 = vunpack.c.l.b16 %v946
      %v1090 = vunpack.c.h.b16 %v946
      %v1091 = vunpack.c.l.b16 %v947
      %v1092 = vunpack.c.h.b16 %v947
      %v1093 = vunpack.c.l.b16 %v948
      %v1094 = vunpack.c.h.b16 %v948
      %v1095 = vunpack.c.l.b16 %v949
      %v1096 = vunpack.c.h.b16 %v949
      %v1097 = vunpack.c.l.b16 %v950
      %v1098 = vunpack.c.h.b16 %v950
      %v1099 = vunpack.c.l.b16 %v951
      %v1100 = vunpack.c.h.b16 %v951
      %v1101 = vunpack.c.l.b16 %v952
      %v1102 = vunpack.c.h.b16 %v952
      %v1103 = vunpack.c.l.b16 %v953
      %v1104 = vunpack.c.h.b16 %v953
      %v1105 = vunpack.c.l.b16 %v954
      %v1106 = vunpack.c.h.b16 %v954
      %v1107 = vunpack.c.l.b16 %v955
      %v1108 = vunpack.c.h.b16 %v955
      %v1109 = vunpack.c.l.b16 %v956
      %v1110 = vunpack.c.h.b16 %v956
      %v1111 = vunpack.c.l.b16 %v957
      %v1112 = vunpack.c.h.b16 %v957
      %v1113 = vunpack.c.l.b16 %v958
      %v1114 = vunpack.c.h.b16 %v958
      %v1115 = vunpack.c.l.b16 %v959
      %v1116 = vunpack.c.h.b16 %v959
      %v1117 = vunpack.c.l.b16 %v960
      %v1118 = vunpack.c.h.b16 %v960
      %v1119 = vunpack.c.l.b16 %v961
      %v1120 = vunpack.c.h.b16 %v961
      %v1121 = vunpack.c.l.b16 %v962
      %v1122 = vunpack.c.h.b16 %v962
      %v1123 = vunpack.c.l.b16 %v963
      %v1124 = vunpack.c.h.b16 %v963
      %v1125 = vunpack.c.l.b16 %v964
      %v1126 = vunpack.c.h.b16 %v964
      %v1127 = vunpack.c.l.b16 %v965
      %v1128 = vunpack.c.h.b16 %v965
      %v1129 = vunpack.c.l.b16 %v966
      %v1130 = vunpack.c.h.b16 %v966
      %v1131 = vunpack.c.l.b16 %v967
      %v1132 = vunpack.c.h.b16 %v967
      %v1133 = vunpack.c.l.b16 %v968
      %v1134 = vunpack.c.h.b16 %v968
      %v1135 = vunpack.c.l.b16 %v969
      %v1136 = vunpack.c.h.b16 %v969
      %v1137 = vunpack.c.l.b16 %v970
      %v1138 = vunpack.c.h.b16 %v970
      %v1139 = vunpack.c.l.b16 %v971
      %v1140 = vunpack.c.h.b16 %v971
      %v1141 = vunpack.c.l.b16 %v972
      %v1142 = vunpack.c.h.b16 %v972
      %v1143 = vunpack.c.l.b16 %v973
      %v1144 = vunpack.c.h.b16 %v973
      %v1145 = vunpack.c.l.b16 %v974
      %v1146 = vunpack.c.h.b16 %v974
      %v1147 = vunpack.c.l.b16 %v975
      %v1148 = vunpack.c.h.b16 %v975
      %v1149 = vunpack.c.l.b16 %v976
      %v1150 = vunpack.c.h.b16 %v976
      %v1151 = vunpack.c.l.b16 %v977
      %v1152 = vunpack.c.h.b16 %v977
      %v1153 = vunpack.c.l.b16 %v978
      %v1154 = vunpack.c.h.b16 %v978
      %v1155 = vunpack.c.l.b16 %v979
      %v1156 = vunpack.c.h.b16 %v979
      %v1157 = vunpack.c.l.b16 %v980
      %v1158 = vunpack.c.h.b16 %v980
      %v1159 = vunpack.c.l.b16 %v981
      %v1160 = vunpack.c.h.b16 %v981
      %v1161 = vunpack.c.l.b16 %v982
      %v1162 = vunpack.c.h.b16 %v982
      %v1163 = vunpack.c.l.b16 %v983
      %v1164 = vunpack.c.h.b16 %v983
      %v1165 = vunpack.c.l.b16 %v984
      %v1166 = vunpack.c.h.b16 %v984
      %v1167 = vunpack.c.l.b16 %v985
      %v1168 = vunpack.c.h.b16 %v985
      %v1169 = vunpack.c.l.b16 %v986
      %v1170 = vunpack.c.h.b16 %v986
      %v1171 = vunpack.c.l.b16 %v987
      %v1172 = vunpack.c.h.b16 %v987
      %v1173 = vunpack.c.l.b16 %v988
      %v1174 = vunpack.c.h.b16 %v988
      %v1175 = vunpack.c.l.b16 %v989
      %v1176 = vunpack.c.h.b16 %v989
      %v1177 = vunpack.c.l.b16 %v990
      %v1178 = vunpack.c.h.b16 %v990
      %v1179 = vunpack.c.l.b16 %v991
      %v1180 = vunpack.c.h.b16 %v991
      %v1181 = vunpack.c.l.b16 %v992
      %v1182 = vunpack.c.h.b16 %v992
      %v1183 = vunpack.c.l.b16 %v993
      %v1184 = vunpack.c.h.b16 %v993
      %v1185 = vunpack.c.l.b16 %v994
      %v1186 = vunpack.c.h.b16 %v994
      %v1187 = vpack.c.b16 %v1063, %v1059
      %v1188 = vpack.c.b16 %v1064, %v1060
      %v1189 = vpack.c.b16 %v1065, %v1061
      %v1190 = vpack.c.b16 %v1066, %v1062
      %v1191 = vpack.c.b16 %v1071, %v1067
      %v1192 = vpack.c.b16 %v1072, %v1068
      %v1193 = vpack.c.b16 %v1073, %v1069
      %v1194 = vpack.c.b16 %v1074, %v1070
      %v1195 = vpack.c.b16 %v1079, %v1075
      %v1196 = vpack.c.b16 %v1080, %v1076
      %v1197 = vpack.c.b16 %v1081, %v1077
      %v1198 = vpack.c.b16 %v1082, %v1078
      %v1199 = vpack.c.b16 %v1087, %v1083
      %v1200 = vpack.c.b16 %v1088, %v1084
      %v1201 = vpack.c.b16 %v1089, %v1085
      %v1202 = vpack.c.b16 %v1090, %v1086
      %v1203 = vpack.c.b16 %v1095, %v1091
      %v1204 = vpack.c.b16 %v1096, %v1092
      %v1205 = vpack.c.b16 %v1097, %v1093
      %v1206 = vpack.c.b16 %v1098, %v1094
      %v1207 = vpack.c.b16 %v1103, %v1099
      %v1208 = vpack.c.b16 %v1104, %v1100
      %v1209 = vpack.c.b16 %v1105, %v1101
      %v1210 = vpack.c.b16 %v1106, %v1102
      %v1211 = vpack.c.b16 %v1111, %v1107
      %v1212 = vpack.c.b16 %v1112, %v1108
      %v1213 = vpack.c.b16 %v1113, %v1109
      %v1214 = vpack.c.b16 %v1114, %v1110
      %v1215 = vpack.c.b16 %v1119, %v1115
      %v1216 = vpack.c.b16 %v1120, %v1116
      %v1217 = vpack.c.b16 %v1121, %v1117
      %v1218 = vpack.c.b16 %v1122, %v1118
      %v1219 = vpack.c.b16 %v1127, %v1123
      %v1220 = vpack.c.b16 %v1128, %v1124
      %v1221 = vpack.c.b16 %v1129, %v1125
      %v1222 = vpack.c.b16 %v1130, %v1126
      %v1223 = vpack.c.b16 %v1135, %v1131
      %v1224 = vpack.c.b16 %v1136, %v1132
      %v1225 = vpack.c.b16 %v1137, %v1133
      %v1226 = vpack.c.b16 %v1138, %v1134
      %v1227 = vpack.c.b16 %v1143, %v1139
      %v1228 = vpack.c.b16 %v1144, %v1140
      %v1229 = vpack.c.b16 %v1145, %v1141
      %v1230 = vpack.c.b16 %v1146, %v1142
      %v1231 = vpack.c.b16 %v1151, %v1147
      %v1232 = vpack.c.b16 %v1152, %v1148
      %v1233 = vpack.c.b16 %v1153, %v1149
      %v1234 = vpack.c.b16 %v1154, %v1150
      %v1235 = vpack.c.b16 %v1159, %v1155
      %v1236 = vpack.c.b16 %v1160, %v1156
      %v1237 = vpack.c.b16 %v1161, %v1157
      %v1238 = vpack.c.b16 %v1162, %v1158
      %v1239 = vpack.c.b16 %v1167, %v1163
      %v1240 = vpack.c.b16 %v1168, %v1164
      %v1241 = vpack.c.b16 %v1169, %v1165
      %v1242 = vpack.c.b16 %v1170, %v1166
      %v1243 = vpack.c.b16 %v1175, %v1171
      %v1244 = vpack.c.b16 %v1176, %v1172
      %v1245 = vpack.c.b16 %v1177, %v1173
      %v1246 = vpack.c.b16 %v1178, %v1174
      %v1247 = vpack.c.b16 %v1183, %v1179
      %v1248 = vpack.c.b16 %v1184, %v1180
      %v1249 = vpack.c.b16 %v1185, %v1181
      %v1250 = vpack.c.b16 %v1186, %v1182
      %1315 = vmatprep.subr.bf16.mxu0 0
      %1316 = vmatpush1.bf16.msra.mxu0 %v867
      %1317 = vmatprep.subr.bf16.mxu0 0
      %1318 = vmatpush1.bf16.msra.mxu0 %v868
      %1319 = vmatprep.subr.bf16.mxu0 0
      %1320 = vmatpush1.bf16.msra.mxu0 %v869
      %1321 = vmatprep.subr.bf16.mxu0 0
      %1322 = vmatpush1.bf16.msra.mxu0 %v870
      %1323 = vmatprep.subr.bf16.mxu0 0
      %1324 = vmatpush1.bf16.msra.mxu0 %v871
      %1325 = vmatprep.subr.bf16.mxu0 0
      %1326 = vmatpush1.bf16.msra.mxu0 %v872
      %1327 = vmatprep.subr.bf16.mxu0 0
      %1328 = vmatpush1.bf16.msra.mxu0 %v873
      %1329 = vmatprep.subr.bf16.mxu0 0
      %1330 = vmatpush1.bf16.msra.mxu0 %v874
      %1331 = vmatprep.subr.bf16.mxu0 0
      %1332 = vmatpush1.bf16.msra.mxu0 %v875
      %1333 = vmatprep.subr.bf16.mxu0 0
      %1334 = vmatpush1.bf16.msra.mxu0 %v876
      %1335 = vmatprep.subr.bf16.mxu0 0
      %1336 = vmatpush1.bf16.msra.mxu0 %v877
      %1337 = vmatprep.subr.bf16.mxu0 0
      %1338 = vmatpush1.bf16.msra.mxu0 %v878
      %1339 = vmatprep.subr.bf16.mxu0 0
      %1340 = vmatpush1.bf16.msra.mxu0 %v879
      %1341 = vmatprep.subr.bf16.mxu0 0
      %1342 = vmatpush1.bf16.msra.mxu0 %v880
      %1343 = vmatprep.subr.bf16.mxu0 0
      %1344 = vmatpush1.bf16.msra.mxu0 %v881
      %1345 = vmatprep.subr.bf16.mxu0 0
      %1346 = vmatpush1.bf16.msra.mxu0 %v882
      %1347 = vmatprep.mubr.bf16.mxu0 %v1188
      %1348 = vmatmul.mubr.bf16.gmra.mrb[0].mxu0 %v1187
      %v1349 = vpop.f32.mrb[0].mxu0
      %v1350 = vadd.f32 0.0, %v1349
      %v1351 = vpop.f32.mrb[0].mxu0
      %v1352 = vpop.f32.mrb[0].mxu0
      %v1353 = vadd.f32 0.0, %v1352
      %v1354 = vpop.f32.mrb[0].mxu0
      %1355 = vmatprep.mubr.bf16.mxu0 %v1192
      %1356 = vmatmul.mubr.bf16.gmra.mrb[0].mxu0 %v1191
      %v1357 = vpop.f32.mrb[0].mxu0
      %v1358 = vadd.f32 0.0, %v1357
      %v1359 = vpop.f32.mrb[0].mxu0
      %v1360 = vpop.f32.mrb[0].mxu0
      %v1361 = vadd.f32 0.0, %v1360
      %v1362 = vpop.f32.mrb[0].mxu0
      %1363 = vmatprep.mubr.bf16.mxu0 %v1196
      %1364 = vmatmul.mubr.bf16.gmra.mrb[0].mxu0 %v1195
      %v1365 = vpop.f32.mrb[0].mxu0
      %v1366 = vadd.f32 0.0, %v1365
      %v1367 = vpop.f32.mrb[0].mxu0
      %v1368 = vpop.f32.mrb[0].mxu0
      %v1369 = vadd.f32 0.0, %v1368
      %v1370 = vpop.f32.mrb[0].mxu0
      %1371 = vmatprep.mubr.bf16.mxu0 %v1200
      %1372 = vmatmul.mubr.bf16.gmra.mrb[0].mxu0 %v1199
      %v1373 = vpop.f32.mrb[0].mxu0
      %v1374 = vadd.f32 0.0, %v1373
      %v1375 = vpop.f32.mrb[0].mxu0
      %v1376 = vpop.f32.mrb[0].mxu0
      %v1377 = vadd.f32 0.0, %v1376
      %v1378 = vpop.f32.mrb[0].mxu0
      %1379 = vmatprep.mubr.bf16.mxu0 %v1204
      %1380 = vmatmul.mubr.bf16.gmra.mrb[0].mxu0 %v1203
      %v1381 = vpop.f32.mrb[0].mxu0
      %v1382 = vadd.f32 0.0, %v1381
      %v1383 = vpop.f32.mrb[0].mxu0
      %v1384 = vpop.f32.mrb[0].mxu0
      %v1385 = vadd.f32 0.0, %v1384
      %v1386 = vpop.f32.mrb[0].mxu0
      %1387 = vmatprep.mubr.bf16.mxu0 %v1208
      %1388 = vmatmul.mubr.bf16.gmra.mrb[0].mxu0 %v1207
      %v1389 = vpop.f32.mrb[0].mxu0
      %v1390 = vadd.f32 0.0, %v1389
      %v1391 = vpop.f32.mrb[0].mxu0
      %v1392 = vpop.f32.mrb[0].mxu0
      %v1393 = vadd.f32 0.0, %v1392
      %v1394 = vpop.f32.mrb[0].mxu0
      %1395 = vmatprep.mubr.bf16.mxu0 %v1212
      %1396 = vmatmul.mubr.bf16.gmra.mrb[0].mxu0 %v1211
      %v1397 = vpop.f32.mrb[0].mxu0
      %v1398 = vadd.f32 0.0, %v1397
      %v1399 = vpop.f32.mrb[0].mxu0
      %v1400 = vpop.f32.mrb[0].mxu0
      %v1401 = vadd.f32 0.0, %v1400
      %v1402 = vpop.f32.mrb[0].mxu0
      %1403 = vmatprep.mubr.bf16.mxu0 %v1216
      %1404 = vmatmul.mubr.bf16.gmra.mrb[0].mxu0 %v1215
      %v1405 = vpop.f32.mrb[0].mxu0
      %v1406 = vadd.f32 0.0, %v1405
      %v1407 = vpop.f32.mrb[0].mxu0
      %v1408 = vpop.f32.mrb[0].mxu0
      %v1409 = vadd.f32 0.0, %v1408
      %v1410 = vpop.f32.mrb[0].mxu0
      %1411 = vmatprep.mubr.bf16.mxu0 %v1220
      %1412 = vmatmul.mubr.bf16.gmra.mrb[0].mxu0 %v1219
      %v1413 = vpop.f32.mrb[0].mxu0
      %v1414 = vadd.f32 0.0, %v1413
      %v1415 = vpop.f32.mrb[0].mxu0
      %v1416 = vpop.f32.mrb[0].mxu0
      %v1417 = vadd.f32 0.0, %v1416
      %v1418 = vpop.f32.mrb[0].mxu0
      %1419 = vmatprep.mubr.bf16.mxu0 %v1224
      %1420 = vmatmul.mubr.bf16.gmra.mrb[0].mxu0 %v1223
      %v1421 = vpop.f32.mrb[0].mxu0
      %v1422 = vadd.f32 0.0, %v1421
      %v1423 = vpop.f32.mrb[0].mxu0
      %v1424 = vpop.f32.mrb[0].mxu0
      %v1425 = vadd.f32 0.0, %v1424
      %v1426 = vpop.f32.mrb[0].mxu0
      %1427 = vmatprep.mubr.bf16.mxu0 %v1228
      %1428 = vmatmul.mubr.bf16.gmra.mrb[0].mxu0 %v1227
      %v1429 = vpop.f32.mrb[0].mxu0
      %v1430 = vadd.f32 0.0, %v1429
      %v1431 = vpop.f32.mrb[0].mxu0
      %v1432 = vpop.f32.mrb[0].mxu0
      %v1433 = vadd.f32 0.0, %v1432
      %v1434 = vpop.f32.mrb[0].mxu0
      %1435 = vmatprep.mubr.bf16.mxu0 %v1232
      %1436 = vmatmul.mubr.bf16.gmra.mrb[0].mxu0 %v1231
      %v1437 = vpop.f32.mrb[0].mxu0
      %v1438 = vadd.f32 0.0, %v1437
      %v1439 = vpop.f32.mrb[0].mxu0
      %v1440 = vpop.f32.mrb[0].mxu0
      %v1441 = vadd.f32 0.0, %v1440
      %v1442 = vpop.f32.mrb[0].mxu0
      %1443 = vmatprep.mubr.bf16.mxu0 %v1236
      %1444 = vmatmul.mubr.bf16.gmra.mrb[0].mxu0 %v1235
      %v1445 = vpop.f32.mrb[0].mxu0
      %v1446 = vadd.f32 0.0, %v1445
      %v1447 = vpop.f32.mrb[0].mxu0
      %v1448 = vpop.f32.mrb[0].mxu0
      %v1449 = vadd.f32 0.0, %v1448
      %v1450 = vpop.f32.mrb[0].mxu0
      %1451 = vmatprep.mubr.bf16.mxu0 %v1240
      %1452 = vmatmul.mubr.bf16.gmra.mrb[0].mxu0 %v1239
      %v1453 = vpop.f32.mrb[0].mxu0
      %v1454 = vadd.f32 0.0, %v1453
      %v1455 = vpop.f32.mrb[0].mxu0
      %v1456 = vpop.f32.mrb[0].mxu0
      %v1457 = vadd.f32 0.0, %v1456
      %v1458 = vpop.f32.mrb[0].mxu0
      %1459 = vmatprep.mubr.bf16.mxu0 %v1244
      %1460 = vmatmul.mubr.bf16.gmra.mrb[0].mxu0 %v1243
      %v1461 = vpop.f32.mrb[0].mxu0
      %v1462 = vadd.f32 0.0, %v1461
      %v1463 = vpop.f32.mrb[0].mxu0
      %v1464 = vpop.f32.mrb[0].mxu0
      %v1465 = vadd.f32 0.0, %v1464
      %v1466 = vpop.f32.mrb[0].mxu0
      %1467 = vmatprep.mubr.bf16.mxu0 %v1248
      %1468 = vmatmul.mubr.bf16.gmra.mrb[0].mxu0 %v1247
      %v1469 = vpop.f32.mrb[0].mxu0
      %v1470 = vadd.f32 0.0, %v1469
      %v1471 = vpop.f32.mrb[0].mxu0
      %v1472 = vpop.f32.mrb[0].mxu0
      %v1473 = vadd.f32 0.0, %v1472
      %v1474 = vpop.f32.mrb[0].mxu0
      %1475 = vdwg.mxu0
      %1476 = vmatprep.subr.bf16.mxu0 0
      %1477 = vmatpush1.bf16.msra.mxu0 %v883
      %1478 = vmatprep.subr.bf16.mxu0 0
      %1479 = vmatpush1.bf16.msra.mxu0 %v884
      %1480 = vmatprep.subr.bf16.mxu0 0
      %1481 = vmatpush1.bf16.msra.mxu0 %v885
      %1482 = vmatprep.subr.bf16.mxu0 0
      %1483 = vmatpush1.bf16.msra.mxu0 %v886
      %1484 = vmatprep.subr.bf16.mxu0 0
      %1485 = vmatpush1.bf16.msra.mxu0 %v887
      %1486 = vmatprep.subr.bf16.mxu0 0
      %1487 = vmatpush1.bf16.msra.mxu0 %v888
      %1488 = vmatprep.subr.bf16.mxu0 0
      %1489 = vmatpush1.bf16.msra.mxu0 %v889
      %1490 = vmatprep.subr.bf16.mxu0 0
      %1491 = vmatpush1.bf16.msra.mxu0 %v890
      %1492 = vmatprep.subr.bf16.mxu0 0
      %1493 = vmatpush1.bf16.msra.mxu0 %v891
      %1494 = vmatprep.subr.bf16.mxu0 0
      %1495 = vmatpush1.bf16.msra.mxu0 %v892
      %1496 = vmatprep.subr.bf16.mxu0 0
      %1497 = vmatpush1.bf16.msra.mxu0 %v893
      %1498 = vmatprep.subr.bf16.mxu0 0
      %1499 = vmatpush1.bf16.msra.mxu0 %v894
      %1500 = vmatprep.subr.bf16.mxu0 0
      %1501 = vmatpush1.bf16.msra.mxu0 %v895
      %1502 = vmatprep.subr.bf16.mxu0 0
      %1503 = vmatpush1.bf16.msra.mxu0 %v896
      %1504 = vmatprep.subr.bf16.mxu0 0
      %1505 = vmatpush1.bf16.msra.mxu0 %v897
      %1506 = vmatprep.subr.bf16.mxu0 0
      %1507 = vmatpush1.bf16.msra.mxu0 %v898
      %1508 = vmatprep.mubr.bf16.mxu0 %v1190
      %1509 = vmatmul.mubr.bf16.gmra.mrb[0].mxu0 %v1189
      %v1510 = vpop.f32.mrb[0].mxu0
      %v1511 = vadd.f32 %v1350, %v1510
      %v1512 = vpop.f32.mrb[0].mxu0
      %v1513 = vpop.f32.mrb[0].mxu0
      %v1514 = vadd.f32 %v1353, %v1513
      %v1515 = vpop.f32.mrb[0].mxu0
      %1516 = vmatprep.mubr.bf16.mxu0 %v1194
      %1517 = vmatmul.mubr.bf16.gmra.mrb[0].mxu0 %v1193
      %v1518 = vpop.f32.mrb[0].mxu0
      %v1519 = vadd.f32 %v1358, %v1518
      %v1520 = vpop.f32.mrb[0].mxu0
      %v1521 = vpop.f32.mrb[0].mxu0
      %v1522 = vadd.f32 %v1361, %v1521
      %v1523 = vpop.f32.mrb[0].mxu0
      %1524 = vmatprep.mubr.bf16.mxu0 %v1198
      %1525 = vmatmul.mubr.bf16.gmra.mrb[0].mxu0 %v1197
      %v1526 = vpop.f32.mrb[0].mxu0
      %v1527 = vadd.f32 %v1366, %v1526
      %v1528 = vpop.f32.mrb[0].mxu0
      %v1529 = vpop.f32.mrb[0].mxu0
      %v1530 = vadd.f32 %v1369, %v1529
      %v1531 = vpop.f32.mrb[0].mxu0
      %1532 = vmatprep.mubr.bf16.mxu0 %v1202
      %1533 = vmatmul.mubr.bf16.gmra.mrb[0].mxu0 %v1201
      %v1534 = vpop.f32.mrb[0].mxu0
      %v1535 = vadd.f32 %v1374, %v1534
      %v1536 = vpop.f32.mrb[0].mxu0
      %v1537 = vpop.f32.mrb[0].mxu0
      %v1538 = vadd.f32 %v1377, %v1537
      %v1539 = vpop.f32.mrb[0].mxu0
      %1540 = vmatprep.mubr.bf16.mxu0 %v1206
      %1541 = vmatmul.mubr.bf16.gmra.mrb[0].mxu0 %v1205
      %v1542 = vpop.f32.mrb[0].mxu0
      %v1543 = vadd.f32 %v1382, %v1542
      %v1544 = vpop.f32.mrb[0].mxu0
      %v1545 = vpop.f32.mrb[0].mxu0
      %v1546 = vadd.f32 %v1385, %v1545
      %v1547 = vpop.f32.mrb[0].mxu0
      %1548 = vmatprep.mubr.bf16.mxu0 %v1210
      %1549 = vmatmul.mubr.bf16.gmra.mrb[0].mxu0 %v1209
      %v1550 = vpop.f32.mrb[0].mxu0
      %v1551 = vadd.f32 %v1390, %v1550
      %v1552 = vpop.f32.mrb[0].mxu0
      %v1553 = vpop.f32.mrb[0].mxu0
      %v1554 = vadd.f32 %v1393, %v1553
      %v1555 = vpop.f32.mrb[0].mxu0
      %1556 = vmatprep.mubr.bf16.mxu0 %v1214
      %1557 = vmatmul.mubr.bf16.gmra.mrb[0].mxu0 %v1213
      %v1558 = vpop.f32.mrb[0].mxu0
      %v1559 = vadd.f32 %v1398, %v1558
      %v1560 = vpop.f32.mrb[0].mxu0
      %v1561 = vpop.f32.mrb[0].mxu0
      %v1562 = vadd.f32 %v1401, %v1561
      %v1563 = vpop.f32.mrb[0].mxu0
      %1564 = vmatprep.mubr.bf16.mxu0 %v1218
      %1565 = vmatmul.mubr.bf16.gmra.mrb[0].mxu0 %v1217
      %v1566 = vpop.f32.mrb[0].mxu0
      %v1567 = vadd.f32 %v1406, %v1566
      %v1568 = vpop.f32.mrb[0].mxu0
      %v1569 = vpop.f32.mrb[0].mxu0
      %v1570 = vadd.f32 %v1409, %v1569
      %v1571 = vpop.f32.mrb[0].mxu0
      %1572 = vmatprep.mubr.bf16.mxu0 %v1222
      %1573 = vmatmul.mubr.bf16.gmra.mrb[0].mxu0 %v1221
      %v1574 = vpop.f32.mrb[0].mxu0
      %v1575 = vadd.f32 %v1414, %v1574
      %v1576 = vpop.f32.mrb[0].mxu0
      %v1577 = vpop.f32.mrb[0].mxu0
      %v1578 = vadd.f32 %v1417, %v1577
      %v1579 = vpop.f32.mrb[0].mxu0
      %1580 = vmatprep.mubr.bf16.mxu0 %v1226
      %1581 = vmatmul.mubr.bf16.gmra.mrb[0].mxu0 %v1225
      %v1582 = vpop.f32.mrb[0].mxu0
      %v1583 = vadd.f32 %v1422, %v1582
      %v1584 = vpop.f32.mrb[0].mxu0
      %v1585 = vpop.f32.mrb[0].mxu0
      %v1586 = vadd.f32 %v1425, %v1585
      %v1587 = vpop.f32.mrb[0].mxu0
      %1588 = vmatprep.mubr.bf16.mxu0 %v1230
      %1589 = vmatmul.mubr.bf16.gmra.mrb[0].mxu0 %v1229
      %v1590 = vpop.f32.mrb[0].mxu0
      %v1591 = vadd.f32 %v1430, %v1590
      %v1592 = vpop.f32.mrb[0].mxu0
      %v1593 = vpop.f32.mrb[0].mxu0
      %v1594 = vadd.f32 %v1433, %v1593
      %v1595 = vpop.f32.mrb[0].mxu0
      %1596 = vmatprep.mubr.bf16.mxu0 %v1234
      %1597 = vmatmul.mubr.bf16.gmra.mrb[0].mxu0 %v1233
      %v1598 = vpop.f32.mrb[0].mxu0
      %v1599 = vadd.f32 %v1438, %v1598
      %v1600 = vpop.f32.mrb[0].mxu0
      %v1601 = vpop.f32.mrb[0].mxu0
      %v1602 = vadd.f32 %v1441, %v1601
      %v1603 = vpop.f32.mrb[0].mxu0
      %1604 = vmatprep.mubr.bf16.mxu0 %v1238
      %1605 = vmatmul.mubr.bf16.gmra.mrb[0].mxu0 %v1237
      %v1606 = vpop.f32.mrb[0].mxu0
      %v1607 = vadd.f32 %v1446, %v1606
      %v1608 = vpop.f32.mrb[0].mxu0
      %v1609 = vpop.f32.mrb[0].mxu0
      %v1610 = vadd.f32 %v1449, %v1609
      %v1611 = vpop.f32.mrb[0].mxu0
      %1612 = vmatprep.mubr.bf16.mxu0 %v1242
      %1613 = vmatmul.mubr.bf16.gmra.mrb[0].mxu0 %v1241
      %v1614 = vpop.f32.mrb[0].mxu0
      %v1615 = vadd.f32 %v1454, %v1614
      %v1616 = vpop.f32.mrb[0].mxu0
      %v1617 = vpop.f32.mrb[0].mxu0
      %v1618 = vadd.f32 %v1457, %v1617
      %v1619 = vpop.f32.mrb[0].mxu0
      %1620 = vmatprep.mubr.bf16.mxu0 %v1246
      %1621 = vmatmul.mubr.bf16.gmra.mrb[0].mxu0 %v1245
      %v1622 = vpop.f32.mrb[0].mxu0
      %v1623 = vadd.f32 %v1462, %v1622
      %v1624 = vpop.f32.mrb[0].mxu0
      %v1625 = vpop.f32.mrb[0].mxu0
      %v1626 = vadd.f32 %v1465, %v1625
      %v1627 = vpop.f32.mrb[0].mxu0
      %1628 = vmatprep.mubr.bf16.mxu0 %v1250
      %1629 = vmatmul.mubr.bf16.gmra.mrb[0].mxu0 %v1249
      %v1630 = vpop.f32.mrb[0].mxu0
      %v1631 = vadd.f32 %v1470, %v1630
      %v1632 = vpop.f32.mrb[0].mxu0
      %v1633 = vpop.f32.mrb[0].mxu0
      %v1634 = vadd.f32 %v1473, %v1633
      %v1635 = vpop.f32.mrb[0].mxu0
      %1636 = vdwg.mxu0
      %v1637 = vadd.f32 %v899, %v1511
      %v1638 = vadd.f32 %v900, %v1514
      %v1639 = vadd.f32 %v901, %v1519
      %v1640 = vadd.f32 %v902, %v1522
      %v1641 = vadd.f32 %v903, %v1527
      %v1642 = vadd.f32 %v904, %v1530
      %v1643 = vadd.f32 %v905, %v1535
      %v1644 = vadd.f32 %v906, %v1538
      %v1645 = vadd.f32 %v907, %v1543
      %v1646 = vadd.f32 %v908, %v1546
      %v1647 = vadd.f32 %v909, %v1551
      %v1648 = vadd.f32 %v910, %v1554
      %v1649 = vadd.f32 %v911, %v1559
      %v1650 = vadd.f32 %v912, %v1562
      %v1651 = vadd.f32 %v913, %v1567
      %v1652 = vadd.f32 %v914, %v1570
      %v1653 = vadd.f32 %v915, %v1575
      %v1654 = vadd.f32 %v916, %v1578
      %v1655 = vadd.f32 %v917, %v1583
      %v1656 = vadd.f32 %v918, %v1586
      %v1657 = vadd.f32 %v919, %v1591
      %v1658 = vadd.f32 %v920, %v1594
      %v1659 = vadd.f32 %v921, %v1599
      %v1660 = vadd.f32 %v922, %v1602
      %v1661 = vadd.f32 %v923, %v1607
      %v1662 = vadd.f32 %v924, %v1610
      %v1663 = vadd.f32 %v925, %v1615
      %v1664 = vadd.f32 %v926, %v1618
      %v1665 = vadd.f32 %v927, %v1623
      %v1666 = vadd.f32 %v928, %v1626
      %v1667 = vadd.f32 %v929, %v1631
      %v1668 = vadd.f32 %v930, %v1634
      %vm1669 = vcmask 261120
      %1670 = vst.msk [vmem:[#allocation3] sm:$0xff] %vm1669, %v1637
      %1671 = vst.msk [vmem:[#allocation3 + $0x8] sm:$0xff] %vm1669, %v1638
      %1672 = vst.msk [vmem:[#allocation3 + $0x10] sm:$0xff] %vm1669, %v1639
      %1673 = vst.msk [vmem:[#allocation3 + $0x18] sm:$0xff] %vm1669, %v1640
      %1674 = vst.msk [vmem:[#allocation3 + $0x20] sm:$0xff] %vm1669, %v1641
      %1675 = vst.msk [vmem:[#allocation3 + $0x28] sm:$0xff] %vm1669, %v1642
      %1676 = vst.msk [vmem:[#allocation3 + $0x30] sm:$0xff] %vm1669, %v1643
      %1677 = vst.msk [vmem:[#allocation3 + $0x38] sm:$0xff] %vm1669, %v1644
      %1678 = vst.msk [vmem:[#allocation3 + $0x40] sm:$0xff] %vm1669, %v1645
      %1679 = vst.msk [vmem:[#allocation3 + $0x48] sm:$0xff] %vm1669, %v1646
      %1680 = vst.msk [vmem:[#allocation3 + $0x50] sm:$0xff] %vm1669, %v1647
      %1681 = vst.msk [vmem:[#allocation3 + $0x58] sm:$0xff] %vm1669, %v1648
      %1682 = vst.msk [vmem:[#allocation3 + $0x60] sm:$0xff] %vm1669, %v1649
      %1683 = vst.msk [vmem:[#allocation3 + $0x68] sm:$0xff] %vm1669, %v1650
      %1684 = vst.msk [vmem:[#allocation3 + $0x70] sm:$0xff] %vm1669, %v1651
      %1685 = vst.msk [vmem:[#allocation3 + $0x78] sm:$0xff] %vm1669, %v1652
      %1686 = vst.msk [vmem:[#allocation3 + $0x80] sm:$0xff] %vm1669, %v1653
      %1687 = vst.msk [vmem:[#allocation3 + $0x88] sm:$0xff] %vm1669, %v1654
      %1688 = vst.msk [vmem:[#allocation3 + $0x90] sm:$0xff] %vm1669, %v1655
      %1689 = vst.msk [vmem:[#allocation3 + $0x98] sm:$0xff] %vm1669, %v1656
      %1690 = vst.msk [vmem:[#allocation3 + $0xa0] sm:$0xff] %vm1669, %v1657
      %1691 = vst.msk [vmem:[#allocation3 + $0xa8] sm:$0xff] %vm1669, %v1658
      %1692 = vst.msk [vmem:[#allocation3 + $0xb0] sm:$0xff] %vm1669, %v1659
      %1693 = vst.msk [vmem:[#allocation3 + $0xb8] sm:$0xff] %vm1669, %v1660
      %1694 = vst.msk [vmem:[#allocation3 + $0xc0] sm:$0xff] %vm1669, %v1661
      %1695 = vst.msk [vmem:[#allocation3 + $0xc8] sm:$0xff] %vm1669, %v1662
      %1696 = vst.msk [vmem:[#allocation3 + $0xd0] sm:$0xff] %vm1669, %v1663
      %1697 = vst.msk [vmem:[#allocation3 + $0xd8] sm:$0xff] %vm1669, %v1664
      %1698 = vst.msk [vmem:[#allocation3 + $0xe0] sm:$0xff] %vm1669, %v1665
      %1699 = vst.msk [vmem:[#allocation3 + $0xe8] sm:$0xff] %vm1669, %v1666
      %1700 = vst.msk [vmem:[#allocation3 + $0xf0] sm:$0xff] %vm1669, %v1667
      %1701 = vst.msk [vmem:[#allocation3 + $0xf8] sm:$0xff] %vm1669, %v1668
      // Predicated region
      $region69: #{gnn_graphpred_forward.1} parent=59 // pred_check
        %p1702 = pneg %p516
      $region70: #{gnn_graphpred_forward.1} parent=59 // pred_check_branch
        %1704 = sbr.rel (%p1702) target = $region72
      $region71: #{gnn_graphpred_forward.1} parent=59 // pred_region
        %p1705 = scmp.eq.s32.totalorder %s26, 1
        %v1706 = vld [vmem:[#allocation3] sm:$0xff]
        %v1707 = vld [vmem:[#allocation3 + $0x8] sm:$0xff]
        %v1708 = vld [vmem:[#allocation3 + $0x10] sm:$0xff]
        %v1709 = vld [vmem:[#allocation3 + $0x18] sm:$0xff]
        %v1710 = vld [vmem:[#allocation3 + $0x20] sm:$0xff]
        %v1711 = vld [vmem:[#allocation3 + $0x28] sm:$0xff]
        %v1712 = vld [vmem:[#allocation3 + $0x30] sm:$0xff]
        %v1713 = vld [vmem:[#allocation3 + $0x38] sm:$0xff]
        %v1714 = vld [vmem:[#allocation3 + $0x40] sm:$0xff]
        %v1715 = vld [vmem:[#allocation3 + $0x48] sm:$0xff]
        %v1716 = vld [vmem:[#allocation3 + $0x50] sm:$0xff]
        %v1717 = vld [vmem:[#allocation3 + $0x58] sm:$0xff]
        %v1718 = vld [vmem:[#allocation3 + $0x60] sm:$0xff]
        %v1719 = vld [vmem:[#allocation3 + $0x68] sm:$0xff]
        %v1720 = vld [vmem:[#allocation3 + $0x70] sm:$0xff]
        %v1721 = vld [vmem:[#allocation3 + $0x78] sm:$0xff]
        %v1722 = vld [vmem:[#allocation3 + $0x80] sm:$0xff]
        %v1723 = vld [vmem:[#allocation3 + $0x88] sm:$0xff]
        %v1724 = vld [vmem:[#allocation3 + $0x90] sm:$0xff]
        %v1725 = vld [vmem:[#allocation3 + $0x98] sm:$0xff]
        %v1726 = vld [vmem:[#allocation3 + $0xa0] sm:$0xff]
        %v1727 = vld [vmem:[#allocation3 + $0xa8] sm:$0xff]
        %v1728 = vld [vmem:[#allocation3 + $0xb0] sm:$0xff]
        %v1729 = vld [vmem:[#allocation3 + $0xb8] sm:$0xff]
        %v1730 = vld [vmem:[#allocation3 + $0xc0] sm:$0xff]
        %v1731 = vld [vmem:[#allocation3 + $0xc8] sm:$0xff]
        %v1732 = vld [vmem:[#allocation3 + $0xd0] sm:$0xff]
        %v1733 = vld [vmem:[#allocation3 + $0xd8] sm:$0xff]
        %v1734 = vld [vmem:[#allocation3 + $0xe0] sm:$0xff]
        %v1735 = vld [vmem:[#allocation3 + $0xe8] sm:$0xff]
        %v1736 = vld [vmem:[#allocation3 + $0xf0] sm:$0xff]
        %v1737 = vld [vmem:[#allocation3 + $0xf8] sm:$0xff]
        %v1738 = vld [vmem:[%s487] sm:$0xff]
        %v1739 = vld [vmem:[%s487 + $0x8] sm:$0xff]
        %v1740 = vld [vmem:[%s487 + $0x10] sm:$0xff]
        %v1741 = vld [vmem:[%s487 + $0x18] sm:$0xff]
        %v1742 = vld [vmem:[%s487 + $0x20] sm:$0xff]
        %v1743 = vld [vmem:[%s487 + $0x28] sm:$0xff]
        %v1744 = vld [vmem:[%s487 + $0x30] sm:$0xff]
        %v1745 = vld [vmem:[%s487 + $0x38] sm:$0xff]
        %v1746 = vld [vmem:[%s487 + $0x40] sm:$0xff]
        %v1747 = vld [vmem:[%s487 + $0x48] sm:$0xff]
        %v1748 = vld [vmem:[%s487 + $0x50] sm:$0xff]
        %v1749 = vld [vmem:[%s487 + $0x58] sm:$0xff]
        %v1750 = vld [vmem:[%s487 + $0x60] sm:$0xff]
        %v1751 = vld [vmem:[%s487 + $0x68] sm:$0xff]
        %v1752 = vld [vmem:[%s487 + $0x70] sm:$0xff]
        %v1753 = vld [vmem:[%s487 + $0x78] sm:$0xff]
        %v1754 = vld [vmem:[%s487 + $0x80] sm:$0xff]
        %v1755 = vld [vmem:[%s487 + $0x88] sm:$0xff]
        %v1756 = vld [vmem:[%s487 + $0x90] sm:$0xff]
        %v1757 = vld [vmem:[%s487 + $0x98] sm:$0xff]
        %v1758 = vld [vmem:[%s487 + $0xa0] sm:$0xff]
        %v1759 = vld [vmem:[%s487 + $0xa8] sm:$0xff]
        %v1760 = vld [vmem:[%s487 + $0xb0] sm:$0xff]
        %v1761 = vld [vmem:[%s487 + $0xb8] sm:$0xff]
        %v1762 = vld [vmem:[%s487 + $0xc0] sm:$0xff]
        %v1763 = vld [vmem:[%s487 + $0xc8] sm:$0xff]
        %v1764 = vld [vmem:[%s487 + $0xd0] sm:$0xff]
        %v1765 = vld [vmem:[%s487 + $0xd8] sm:$0xff]
        %v1766 = vld [vmem:[%s487 + $0xe0] sm:$0xff]
        %v1767 = vld [vmem:[%s487 + $0xe8] sm:$0xff]
        %v1768 = vld [vmem:[%s487 + $0xf0] sm:$0xff]
        %v1769 = vld [vmem:[%s487 + $0xf8] sm:$0xff]
        %v1770 = vadd.f32 %v1706, %v1738
        %v1771 = vadd.f32 %v1707, %v1739
        %v1772 = vadd.f32 %v1708, %v1740
        %v1773 = vadd.f32 %v1709, %v1741
        %v1774 = vadd.f32 %v1710, %v1742
        %v1775 = vadd.f32 %v1711, %v1743
        %v1776 = vadd.f32 %v1712, %v1744
        %v1777 = vadd.f32 %v1713, %v1745
        %v1778 = vadd.f32 %v1714, %v1746
        %v1779 = vadd.f32 %v1715, %v1747
        %v1780 = vadd.f32 %v1716, %v1748
        %v1781 = vadd.f32 %v1717, %v1749
        %v1782 = vadd.f32 %v1718, %v1750
        %v1783 = vadd.f32 %v1719, %v1751
        %v1784 = vadd.f32 %v1720, %v1752
        %v1785 = vadd.f32 %v1721, %v1753
        %v1786 = vadd.f32 %v1722, %v1754
        %v1787 = vadd.f32 %v1723, %v1755
        %v1788 = vadd.f32 %v1724, %v1756
        %v1789 = vadd.f32 %v1725, %v1757
        %v1790 = vadd.f32 %v1726, %v1758
        %v1791 = vadd.f32 %v1727, %v1759
        %v1792 = vadd.f32 %v1728, %v1760
        %v1793 = vadd.f32 %v1729, %v1761
        %v1794 = vadd.f32 %v1730, %v1762
        %v1795 = vadd.f32 %v1731, %v1763
        %v1796 = vadd.f32 %v1732, %v1764
        %v1797 = vadd.f32 %v1733, %v1765
        %v1798 = vadd.f32 %v1734, %v1766
        %v1799 = vadd.f32 %v1735, %v1767
        %v1800 = vadd.f32 %v1736, %v1768
        %v1801 = vadd.f32 %v1737, %v1769
        %v1802 = vld [vmem:[%s493] sm:$0xff]
        %v1803 = vld [vmem:[%s493 + $0x8] sm:$0xff]
        %v1804 = vld [vmem:[%s493 + $0x10] sm:$0xff]
        %v1805 = vld [vmem:[%s493 + $0x18] sm:$0xff]
        %v1806 = vld [vmem:[%s496] sm:$0x1]
        %v1808 = vlaneseq
        %v1809 = vshrl.u32 %v1808, 7
        %v1810 = vsub.s32 0, %v1809
        %v1811 = vrot.slane %v1806, %v1810
        %v1814 = vsel %vm1669, %v1770, 0
        %v1817 = vsel %vm1669, %v1771, 0
        %v1820 = vsel %vm1669, %v1772, 0
        %v1823 = vsel %vm1669, %v1773, 0
        %v1826 = vsel %vm1669, %v1774, 0
        %v1829 = vsel %vm1669, %v1775, 0
        %v1832 = vsel %vm1669, %v1776, 0
        %v1835 = vsel %vm1669, %v1777, 0
        %v1838 = vsel %vm1669, %v1778, 0
        %v1841 = vsel %vm1669, %v1779, 0
        %v1844 = vsel %vm1669, %v1780, 0
        %v1847 = vsel %vm1669, %v1781, 0
        %v1850 = vsel %vm1669, %v1782, 0
        %v1853 = vsel %vm1669, %v1783, 0
        %v1856 = vsel %vm1669, %v1784, 0
        %v1859 = vsel %vm1669, %v1785, 0
        %v1862 = vsel %vm1669, %v1786, 0
        %v1865 = vsel %vm1669, %v1787, 0
        %v1868 = vsel %vm1669, %v1788, 0
        %v1871 = vsel %vm1669, %v1789, 0
        %v1874 = vsel %vm1669, %v1790, 0
        %v1877 = vsel %vm1669, %v1791, 0
        %v1880 = vsel %vm1669, %v1792, 0
        %v1883 = vsel %vm1669, %v1793, 0
        %v1886 = vsel %vm1669, %v1794, 0
        %v1889 = vsel %vm1669, %v1795, 0
        %v1892 = vsel %vm1669, %v1796, 0
        %v1895 = vsel %vm1669, %v1797, 0
        %v1898 = vsel %vm1669, %v1798, 0
        %v1901 = vsel %vm1669, %v1799, 0
        %v1904 = vsel %vm1669, %v1800, 0
        %v1907 = vsel %vm1669, %v1801, 0
        %1909 = vmatprep.subr.mxu0 0.0
        %1910 = vmatpush1.msra.mxu0 %v1802
        %1911 = vmatprep.subr.mxu0 0.0
        %1912 = vmatpush1.msra.mxu0 %v1803
        %1913 = vmatprep.subr.mxu0 0.0
        %1914 = vmatpush1.msra.mxu0 %v1804
        %1915 = vmatprep.subr.mxu0 0.0
        %1916 = vmatpush1.msra.mxu0 %v1805
        %1917 = vmatprep.subr.mxu0 0.0
        %1918 = vmatpush1.msra.mxu0 0.0
        %1919 = vmatprep.subr.mxu0 0.0
        %1920 = vmatpush1.msra.mxu0 0.0
        %1921 = vmatprep.subr.mxu0 0.0
        %1922 = vmatpush1.msra.mxu0 0.0
        %1923 = vmatprep.subr.mxu0 0.0
        %1924 = vmatpush1.msra.mxu0 0.0
        %1925 = vmatprep.subr.mxu0 0.0
        %1926 = vmatpush1.msra.mxu0 0.0
        %1927 = vmatprep.subr.mxu0 0.0
        %1928 = vmatpush1.msra.mxu0 0.0
        %1929 = vmatprep.subr.mxu0 0.0
        %1930 = vmatpush1.msra.mxu0 0.0
        %1931 = vmatprep.subr.mxu0 0.0
        %1932 = vmatpush1.msra.mxu0 0.0
        %1933 = vmatprep.subr.mxu0 0.0
        %1934 = vmatpush1.msra.mxu0 0.0
        %1935 = vmatprep.subr.mxu0 0.0
        %1936 = vmatpush1.msra.mxu0 0.0
        %1937 = vmatprep.subr.mxu0 0.0
        %1938 = vmatpush1.msra.mxu0 0.0
        %1939 = vmatprep.subr.mxu0 0.0
        %1940 = vmatpush1.msra.mxu0 0.0
        %1941 = vmatprep.subr.mxu0 0.0
        %1942 = vmatpush1.msra.mxu0 0.0
        %1943 = vmatprep.subr.mxu0 0.0
        %1944 = vmatpush1.msra.mxu0 0.0
        %1945 = vmatprep.subr.mxu0 0.0
        %1946 = vmatpush1.msra.mxu0 0.0
        %1947 = vmatprep.subr.mxu0 0.0
        %1948 = vmatpush1.msra.mxu0 0.0
        %1949 = vmatprep.subr.mxu0 0.0
        %1950 = vmatpush1.msra.mxu0 0.0
        %1951 = vmatprep.subr.mxu0 0.0
        %1952 = vmatpush1.msra.mxu0 0.0
        %1953 = vmatprep.subr.mxu0 0.0
        %1954 = vmatpush1.msra.mxu0 0.0
        %1955 = vmatprep.subr.mxu0 0.0
        %1956 = vmatpush1.msra.mxu0 0.0
        %1957 = vmatprep.subr.mxu0 0.0
        %1958 = vmatpush1.msra.mxu0 0.0
        %1959 = vmatprep.subr.mxu0 0.0
        %1960 = vmatpush1.msra.mxu0 0.0
        %1961 = vmatprep.subr.mxu0 0.0
        %1962 = vmatpush1.msra.mxu0 0.0
        %1963 = vmatprep.subr.mxu0 0.0
        %1964 = vmatpush1.msra.mxu0 0.0
        %1965 = vmatprep.subr.mxu0 0.0
        %1966 = vmatpush1.msra.mxu0 0.0
        %1967 = vmatprep.subr.mxu0 0.0
        %1968 = vmatpush1.msra.mxu0 0.0
        %1969 = vmatprep.subr.mxu0 0.0
        %1970 = vmatpush1.msra.mxu0 0.0
        %1971 = vmatprep.subr.mxu0 0.0
        %1972 = vmatpush1.msra.mxu0 0.0
        %1973 = vmatprep.mubr.f32.mxu0 0.0
        %1974 = vmatmul.mubr.f32.gmra.mrb[0].mxu0 %v1814
        %v1975 = vpop.f32.mrb[0].mxu0
        %v1976 = vadd.f32 %v1811, %v1975
        %v1977 = vpop.f32.mrb[0].mxu0
        %1978 = vmatprep.mubr.f32.mxu0 0.0
        %1979 = vmatmul.mubr.f32.gmra.mrb[0].mxu0 %v1817
        %v1980 = vpop.f32.mrb[0].mxu0
        %v1981 = vadd.f32 %v1811, %v1980
        %v1982 = vpop.f32.mrb[0].mxu0
        %1983 = vmatprep.mubr.f32.mxu0 0.0
        %1984 = vmatmul.mubr.f32.gmra.mrb[0].mxu0 %v1820
        %v1985 = vpop.f32.mrb[0].mxu0
        %v1986 = vadd.f32 %v1811, %v1985
        %v1987 = vpop.f32.mrb[0].mxu0
        %1988 = vmatprep.mubr.f32.mxu0 0.0
        %1989 = vmatmul.mubr.f32.gmra.mrb[0].mxu0 %v1823
        %v1990 = vpop.f32.mrb[0].mxu0
        %v1991 = vadd.f32 %v1811, %v1990
        %v1992 = vpop.f32.mrb[0].mxu0
        %1993 = vmatprep.mubr.f32.mxu0 0.0
        %1994 = vmatmul.mubr.f32.gmra.mrb[0].mxu0 %v1826
        %v1995 = vpop.f32.mrb[0].mxu0
        %v1996 = vadd.f32 %v1811, %v1995
        %v1997 = vpop.f32.mrb[0].mxu0
        %1998 = vmatprep.mubr.f32.mxu0 0.0
        %1999 = vmatmul.mubr.f32.gmra.mrb[0].mxu0 %v1829
        %v2000 = vpop.f32.mrb[0].mxu0
        %v2001 = vadd.f32 %v1811, %v2000
        %v2002 = vpop.f32.mrb[0].mxu0
        %2003 = vmatprep.mubr.f32.mxu0 0.0
        %2004 = vmatmul.mubr.f32.gmra.mrb[0].mxu0 %v1832
        %v2005 = vpop.f32.mrb[0].mxu0
        %v2006 = vadd.f32 %v1811, %v2005
        %v2007 = vpop.f32.mrb[0].mxu0
        %2008 = vmatprep.mubr.f32.mxu0 0.0
        %2009 = vmatmul.mubr.f32.gmra.mrb[0].mxu0 %v1835
        %v2010 = vpop.f32.mrb[0].mxu0
        %v2011 = vadd.f32 %v1811, %v2010
        %v2012 = vpop.f32.mrb[0].mxu0
        %2013 = vmatprep.mubr.f32.mxu0 0.0
        %2014 = vmatmul.mubr.f32.gmra.mrb[0].mxu0 %v1838
        %v2015 = vpop.f32.mrb[0].mxu0
        %v2016 = vadd.f32 %v1811, %v2015
        %v2017 = vpop.f32.mrb[0].mxu0
        %2018 = vmatprep.mubr.f32.mxu0 0.0
        %2019 = vmatmul.mubr.f32.gmra.mrb[0].mxu0 %v1841
        %v2020 = vpop.f32.mrb[0].mxu0
        %v2021 = vadd.f32 %v1811, %v2020
        %v2022 = vpop.f32.mrb[0].mxu0
        %2023 = vmatprep.mubr.f32.mxu0 0.0
        %2024 = vmatmul.mubr.f32.gmra.mrb[0].mxu0 %v1844
        %v2025 = vpop.f32.mrb[0].mxu0
        %v2026 = vadd.f32 %v1811, %v2025
        %v2027 = vpop.f32.mrb[0].mxu0
        %2028 = vmatprep.mubr.f32.mxu0 0.0
        %2029 = vmatmul.mubr.f32.gmra.mrb[0].mxu0 %v1847
        %v2030 = vpop.f32.mrb[0].mxu0
        %v2031 = vadd.f32 %v1811, %v2030
        %v2032 = vpop.f32.mrb[0].mxu0
        %2033 = vmatprep.mubr.f32.mxu0 0.0
        %2034 = vmatmul.mubr.f32.gmra.mrb[0].mxu0 %v1850
        %v2035 = vpop.f32.mrb[0].mxu0
        %v2036 = vadd.f32 %v1811, %v2035
        %v2037 = vpop.f32.mrb[0].mxu0
        %2038 = vmatprep.mubr.f32.mxu0 0.0
        %2039 = vmatmul.mubr.f32.gmra.mrb[0].mxu0 %v1853
        %v2040 = vpop.f32.mrb[0].mxu0
        %v2041 = vadd.f32 %v1811, %v2040
        %v2042 = vpop.f32.mrb[0].mxu0
        %2043 = vmatprep.mubr.f32.mxu0 0.0
        %2044 = vmatmul.mubr.f32.gmra.mrb[0].mxu0 %v1856
        %v2045 = vpop.f32.mrb[0].mxu0
        %v2046 = vadd.f32 %v1811, %v2045
        %v2047 = vpop.f32.mrb[0].mxu0
        %2048 = vmatprep.mubr.f32.mxu0 0.0
        %2049 = vmatmul.mubr.f32.gmra.mrb[0].mxu0 %v1859
        %v2050 = vpop.f32.mrb[0].mxu0
        %v2051 = vadd.f32 %v1811, %v2050
        %v2052 = vpop.f32.mrb[0].mxu0
        %2053 = vmatprep.mubr.f32.mxu0 0.0
        %2054 = vmatmul.mubr.f32.gmra.mrb[0].mxu0 %v1862
        %v2055 = vpop.f32.mrb[0].mxu0
        %v2056 = vadd.f32 %v1811, %v2055
        %v2057 = vpop.f32.mrb[0].mxu0
        %2058 = vmatprep.mubr.f32.mxu0 0.0
        %2059 = vmatmul.mubr.f32.gmra.mrb[0].mxu0 %v1865
        %v2060 = vpop.f32.mrb[0].mxu0
        %v2061 = vadd.f32 %v1811, %v2060
        %v2062 = vpop.f32.mrb[0].mxu0
        %2063 = vmatprep.mubr.f32.mxu0 0.0
        %2064 = vmatmul.mubr.f32.gmra.mrb[0].mxu0 %v1868
        %v2065 = vpop.f32.mrb[0].mxu0
        %v2066 = vadd.f32 %v1811, %v2065
        %v2067 = vpop.f32.mrb[0].mxu0
        %2068 = vmatprep.mubr.f32.mxu0 0.0
        %2069 = vmatmul.mubr.f32.gmra.mrb[0].mxu0 %v1871
        %v2070 = vpop.f32.mrb[0].mxu0
        %v2071 = vadd.f32 %v1811, %v2070
        %v2072 = vpop.f32.mrb[0].mxu0
        %2073 = vmatprep.mubr.f32.mxu0 0.0
        %2074 = vmatmul.mubr.f32.gmra.mrb[0].mxu0 %v1874
        %v2075 = vpop.f32.mrb[0].mxu0
        %v2076 = vadd.f32 %v1811, %v2075
        %v2077 = vpop.f32.mrb[0].mxu0
        %2078 = vmatprep.mubr.f32.mxu0 0.0
        %2079 = vmatmul.mubr.f32.gmra.mrb[0].mxu0 %v1877
        %v2080 = vpop.f32.mrb[0].mxu0
        %v2081 = vadd.f32 %v1811, %v2080
        %v2082 = vpop.f32.mrb[0].mxu0
        %2083 = vmatprep.mubr.f32.mxu0 0.0
        %2084 = vmatmul.mubr.f32.gmra.mrb[0].mxu0 %v1880
        %v2085 = vpop.f32.mrb[0].mxu0
        %v2086 = vadd.f32 %v1811, %v2085
        %v2087 = vpop.f32.mrb[0].mxu0
        %2088 = vmatprep.mubr.f32.mxu0 0.0
        %2089 = vmatmul.mubr.f32.gmra.mrb[0].mxu0 %v1883
        %v2090 = vpop.f32.mrb[0].mxu0
        %v2091 = vadd.f32 %v1811, %v2090
        %v2092 = vpop.f32.mrb[0].mxu0
        %2093 = vmatprep.mubr.f32.mxu0 0.0
        %2094 = vmatmul.mubr.f32.gmra.mrb[0].mxu0 %v1886
        %v2095 = vpop.f32.mrb[0].mxu0
        %v2096 = vadd.f32 %v1811, %v2095
        %v2097 = vpop.f32.mrb[0].mxu0
        %2098 = vmatprep.mubr.f32.mxu0 0.0
        %2099 = vmatmul.mubr.f32.gmra.mrb[0].mxu0 %v1889
        %v2100 = vpop.f32.mrb[0].mxu0
        %v2101 = vadd.f32 %v1811, %v2100
        %v2102 = vpop.f32.mrb[0].mxu0
        %2103 = vmatprep.mubr.f32.mxu0 0.0
        %2104 = vmatmul.mubr.f32.gmra.mrb[0].mxu0 %v1892
        %v2105 = vpop.f32.mrb[0].mxu0
        %v2106 = vadd.f32 %v1811, %v2105
        %v2107 = vpop.f32.mrb[0].mxu0
        %2108 = vmatprep.mubr.f32.mxu0 0.0
        %2109 = vmatmul.mubr.f32.gmra.mrb[0].mxu0 %v1895
        %v2110 = vpop.f32.mrb[0].mxu0
        %v2111 = vadd.f32 %v1811, %v2110
        %v2112 = vpop.f32.mrb[0].mxu0
        %2113 = vmatprep.mubr.f32.mxu0 0.0
        %2114 = vmatmul.mubr.f32.gmra.mrb[0].mxu0 %v1898
        %v2115 = vpop.f32.mrb[0].mxu0
        %v2116 = vadd.f32 %v1811, %v2115
        %v2117 = vpop.f32.mrb[0].mxu0
        %2118 = vmatprep.mubr.f32.mxu0 0.0
        %2119 = vmatmul.mubr.f32.gmra.mrb[0].mxu0 %v1901
        %v2120 = vpop.f32.mrb[0].mxu0
        %v2121 = vadd.f32 %v1811, %v2120
        %v2122 = vpop.f32.mrb[0].mxu0
        %2123 = vmatprep.mubr.f32.mxu0 0.0
        %2124 = vmatmul.mubr.f32.gmra.mrb[0].mxu0 %v1904
        %v2125 = vpop.f32.mrb[0].mxu0
        %v2126 = vadd.f32 %v1811, %v2125
        %v2127 = vpop.f32.mrb[0].mxu0
        %2128 = vmatprep.mubr.f32.mxu0 0.0
        %2129 = vmatmul.mubr.f32.gmra.mrb[0].mxu0 %v1907
        %v2130 = vpop.f32.mrb[0].mxu0
        %v2131 = vadd.f32 %v1811, %v2130
        %v2132 = vpop.f32.mrb[0].mxu0
        %2133 = vdwg.mxu0
        %v2134 = vmax.f32 %v1976, 0.0
        %v2135 = vmax.f32 %v1981, 0.0
        %v2136 = vmax.f32 %v1986, 0.0
        %v2137 = vmax.f32 %v1991, 0.0
        %v2138 = vmax.f32 %v1996, 0.0
        %v2139 = vmax.f32 %v2001, 0.0
        %v2140 = vmax.f32 %v2006, 0.0
        %v2141 = vmax.f32 %v2011, 0.0
        %v2142 = vmax.f32 %v2016, 0.0
        %v2143 = vmax.f32 %v2021, 0.0
        %v2144 = vmax.f32 %v2026, 0.0
        %v2145 = vmax.f32 %v2031, 0.0
        %v2146 = vmax.f32 %v2036, 0.0
        %v2147 = vmax.f32 %v2041, 0.0
        %v2148 = vmax.f32 %v2046, 0.0
        %v2149 = vmax.f32 %v2051, 0.0
        %v2150 = vmax.f32 %v2056, 0.0
        %v2151 = vmax.f32 %v2061, 0.0
        %v2152 = vmax.f32 %v2066, 0.0
        %v2153 = vmax.f32 %v2071, 0.0
        %v2154 = vmax.f32 %v2076, 0.0
        %v2155 = vmax.f32 %v2081, 0.0
        %v2156 = vmax.f32 %v2086, 0.0
        %v2157 = vmax.f32 %v2091, 0.0
        %v2158 = vmax.f32 %v2096, 0.0
        %v2159 = vmax.f32 %v2101, 0.0
        %v2160 = vmax.f32 %v2106, 0.0
        %v2161 = vmax.f32 %v2111, 0.0
        %v2162 = vmax.f32 %v2116, 0.0
        %v2163 = vmax.f32 %v2121, 0.0
        %v2164 = vmax.f32 %v2126, 0.0
        %v2165 = vmax.f32 %v2131, 0.0
        %v2166 = vld [vmem:[%s501] sm:$0xff]
        %v2167 = vld [vmem:[%s501 + $0x8] sm:$0xff]
        %v2168 = vld [vmem:[%s501 + $0x10] sm:$0xff]
        %v2169 = vld [vmem:[%s501 + $0x18] sm:$0xff]
        %v2170 = vld [vmem:[%s501 + $0x20] sm:$0xff]
        %v2171 = vld [vmem:[%s501 + $0x28] sm:$0xff]
        %v2172 = vld [vmem:[%s501 + $0x30] sm:$0xff]
        %v2173 = vld [vmem:[%s501 + $0x38] sm:$0xff]
        %v2174 = vld [vmem:[%s504] sm:$0x1]
        %v2176 = vlaneseq
        %v2177 = vshrl.u32 %v2176, 7
        %v2178 = vsub.s32 0, %v2177
        %v2179 = vrot.slane %v2174, %v2178
        %vm2181 = vcmask 523264
        %v2183 = vsel %vm2181, %v2134, 0
        %v2186 = vsel %vm2181, %v2135, 0
        %v2189 = vsel %vm2181, %v2136, 0
        %v2192 = vsel %vm2181, %v2137, 0
        %v2195 = vsel %vm2181, %v2138, 0
        %v2198 = vsel %vm2181, %v2139, 0
        %v2201 = vsel %vm2181, %v2140, 0
        %v2204 = vsel %vm2181, %v2141, 0
        %v2207 = vsel %vm2181, %v2142, 0
        %v2210 = vsel %vm2181, %v2143, 0
        %v2213 = vsel %vm2181, %v2144, 0
        %v2216 = vsel %vm2181, %v2145, 0
        %v2219 = vsel %vm2181, %v2146, 0
        %v2222 = vsel %vm2181, %v2147, 0
        %v2225 = vsel %vm2181, %v2148, 0
        %v2228 = vsel %vm2181, %v2149, 0
        %v2231 = vsel %vm2181, %v2150, 0
        %v2234 = vsel %vm2181, %v2151, 0
        %v2237 = vsel %vm2181, %v2152, 0
        %v2240 = vsel %vm2181, %v2153, 0
        %v2243 = vsel %vm2181, %v2154, 0
        %v2246 = vsel %vm2181, %v2155, 0
        %v2249 = vsel %vm2181, %v2156, 0
        %v2252 = vsel %vm2181, %v2157, 0
        %v2255 = vsel %vm2181, %v2158, 0
        %v2258 = vsel %vm2181, %v2159, 0
        %v2261 = vsel %vm2181, %v2160, 0
        %v2264 = vsel %vm2181, %v2161, 0
        %v2267 = vsel %vm2181, %v2162, 0
        %v2270 = vsel %vm2181, %v2163, 0
        %v2273 = vsel %vm2181, %v2164, 0
        %v2276 = vsel %vm2181, %v2165, 0
        %2278 = vmatprep.subr.mxu0 0.0
        %2279 = vmatpush1.msra.mxu0 %v2166
        %2280 = vmatprep.subr.mxu0 0.0
        %2281 = vmatpush1.msra.mxu0 %v2167
        %2282 = vmatprep.subr.mxu0 0.0
        %2283 = vmatpush1.msra.mxu0 %v2168
        %2284 = vmatprep.subr.mxu0 0.0
        %2285 = vmatpush1.msra.mxu0 %v2169
        %2286 = vmatprep.subr.mxu0 0.0
        %2287 = vmatpush1.msra.mxu0 %v2170
        %2288 = vmatprep.subr.mxu0 0.0
        %2289 = vmatpush1.msra.mxu0 %v2171
        %2290 = vmatprep.subr.mxu0 0.0
        %2291 = vmatpush1.msra.mxu0 %v2172
        %2292 = vmatprep.subr.mxu0 0.0
        %2293 = vmatpush1.msra.mxu0 %v2173
        %2294 = vmatprep.subr.mxu0 0.0
        %2295 = vmatpush1.msra.mxu0 0.0
        %2296 = vmatprep.subr.mxu0 0.0
        %2297 = vmatpush1.msra.mxu0 0.0
        %2298 = vmatprep.subr.mxu0 0.0
        %2299 = vmatpush1.msra.mxu0 0.0
        %2300 = vmatprep.subr.mxu0 0.0
        %2301 = vmatpush1.msra.mxu0 0.0
        %2302 = vmatprep.subr.mxu0 0.0
        %2303 = vmatpush1.msra.mxu0 0.0
        %2304 = vmatprep.subr.mxu0 0.0
        %2305 = vmatpush1.msra.mxu0 0.0
        %2306 = vmatprep.subr.mxu0 0.0
        %2307 = vmatpush1.msra.mxu0 0.0
        %2308 = vmatprep.subr.mxu0 0.0
        %2309 = vmatpush1.msra.mxu0 0.0
        %2310 = vmatprep.subr.mxu0 0.0
        %2311 = vmatpush1.msra.mxu0 0.0
        %2312 = vmatprep.subr.mxu0 0.0
        %2313 = vmatpush1.msra.mxu0 0.0
        %2314 = vmatprep.subr.mxu0 0.0
        %2315 = vmatpush1.msra.mxu0 0.0
        %2316 = vmatprep.subr.mxu0 0.0
        %2317 = vmatpush1.msra.mxu0 0.0
        %2318 = vmatprep.subr.mxu0 0.0
        %2319 = vmatpush1.msra.mxu0 0.0
        %2320 = vmatprep.subr.mxu0 0.0
        %2321 = vmatpush1.msra.mxu0 0.0
        %2322 = vmatprep.subr.mxu0 0.0
        %2323 = vmatpush1.msra.mxu0 0.0
        %2324 = vmatprep.subr.mxu0 0.0
        %2325 = vmatpush1.msra.mxu0 0.0
        %2326 = vmatprep.subr.mxu0 0.0
        %2327 = vmatpush1.msra.mxu0 0.0
        %2328 = vmatprep.subr.mxu0 0.0
        %2329 = vmatpush1.msra.mxu0 0.0
        %2330 = vmatprep.subr.mxu0 0.0
        %2331 = vmatpush1.msra.mxu0 0.0
        %2332 = vmatprep.subr.mxu0 0.0
        %2333 = vmatpush1.msra.mxu0 0.0
        %2334 = vmatprep.subr.mxu0 0.0
        %2335 = vmatpush1.msra.mxu0 0.0
        %2336 = vmatprep.subr.mxu0 0.0
        %2337 = vmatpush1.msra.mxu0 0.0
        %2338 = vmatprep.subr.mxu0 0.0
        %2339 = vmatpush1.msra.mxu0 0.0
        %2340 = vmatprep.subr.mxu0 0.0
        %2341 = vmatpush1.msra.mxu0 0.0
        %2342 = vmatprep.mubr.f32.mxu0 0.0
        %2343 = vmatmul.mubr.f32.gmra.mrb[0].mxu0 %v2183
        %v2344 = vpop.f32.mrb[0].mxu0
        %v2345 = vadd.f32 %v2179, %v2344
        %v2346 = vpop.f32.mrb[0].mxu0
        %2347 = vmatprep.mubr.f32.mxu0 0.0
        %2348 = vmatmul.mubr.f32.gmra.mrb[0].mxu0 %v2186
        %v2349 = vpop.f32.mrb[0].mxu0
        %v2350 = vadd.f32 %v2179, %v2349
        %v2351 = vpop.f32.mrb[0].mxu0
        %2352 = vmatprep.mubr.f32.mxu0 0.0
        %2353 = vmatmul.mubr.f32.gmra.mrb[0].mxu0 %v2189
        %v2354 = vpop.f32.mrb[0].mxu0
        %v2355 = vadd.f32 %v2179, %v2354
        %v2356 = vpop.f32.mrb[0].mxu0
        %2357 = vmatprep.mubr.f32.mxu0 0.0
        %2358 = vmatmul.mubr.f32.gmra.mrb[0].mxu0 %v2192
        %v2359 = vpop.f32.mrb[0].mxu0
        %v2360 = vadd.f32 %v2179, %v2359
        %v2361 = vpop.f32.mrb[0].mxu0
        %2362 = vmatprep.mubr.f32.mxu0 0.0
        %2363 = vmatmul.mubr.f32.gmra.mrb[0].mxu0 %v2195
        %v2364 = vpop.f32.mrb[0].mxu0
        %v2365 = vadd.f32 %v2179, %v2364
        %v2366 = vpop.f32.mrb[0].mxu0
        %2367 = vmatprep.mubr.f32.mxu0 0.0
        %2368 = vmatmul.mubr.f32.gmra.mrb[0].mxu0 %v2198
        %v2369 = vpop.f32.mrb[0].mxu0
        %v2370 = vadd.f32 %v2179, %v2369
        %v2371 = vpop.f32.mrb[0].mxu0
        %2372 = vmatprep.mubr.f32.mxu0 0.0
        %2373 = vmatmul.mubr.f32.gmra.mrb[0].mxu0 %v2201
        %v2374 = vpop.f32.mrb[0].mxu0
        %v2375 = vadd.f32 %v2179, %v2374
        %v2376 = vpop.f32.mrb[0].mxu0
        %2377 = vmatprep.mubr.f32.mxu0 0.0
        %2378 = vmatmul.mubr.f32.gmra.mrb[0].mxu0 %v2204
        %v2379 = vpop.f32.mrb[0].mxu0
        %v2380 = vadd.f32 %v2179, %v2379
        %v2381 = vpop.f32.mrb[0].mxu0
        %2382 = vmatprep.mubr.f32.mxu0 0.0
        %2383 = vmatmul.mubr.f32.gmra.mrb[0].mxu0 %v2207
        %v2384 = vpop.f32.mrb[0].mxu0
        %v2385 = vadd.f32 %v2179, %v2384
        %v2386 = vpop.f32.mrb[0].mxu0
        %2387 = vmatprep.mubr.f32.mxu0 0.0
        %2388 = vmatmul.mubr.f32.gmra.mrb[0].mxu0 %v2210
        %v2389 = vpop.f32.mrb[0].mxu0
        %v2390 = vadd.f32 %v2179, %v2389
        %v2391 = vpop.f32.mrb[0].mxu0
        %2392 = vmatprep.mubr.f32.mxu0 0.0
        %2393 = vmatmul.mubr.f32.gmra.mrb[0].mxu0 %v2213
        %v2394 = vpop.f32.mrb[0].mxu0
        %v2395 = vadd.f32 %v2179, %v2394
        %v2396 = vpop.f32.mrb[0].mxu0
        %2397 = vmatprep.mubr.f32.mxu0 0.0
        %2398 = vmatmul.mubr.f32.gmra.mrb[0].mxu0 %v2216
        %v2399 = vpop.f32.mrb[0].mxu0
        %v2400 = vadd.f32 %v2179, %v2399
        %v2401 = vpop.f32.mrb[0].mxu0
        %2402 = vmatprep.mubr.f32.mxu0 0.0
        %2403 = vmatmul.mubr.f32.gmra.mrb[0].mxu0 %v2219
        %v2404 = vpop.f32.mrb[0].mxu0
        %v2405 = vadd.f32 %v2179, %v2404
        %v2406 = vpop.f32.mrb[0].mxu0
        %2407 = vmatprep.mubr.f32.mxu0 0.0
        %2408 = vmatmul.mubr.f32.gmra.mrb[0].mxu0 %v2222
        %v2409 = vpop.f32.mrb[0].mxu0
        %v2410 = vadd.f32 %v2179, %v2409
        %v2411 = vpop.f32.mrb[0].mxu0
        %2412 = vmatprep.mubr.f32.mxu0 0.0
        %2413 = vmatmul.mubr.f32.gmra.mrb[0].mxu0 %v2225
        %v2414 = vpop.f32.mrb[0].mxu0
        %v2415 = vadd.f32 %v2179, %v2414
        %v2416 = vpop.f32.mrb[0].mxu0
        %2417 = vmatprep.mubr.f32.mxu0 0.0
        %2418 = vmatmul.mubr.f32.gmra.mrb[0].mxu0 %v2228
        %v2419 = vpop.f32.mrb[0].mxu0
        %v2420 = vadd.f32 %v2179, %v2419
        %v2421 = vpop.f32.mrb[0].mxu0
        %2422 = vmatprep.mubr.f32.mxu0 0.0
        %2423 = vmatmul.mubr.f32.gmra.mrb[0].mxu0 %v2231
        %v2424 = vpop.f32.mrb[0].mxu0
        %v2425 = vadd.f32 %v2179, %v2424
        %v2426 = vpop.f32.mrb[0].mxu0
        %2427 = vmatprep.mubr.f32.mxu0 0.0
        %2428 = vmatmul.mubr.f32.gmra.mrb[0].mxu0 %v2234
        %v2429 = vpop.f32.mrb[0].mxu0
        %v2430 = vadd.f32 %v2179, %v2429
        %v2431 = vpop.f32.mrb[0].mxu0
        %2432 = vmatprep.mubr.f32.mxu0 0.0
        %2433 = vmatmul.mubr.f32.gmra.mrb[0].mxu0 %v2237
        %v2434 = vpop.f32.mrb[0].mxu0
        %v2435 = vadd.f32 %v2179, %v2434
        %v2436 = vpop.f32.mrb[0].mxu0
        %2437 = vmatprep.mubr.f32.mxu0 0.0
        %2438 = vmatmul.mubr.f32.gmra.mrb[0].mxu0 %v2240
        %v2439 = vpop.f32.mrb[0].mxu0
        %v2440 = vadd.f32 %v2179, %v2439
        %v2441 = vpop.f32.mrb[0].mxu0
        %2442 = vmatprep.mubr.f32.mxu0 0.0
        %2443 = vmatmul.mubr.f32.gmra.mrb[0].mxu0 %v2243
        %v2444 = vpop.f32.mrb[0].mxu0
        %v2445 = vadd.f32 %v2179, %v2444
        %v2446 = vpop.f32.mrb[0].mxu0
        %2447 = vmatprep.mubr.f32.mxu0 0.0
        %2448 = vmatmul.mubr.f32.gmra.mrb[0].mxu0 %v2246
        %v2449 = vpop.f32.mrb[0].mxu0
        %v2450 = vadd.f32 %v2179, %v2449
        %v2451 = vpop.f32.mrb[0].mxu0
        %2452 = vmatprep.mubr.f32.mxu0 0.0
        %2453 = vmatmul.mubr.f32.gmra.mrb[0].mxu0 %v2249
        %v2454 = vpop.f32.mrb[0].mxu0
        %v2455 = vadd.f32 %v2179, %v2454
        %v2456 = vpop.f32.mrb[0].mxu0
        %2457 = vmatprep.mubr.f32.mxu0 0.0
        %2458 = vmatmul.mubr.f32.gmra.mrb[0].mxu0 %v2252
        %v2459 = vpop.f32.mrb[0].mxu0
        %v2460 = vadd.f32 %v2179, %v2459
        %v2461 = vpop.f32.mrb[0].mxu0
        %2462 = vmatprep.mubr.f32.mxu0 0.0
        %2463 = vmatmul.mubr.f32.gmra.mrb[0].mxu0 %v2255
        %v2464 = vpop.f32.mrb[0].mxu0
        %v2465 = vadd.f32 %v2179, %v2464
        %v2466 = vpop.f32.mrb[0].mxu0
        %2467 = vmatprep.mubr.f32.mxu0 0.0
        %2468 = vmatmul.mubr.f32.gmra.mrb[0].mxu0 %v2258
        %v2469 = vpop.f32.mrb[0].mxu0
        %v2470 = vadd.f32 %v2179, %v2469
        %v2471 = vpop.f32.mrb[0].mxu0
        %2472 = vmatprep.mubr.f32.mxu0 0.0
        %2473 = vmatmul.mubr.f32.gmra.mrb[0].mxu0 %v2261
        %v2474 = vpop.f32.mrb[0].mxu0
        %v2475 = vadd.f32 %v2179, %v2474
        %v2476 = vpop.f32.mrb[0].mxu0
        %2477 = vmatprep.mubr.f32.mxu0 0.0
        %2478 = vmatmul.mubr.f32.gmra.mrb[0].mxu0 %v2264
        %v2479 = vpop.f32.mrb[0].mxu0
        %v2480 = vadd.f32 %v2179, %v2479
        %v2481 = vpop.f32.mrb[0].mxu0
        %2482 = vmatprep.mubr.f32.mxu0 0.0
        %2483 = vmatmul.mubr.f32.gmra.mrb[0].mxu0 %v2267
        %v2484 = vpop.f32.mrb[0].mxu0
        %v2485 = vadd.f32 %v2179, %v2484
        %v2486 = vpop.f32.mrb[0].mxu0
        %2487 = vmatprep.mubr.f32.mxu0 0.0
        %2488 = vmatmul.mubr.f32.gmra.mrb[0].mxu0 %v2270
        %v2489 = vpop.f32.mrb[0].mxu0
        %v2490 = vadd.f32 %v2179, %v2489
        %v2491 = vpop.f32.mrb[0].mxu0
        %2492 = vmatprep.mubr.f32.mxu0 0.0
        %2493 = vmatmul.mubr.f32.gmra.mrb[0].mxu0 %v2273
        %v2494 = vpop.f32.mrb[0].mxu0
        %v2495 = vadd.f32 %v2179, %v2494
        %v2496 = vpop.f32.mrb[0].mxu0
        %2497 = vmatprep.mubr.f32.mxu0 0.0
        %2498 = vmatmul.mubr.f32.gmra.mrb[0].mxu0 %v2276
        %v2499 = vpop.f32.mrb[0].mxu0
        %v2500 = vadd.f32 %v2179, %v2499
        %v2501 = vpop.f32.mrb[0].mxu0
        %2502 = vdwg.mxu0
        %v2503 = vmax.f32 %v2345, 0.0
        %v2504 = vmax.f32 %v2350, 0.0
        %v2505 = vmax.f32 %v2355, 0.0
        %v2506 = vmax.f32 %v2360, 0.0
        %v2507 = vmax.f32 %v2365, 0.0
        %v2508 = vmax.f32 %v2370, 0.0
        %v2509 = vmax.f32 %v2375, 0.0
        %v2510 = vmax.f32 %v2380, 0.0
        %v2511 = vmax.f32 %v2385, 0.0
        %v2512 = vmax.f32 %v2390, 0.0
        %v2513 = vmax.f32 %v2395, 0.0
        %v2514 = vmax.f32 %v2400, 0.0
        %v2515 = vmax.f32 %v2405, 0.0
        %v2516 = vmax.f32 %v2410, 0.0
        %v2517 = vmax.f32 %v2415, 0.0
        %v2518 = vmax.f32 %v2420, 0.0
        %v2519 = vmax.f32 %v2425, 0.0
        %v2520 = vmax.f32 %v2430, 0.0
        %v2521 = vmax.f32 %v2435, 0.0
        %v2522 = vmax.f32 %v2440, 0.0
        %v2523 = vmax.f32 %v2445, 0.0
        %v2524 = vmax.f32 %v2450, 0.0
        %v2525 = vmax.f32 %v2455, 0.0
        %v2526 = vmax.f32 %v2460, 0.0
        %v2527 = vmax.f32 %v2465, 0.0
        %v2528 = vmax.f32 %v2470, 0.0
        %v2529 = vmax.f32 %v2475, 0.0
        %v2530 = vmax.f32 %v2480, 0.0
        %v2531 = vmax.f32 %v2485, 0.0
        %v2532 = vmax.f32 %v2490, 0.0
        %v2533 = vmax.f32 %v2495, 0.0
        %v2534 = vmax.f32 %v2500, 0.0
        %s2535 = scalar_select %p1705, 1, 0
        %v2536 = vstv %s2535
        %vm2537 = vcmp.eq.s32.totalorder %v2536, 1
        %v2538 = vsel %vm2537, %v2345, %v2503
        %v2539 = vsel %vm2537, %v2350, %v2504
        %v2540 = vsel %vm2537, %v2355, %v2505
        %v2541 = vsel %vm2537, %v2360, %v2506
        %v2542 = vsel %vm2537, %v2365, %v2507
        %v2543 = vsel %vm2537, %v2370, %v2508
        %v2544 = vsel %vm2537, %v2375, %v2509
        %v2545 = vsel %vm2537, %v2380, %v2510
        %v2546 = vsel %vm2537, %v2385, %v2511
        %v2547 = vsel %vm2537, %v2390, %v2512
        %v2548 = vsel %vm2537, %v2395, %v2513
        %v2549 = vsel %vm2537, %v2400, %v2514
        %v2550 = vsel %vm2537, %v2405, %v2515
        %v2551 = vsel %vm2537, %v2410, %v2516
        %v2552 = vsel %vm2537, %v2415, %v2517
        %v2553 = vsel %vm2537, %v2420, %v2518
        %v2554 = vsel %vm2537, %v2425, %v2519
        %v2555 = vsel %vm2537, %v2430, %v2520
        %v2556 = vsel %vm2537, %v2435, %v2521
        %v2557 = vsel %vm2537, %v2440, %v2522
        %v2558 = vsel %vm2537, %v2445, %v2523
        %v2559 = vsel %vm2537, %v2450, %v2524
        %v2560 = vsel %vm2537, %v2455, %v2525
        %v2561 = vsel %vm2537, %v2460, %v2526
        %v2562 = vsel %vm2537, %v2465, %v2527
        %v2563 = vsel %vm2537, %v2470, %v2528
        %v2564 = vsel %vm2537, %v2475, %v2529
        %v2565 = vsel %vm2537, %v2480, %v2530
        %v2566 = vsel %vm2537, %v2485, %v2531
        %v2567 = vsel %vm2537, %v2490, %v2532
        %v2568 = vsel %vm2537, %v2495, %v2533
        %v2569 = vsel %vm2537, %v2500, %v2534
        %p2570 = scmp.lt.s32.totalorder %s26, 0
        %s2571 = ssub.s32 0, %s26
        %s2572 = scalar_select %p2570, %s2571, %s26
        %s2573 = sand.u32 %s2572, 1
        %s2574 = ssub.s32 0, %s2573
        %s2575 = scalar_select %p2570, %s2574, %s2573
        %p2576 = scmp.ne.s32.totalorder %s2575, 0
        %p2577 = scmp.lt.s32.totalorder %s2575, 0
        %p2578 = pnand %p2577, %p2576
        %p2579 = pneg %p2578
        %s2580 = sadd.s32 %s2575, 2
        %s2581 = scalar_select %p2579, %s2580, %s2575
        %s2582 = smul.u32 %s2581, 512
        %s2583 = smul.u32 %s27, 256
        %s2584 = sadd.s32 %s2582, %s2583
        %v2585 = vpack.c.bf16 %v2539, %v2538
        %v2586 = vpack.c.bf16 %v2541, %v2540
        %v2587 = vpack.c.bf16 %v2543, %v2542
        %v2588 = vpack.c.bf16 %v2545, %v2544
        %v2589 = vpack.c.bf16 %v2547, %v2546
        %v2590 = vpack.c.bf16 %v2549, %v2548
        %v2591 = vpack.c.bf16 %v2551, %v2550
        %v2592 = vpack.c.bf16 %v2553, %v2552
        %v2593 = vpack.c.bf16 %v2555, %v2554
        %v2594 = vpack.c.bf16 %v2557, %v2556
        %v2595 = vpack.c.bf16 %v2559, %v2558
        %v2596 = vpack.c.bf16 %v2561, %v2560
        %v2597 = vpack.c.bf16 %v2563, %v2562
        %v2598 = vpack.c.bf16 %v2565, %v2564
        %v2599 = vpack.c.bf16 %v2567, %v2566
        %v2600 = vpack.c.bf16 %v2569, %v2568
        %s2601 = sshra.s32 %s2584, 4
        %s2602 = sand.u32 %s2584, 15
        %s2603 = smul.addr %s2601, 8
        %s2604 = scalar_lea.vmem [#allocation2], %s2603
        %2605 = vst.msk [vmem:[%s2604] sm:$0xff] %vm1669, %v2585
        %2606 = vst.msk [vmem:[%s2604 + $0x8] sm:$0xff] %vm1669, %v2586
        %2607 = vst.msk [vmem:[%s2604 + $0x10] sm:$0xff] %vm1669, %v2587
        %2608 = vst.msk [vmem:[%s2604 + $0x18] sm:$0xff] %vm1669, %v2588
        %2609 = vst.msk [vmem:[%s2604 + $0x20] sm:$0xff] %vm1669, %v2589
        %2610 = vst.msk [vmem:[%s2604 + $0x28] sm:$0xff] %vm1669, %v2590
        %2611 = vst.msk [vmem:[%s2604 + $0x30] sm:$0xff] %vm1669, %v2591
        %2612 = vst.msk [vmem:[%s2604 + $0x38] sm:$0xff] %vm1669, %v2592
        %2613 = vst.msk [vmem:[%s2604 + $0x40] sm:$0xff] %vm1669, %v2593
        %2614 = vst.msk [vmem:[%s2604 + $0x48] sm:$0xff] %vm1669, %v2594
        %2615 = vst.msk [vmem:[%s2604 + $0x50] sm:$0xff] %vm1669, %v2595
        %2616 = vst.msk [vmem:[%s2604 + $0x58] sm:$0xff] %vm1669, %v2596
        %2617 = vst.msk [vmem:[%s2604 + $0x60] sm:$0xff] %vm1669, %v2597
        %2618 = vst.msk [vmem:[%s2604 + $0x68] sm:$0xff] %vm1669, %v2598
        %2619 = vst.msk [vmem:[%s2604 + $0x70] sm:$0xff] %vm1669, %v2599
        %2620 = vst.msk [vmem:[%s2604 + $0x78] sm:$0xff] %vm1669, %v2600
        // Predicated region
        $region73: #{gnn_graphpred_forward.1} parent=71 // pred_check
          %p2621 = pneg %p1705
        $region74: #{gnn_graphpred_forward.1} parent=71 // pred_check_branch
          %2623 = sbr.rel (%p2621) target = $region76
        $region75: #{gnn_graphpred_forward.1} parent=71 // pred_region
          %v2624 = vld [vmem:[#allocation4] sm:$0xff]
          %v2625 = vld [vmem:[%s509] sm:$0xff]
          %v2626 = vld [vmem:[%s509 + $0x8] sm:$0xff]
          %2627 = vmatprep.subr.mxu0 0.0
          %2628 = vmatpush1.msra.mxu0 %v2538
          %2629 = vmatprep.subr.mxu0 0.0
          %2630 = vmatpush1.msra.mxu0 %v2539
          %2631 = vmatprep.subr.mxu0 0.0
          %2632 = vmatpush1.msra.mxu0 %v2540
          %2633 = vmatprep.subr.mxu0 0.0
          %2634 = vmatpush1.msra.mxu0 %v2541
          %2635 = vmatprep.subr.mxu0 0.0
          %2636 = vmatpush1.msra.mxu0 %v2542
          %2637 = vmatprep.subr.mxu0 0.0
          %2638 = vmatpush1.msra.mxu0 %v2543
          %2639 = vmatprep.subr.mxu0 0.0
          %2640 = vmatpush1.msra.mxu0 %v2544
          %2641 = vmatprep.subr.mxu0 0.0
          %2642 = vmatpush1.msra.mxu0 %v2545
          %2643 = vmatprep.subr.mxu0 0.0
          %2644 = vmatpush1.msra.mxu0 %v2546
          %2645 = vmatprep.subr.mxu0 0.0
          %2646 = vmatpush1.msra.mxu0 %v2547
          %2647 = vmatprep.subr.mxu0 0.0
          %2648 = vmatpush1.msra.mxu0 %v2548
          %2649 = vmatprep.subr.mxu0 0.0
          %2650 = vmatpush1.msra.mxu0 %v2549
          %2651 = vmatprep.subr.mxu0 0.0
          %2652 = vmatpush1.msra.mxu0 %v2550
          %2653 = vmatprep.subr.mxu0 0.0
          %2654 = vmatpush1.msra.mxu0 %v2551
          %2655 = vmatprep.subr.mxu0 0.0
          %2656 = vmatpush1.msra.mxu0 %v2552
          %2657 = vmatprep.subr.mxu0 0.0
          %2658 = vmatpush1.msra.mxu0 %v2553
          %2659 = vmatprep.subr.mxu0 0.0
          %2660 = vmatpush1.msra.mxu0 %v2554
          %2661 = vmatprep.subr.mxu0 0.0
          %2662 = vmatpush1.msra.mxu0 %v2555
          %2663 = vmatprep.subr.mxu0 0.0
          %2664 = vmatpush1.msra.mxu0 %v2556
          %2665 = vmatprep.subr.mxu0 0.0
          %2666 = vmatpush1.msra.mxu0 %v2557
          %2667 = vmatprep.subr.mxu0 0.0
          %2668 = vmatpush1.msra.mxu0 %v2558
          %2669 = vmatprep.subr.mxu0 0.0
          %2670 = vmatpush1.msra.mxu0 %v2559
          %2671 = vmatprep.subr.mxu0 0.0
          %2672 = vmatpush1.msra.mxu0 %v2560
          %2673 = vmatprep.subr.mxu0 0.0
          %2674 = vmatpush1.msra.mxu0 %v2561
          %2675 = vmatprep.subr.mxu0 0.0
          %2676 = vmatpush1.msra.mxu0 %v2562
          %2677 = vmatprep.subr.mxu0 0.0
          %2678 = vmatpush1.msra.mxu0 %v2563
          %2679 = vmatprep.subr.mxu0 0.0
          %2680 = vmatpush1.msra.mxu0 %v2564
          %2681 = vmatprep.subr.mxu0 0.0
          %2682 = vmatpush1.msra.mxu0 %v2565
          %2683 = vmatprep.subr.mxu0 0.0
          %2684 = vmatpush1.msra.mxu0 %v2566
          %2685 = vmatprep.subr.mxu0 0.0
          %2686 = vmatpush1.msra.mxu0 %v2567
          %2687 = vmatprep.subr.mxu0 0.0
          %2688 = vmatpush1.msra.mxu0 %v2568
          %2689 = vmatprep.subr.mxu0 0.0
          %2690 = vmatpush1.msra.mxu0 %v2569
          %2691 = vmatprep.mubr.f32.mxu0 %v2626
          %2692 = vmatmul.mubr.f32.gmra.mrb[0].mxu0 %v2625
          %v2693 = vpop.f32.mrb[0].mxu0
          %v2694 = vadd.f32 0.0, %v2693
          %v2695 = vpop.f32.mrb[0].mxu0
          %2696 = vdwg.mxu0
          %v2697 = vadd.f32 %v2624, %v2694
          %2698 = vst.msk [vmem:[#allocation4] sm:$0xff] %vm1669, %v2697
        $region76: #{gnn_graphpred_forward.1} parent=71 // pred_fallthru
          _
        %p2699 = scmp.eq.s32.totalorder %s27, 1
        %p2700 = pnand %p1705, %p2699
        %p2701 = pneg %p2700
        // Predicated region
        $region77: #{gnn_graphpred_forward.1} parent=71 // pred_check
          _
        $region78: #{gnn_graphpred_forward.1} parent=71 // pred_check_branch
          %2703 = sbr.rel (%p2700) target = $region80
        $region79: #{gnn_graphpred_forward.1} parent=71 // pred_region
          %v2704 = vld [vmem:[#allocation4] sm:$0xff]
          %v2705 = vld [vmem:[%s8] sm:$0xff]
          %v2706 = vld [vmem:[%s8 + $0x8] sm:$0xff]
          %v2707 = vld [vmem:[%s8 + $0x10] sm:$0xff]
          %v2708 = vld [vmem:[%s8 + $0x18] sm:$0xff]
          %v2709 = vld [vmem:[%s9] sm:$0x1]
          %v2711 = vlaneseq
          %v2712 = vshrl.u32 %v2711, 7
          %v2713 = vsub.s32 0, %v2712
          %v2714 = vrot.slane %v2709, %v2713
          %v2717 = vsel %vm1669, %v2704, 0
          %2719 = vmatprep.subr.mxu0 0.0
          %2720 = vmatpush1.msra.mxu0 %v2705
          %2721 = vmatprep.subr.mxu0 0.0
          %2722 = vmatpush1.msra.mxu0 %v2706
          %2723 = vmatprep.subr.mxu0 0.0
          %2724 = vmatpush1.msra.mxu0 %v2707
          %2725 = vmatprep.subr.mxu0 0.0
          %2726 = vmatpush1.msra.mxu0 %v2708
          %2727 = vmatprep.subr.mxu0 0.0
          %2728 = vmatpush1.msra.mxu0 0.0
          %2729 = vmatprep.subr.mxu0 0.0
          %2730 = vmatpush1.msra.mxu0 0.0
          %2731 = vmatprep.subr.mxu0 0.0
          %2732 = vmatpush1.msra.mxu0 0.0
          %2733 = vmatprep.subr.mxu0 0.0
          %2734 = vmatpush1.msra.mxu0 0.0
          %2735 = vmatprep.subr.mxu0 0.0
          %2736 = vmatpush1.msra.mxu0 0.0
          %2737 = vmatprep.subr.mxu0 0.0
          %2738 = vmatpush1.msra.mxu0 0.0
          %2739 = vmatprep.subr.mxu0 0.0
          %2740 = vmatpush1.msra.mxu0 0.0
          %2741 = vmatprep.subr.mxu0 0.0
          %2742 = vmatpush1.msra.mxu0 0.0
          %2743 = vmatprep.subr.mxu0 0.0
          %2744 = vmatpush1.msra.mxu0 0.0
          %2745 = vmatprep.subr.mxu0 0.0
          %2746 = vmatpush1.msra.mxu0 0.0
          %2747 = vmatprep.subr.mxu0 0.0
          %2748 = vmatpush1.msra.mxu0 0.0
          %2749 = vmatprep.subr.mxu0 0.0
          %2750 = vmatpush1.msra.mxu0 0.0
          %2751 = vmatprep.subr.mxu0 0.0
          %2752 = vmatpush1.msra.mxu0 0.0
          %2753 = vmatprep.subr.mxu0 0.0
          %2754 = vmatpush1.msra.mxu0 0.0
          %2755 = vmatprep.subr.mxu0 0.0
          %2756 = vmatpush1.msra.mxu0 0.0
          %2757 = vmatprep.subr.mxu0 0.0
          %2758 = vmatpush1.msra.mxu0 0.0
          %2759 = vmatprep.subr.mxu0 0.0
          %2760 = vmatpush1.msra.mxu0 0.0
          %2761 = vmatprep.subr.mxu0 0.0
          %2762 = vmatpush1.msra.mxu0 0.0
          %2763 = vmatprep.subr.mxu0 0.0
          %2764 = vmatpush1.msra.mxu0 0.0
          %2765 = vmatprep.subr.mxu0 0.0
          %2766 = vmatpush1.msra.mxu0 0.0
          %2767 = vmatprep.subr.mxu0 0.0
          %2768 = vmatpush1.msra.mxu0 0.0
          %2769 = vmatprep.subr.mxu0 0.0
          %2770 = vmatpush1.msra.mxu0 0.0
          %2771 = vmatprep.subr.mxu0 0.0
          %2772 = vmatpush1.msra.mxu0 0.0
          %2773 = vmatprep.subr.mxu0 0.0
          %2774 = vmatpush1.msra.mxu0 0.0
          %2775 = vmatprep.subr.mxu0 0.0
          %2776 = vmatpush1.msra.mxu0 0.0
          %2777 = vmatprep.subr.mxu0 0.0
          %2778 = vmatpush1.msra.mxu0 0.0
          %2779 = vmatprep.subr.mxu0 0.0
          %2780 = vmatpush1.msra.mxu0 0.0
          %2781 = vmatprep.subr.mxu0 0.0
          %2782 = vmatpush1.msra.mxu0 0.0
          %2783 = vmatprep.mubr.f32.mxu0 0.0
          %2784 = vmatmul.mubr.f32.gmra.mrb[0].mxu0 %v2717
          %v2785 = vpop.f32.mrb[0].mxu0
          %v2786 = vadd.f32 %v2714, %v2785
          %v2787 = vpop.f32.mrb[0].mxu0
          %2788 = vdwg.mxu0
          %2789 = vst [vmem:[%s10] sm:$0xff] %v2786
        $region80: #{gnn_graphpred_forward.1} parent=71 // pred_fallthru
          _
      $region72: #{gnn_graphpred_forward.1} parent=59 // pred_fallthru
        _
      // Predicated region
      $region81: #{gnn_graphpred_forward.1} parent=59 // pred_check
        %p2790 = pneg %p302
      $region82: #{gnn_graphpred_forward.1} parent=59 // pred_check_branch
        %2792 = sbr.rel (%p2790) target = $region84
      $region83: #{gnn_graphpred_forward.1} parent=59 // pred_region
        _
      $region84: #{gnn_graphpred_forward.1} parent=59 // pred_fallthru
        _
      // Predicated region
      $region85: #{gnn_graphpred_forward.1} parent=59 // pred_check
        %p2793 = pneg %p302
      $region86: #{gnn_graphpred_forward.1} parent=59 // pred_check_branch
        %2795 = sbr.rel (%p2793) target = $region88
      $region87: #{gnn_graphpred_forward.1} parent=59 // pred_region
        _
      $region88: #{gnn_graphpred_forward.1} parent=59 // pred_fallthru
        _
    $region60: #{gnn_graphpred_forward.1} parent=5 // pred_fallthru
      _
    %p2796 = scmp.le.s32.totalorder 2, %s16
    // Predicated region
    $region89: #{gnn_graphpred_forward.1} parent=5 // pred_check
      %p2797 = pneg %p2796
    $region90: #{gnn_graphpred_forward.1} parent=5 // pred_check_branch
      %2799 = sbr.rel (%p2797) target = $region92
    $region91: #{gnn_graphpred_forward.1} parent=5 // pred_region
      %s2800 = ssub.s32 %s16, 2
    $region92: #{gnn_graphpred_forward.1} parent=5 // pred_fallthru
      _
  $region6: #{gnn_graphpred_forward.1} parent=0 // loop_footer
    %s20 = sadd.s32 1, %s16
  $region7: #{gnn_graphpred_forward.1} parent=0 // loop_footer_branch
    %15 = sbr.rel target = $region3
  $region8: #{gnn_graphpred_forward.1} parent=0 // loop_exit
    _

</llo_original>
